<compile_context>
chip_gen: v7x
topology: tpu7x:2x2x1
jax: 0.10.0
libtpu: 0.0.40
codegen_flags: <defaults>
</compile_context>

<pallas_src>
import jax
import jax.numpy as jnp
from jax.experimental import pallas as pl
from jax.experimental.pallas import tpu as pltpu

# ---- model hyperparameters (from the PyTorch script) ----
VOCAB = 65             # len(sorted(set(text))) (tiny-shakespeare)
VOCAB_PAD = 128        # lane-dense padded lm_head width (sliced back to VOCAB outside)
N_EMBD = 64
BLOCK_SIZE = 32
N_HEAD = 4
N_LAYER = 4
HEAD_SIZE = N_EMBD // N_HEAD
FF_HIDDEN = 4 * N_EMBD
EPS = 1e-5             # nn.LayerNorm default
NEG_INF = -1e30
# dropout = 0.0 in the reference -> dropout is the identity, omitted.


# ---------------------------------------------------------------------------
# Fused Pallas kernel (one grid step == one batch element, full 4-layer model)
# ---------------------------------------------------------------------------
def _layernorm(x, g, b):
    # x: (T, C) f32; g, b: (1, C) f32
    mu = jnp.mean(x, axis=-1, keepdims=True)
    xc = x - mu
    var = jnp.mean(xc * xc, axis=-1, keepdims=True)
    return xc * jax.lax.rsqrt(var + EPS) * g + b


def fused_forward_kernel(x_ref, w_big_ref, w_ff2_ref, w_lm_ref,
                         p_ref, b_ff1_ref, b_lm_ref, o_ref):
    """Entire BigramLLM forward for ONE batch element.

    x_ref:     (T, C) f32          (batch dim squeezed by the BlockSpec)
    w_big_ref: (L, C, 8C) bf16     per layer columns = [Wq | Wk | Wv | Wproj | W1]
    w_ff2_ref: (L, 4C, C) bf16
    w_lm_ref:  (C, VOCAB_PAD) bf16
    p_ref:     (6L+2, 1, C) f32    per layer rows = [g1, b1, g2, b2, bproj, bff2];
                                   last two rows = ln_f gamma, ln_f beta
    b_ff1_ref: (L, 1, 4C) f32
    b_lm_ref:  (1, VOCAB_PAD) f32
    o_ref:     (T, VOCAB_PAD) f32
    """
    x = x_ref[...]                                   # (T, C) f32
    T = x.shape[0]

    # (T, T) causal additive mask: plain comparison, no integer // or %.
    row = jax.lax.broadcasted_iota(jnp.int32, (T, T), 0)
    col = jax.lax.broadcasted_iota(jnp.int32, (T, T), 1)
    mask_add = jnp.where(row >= col, 0.0, NEG_INF).astype(jnp.float32)

    scale = 1.0 / (N_EMBD ** 0.5)   # reference scales by sqrt(n_embd), not sqrt(head_size)

    for l in range(N_LAYER):
        g1 = p_ref[6 * l + 0]
        b1 = p_ref[6 * l + 1]
        g2 = p_ref[6 * l + 2]
        b2 = p_ref[6 * l + 3]
        bp = p_ref[6 * l + 4]
        bf2 = p_ref[6 * l + 5]
        w_big = w_big_ref[l]                         # (C, 8C) bf16

        # ---- pre-norm multi-head causal self-attention ----
        h = _layernorm(x, g1, b1)                    # (T, C) f32
        # One lane-dense 192-wide QKV matmul (bf16 operands, f32 accumulation).
        qkv = jnp.dot(h.astype(jnp.bfloat16), w_big[:, :3 * N_EMBD],
                      preferred_element_type=jnp.float32)          # (T, 3C) f32
        qkv_b = qkv.astype(jnp.bfloat16)
        heads = []
        for hh in range(N_HEAD):
            q = qkv_b[:, hh * HEAD_SIZE:(hh + 1) * HEAD_SIZE]
            k = qkv_b[:, N_EMBD + hh * HEAD_SIZE:N_EMBD + (hh + 1) * HEAD_SIZE]
            v = qkv_b[:, 2 * N_EMBD + hh * HEAD_SIZE:2 * N_EMBD + (hh + 1) * HEAD_SIZE]
            # q @ k^T without an explicit transpose: contract the last dims.
            s = jax.lax.dot_general(q, k, (((1,), (1,)), ((), ())),
                                    preferred_element_type=jnp.float32)  # (T, T) f32
            s = s * scale + mask_add
            s = s - jnp.max(s, axis=-1, keepdims=True)
            p = jnp.exp(s)
            p = p / jnp.sum(p, axis=-1, keepdims=True)               # exact softmax (f32)
            heads.append(jnp.dot(p.astype(jnp.bfloat16), v,
                                 preferred_element_type=jnp.float32))  # (T, Dh) f32
        att = jnp.concatenate(heads, axis=-1).astype(jnp.bfloat16)     # (T, C)
        # Single lane-dense output projection (instead of four K=16 matmuls).
        sa = jnp.dot(att, w_big[:, 3 * N_EMBD:4 * N_EMBD],
                     preferred_element_type=jnp.float32) + bp
        x = x + sa

        # ---- pre-norm feed-forward ----
        h2 = _layernorm(x, g2, b2)
        ff = jnp.dot(h2.astype(jnp.bfloat16), w_big[:, 4 * N_EMBD:],
                     preferred_element_type=jnp.float32) + b_ff1_ref[l]
        ff = jnp.maximum(ff, 0.0)
        x = x + jnp.dot(ff.astype(jnp.bfloat16), w_ff2_ref[l],
                        preferred_element_type=jnp.float32) + bf2

    # ---- final LayerNorm + lm_head (lane-dense, padded to 128 columns) ----
    hf = _layernorm(x, p_ref[6 * N_LAYER], p_ref[6 * N_LAYER + 1])
    o_ref[...] = jnp.dot(hf.astype(jnp.bfloat16), w_lm_ref[...],
                         preferred_element_type=jnp.float32) + b_lm_ref[...]


# ---------------------------------------------------------------------------
# One-time weight layout (HOISTED out of the jitted forward path)
# ---------------------------------------------------------------------------
def prepare_weights(params):
    """Pack all per-layer weights into a few contiguous slabs, bf16 for MXU weights."""
    layers = params["layers"]
    # Per layer: [Wq | Wk | Wv | Wproj | W1] along columns -> (L, C, 8C) bf16.
    w_big = jnp.stack([
        jnp.concatenate([layers[l][0], layers[l][1], layers[l][2],
                         layers[l][3], layers[l][9]], axis=1)
        for l in range(N_LAYER)]).astype(jnp.bfloat16)
    w_ff2 = jnp.stack([layers[l][11] for l in range(N_LAYER)]).astype(jnp.bfloat16)
    w_lm = (jnp.zeros((N_EMBD, VOCAB_PAD), jnp.float32)
            .at[:, :VOCAB].set(params["lm_w"]).astype(jnp.bfloat16))
    b_lm = jnp.zeros((1, VOCAB_PAD), jnp.float32).at[:, :VOCAB].set(params["lm_b"])

    # Small f32 params: per layer [g1, b1, g2, b2, bproj, bff2], then ln_f gamma/beta.
    rows = []
    for l in range(N_LAYER):
        lw = layers[l]
        rows += [lw[5], lw[6], lw[7], lw[8], lw[4], lw[12]]   # each (1, C)
    rows += [params["ln_f_g"], params["ln_f_b"]]
    p_small = jnp.stack(rows)                                  # (6L+2, 1, C)
    b_ff1 = jnp.stack([layers[l][10] for l in range(N_LAYER)])  # (L, 1, 4C)

    return {
        "tok_emb": params["tok_emb"], "pos_emb": params["pos_emb"],
        "w_big": w_big, "w_ff2": w_ff2, "w_lm": w_lm, "b_lm": b_lm,
        "p_small": p_small, "b_ff1": b_ff1,
    }


# ---------------------------------------------------------------------------
# Forward wrapper: embedding gather (glue) + single pallas_call over grid=(B,)
# ---------------------------------------------------------------------------
def forward(idx, packed):
    """BigramLLM.forward(idx, targets=None) -> logits (B, T, vocab); loss is None."""
    B, T = idx.shape
    tok = packed["tok_emb"][idx]                  # (B, T, C) -- plain-JAX gather (glue)
    pos = packed["pos_emb"][:T]                   # (T, C)
    x = tok + pos[None, :, :]                     # (B, T, C) f32

    # Advisory cost hint for XLA scheduling around the custom call.
    dense = 2 * T * (N_EMBD * 3 * N_EMBD + N_EMBD * N_EMBD
                     + N_EMBD * FF_HIDDEN + FF_HIDDEN * N_EMBD)
    attn = N_HEAD * 4 * T * T * HEAD_SIZE
    flops = B * (N_LAYER * (dense + attn) + 2 * T * N_EMBD * VOCAB_PAD)
    bytes_accessed = ((x.size + B * T * VOCAB_PAD) * 4
                      + 2 * (packed["w_big"].size + packed["w_ff2"].size
                             + packed["w_lm"].size)
                      + 4 * (packed["p_small"].size + packed["b_ff1"].size
                             + packed["b_lm"].size))

    logits_pad = pl.pallas_call(
        fused_forward_kernel,
        grid=(B,),
        in_specs=[
            # activations: one batch element per grid step (batch dim squeezed)
            pl.BlockSpec((None, T, N_EMBD), lambda b: (b, 0, 0)),
            # weight slabs: constant index_map -> resident in VMEM across steps
            pl.BlockSpec((N_LAYER, N_EMBD, 8 * N_EMBD), lambda b: (0, 0, 0)),
            pl.BlockSpec((N_LAYER, FF_HIDDEN, N_EMBD), lambda b: (0, 0, 0)),
            pl.BlockSpec((N_EMBD, VOCAB_PAD), lambda b: (0, 0)),
            pl.BlockSpec((6 * N_LAYER + 2, 1, N_EMBD), lambda b: (0, 0, 0)),
            pl.BlockSpec((N_LAYER, 1, FF_HIDDEN), lambda b: (0, 0, 0)),
            pl.BlockSpec((1, VOCAB_PAD), lambda b: (0, 0)),
        ],
        out_specs=pl.BlockSpec((None, T, VOCAB_PAD), lambda b: (b, 0, 0)),
        out_shape=jax.ShapeDtypeStruct((B, T, VOCAB_PAD), jnp.float32),
        compiler_params=pltpu.CompilerParams(
            dimension_semantics=("parallel",)),     # batch-parallel (2nd TC on v7x)
        cost_estimate=pl.CostEstimate(
            flops=flops,
            transcendentals=B * N_LAYER * N_HEAD * T * T,
            bytes_accessed=bytes_accessed),
    )(x, packed["w_big"], packed["w_ff2"], packed["w_lm"],
      packed["p_small"], packed["b_ff1"], packed["b_lm"])

    # TODO(synk): the targets/cross-entropy branch of forward() is only used when
    # targets is not None; this script exercises the targets=None branch (loss=None).
    return logits_pad[..., :VOCAB]


forward_jit = jax.jit(forward)


# ---------------------------------------------------------------------------
# deterministic parameter init + pure-JAX reference
# ---------------------------------------------------------------------------
def init_params(key):
    keys = iter(jax.random.split(key, 256))
    nxt = lambda: next(keys)

    def lin_w(fan_in, fan_out):
        return (0.02 * jax.random.normal(nxt(), (fan_in, fan_out))).astype(jnp.float32)

    params = {
        "tok_emb": jax.random.normal(nxt(), (VOCAB, N_EMBD)).astype(jnp.float32),
        "pos_emb": jax.random.normal(nxt(), (BLOCK_SIZE, N_EMBD)).astype(jnp.float32),
        "layers": [],
        "ln_f_g": jnp.ones((1, N_EMBD), jnp.float32),
        "ln_f_b": jnp.zeros((1, N_EMBD), jnp.float32),
        "lm_w": lin_w(N_EMBD, VOCAB),
        "lm_b": jnp.zeros((1, VOCAB), jnp.float32),
    }
    for _ in range(N_LAYER):
        params["layers"].append((
            lin_w(N_EMBD, N_EMBD),                      # 0  Wq (all heads, concat cols)
            lin_w(N_EMBD, N_EMBD),                      # 1  Wk
            lin_w(N_EMBD, N_EMBD),                      # 2  Wv
            lin_w(N_EMBD, N_EMBD),                      # 3  Wproj
            jnp.zeros((1, N_EMBD), jnp.float32),        # 4  bproj
            jnp.ones((1, N_EMBD), jnp.float32),         # 5  ln1 gamma
            jnp.zeros((1, N_EMBD), jnp.float32),        # 6  ln1 beta
            jnp.ones((1, N_EMBD), jnp.float32),         # 7  ln2 gamma
            jnp.zeros((1, N_EMBD), jnp.float32),        # 8  ln2 beta
            lin_w(N_EMBD, FF_HIDDEN),                   # 9  FF W1
            jnp.zeros((1, FF_HIDDEN), jnp.float32),     # 10 FF b1
            lin_w(FF_HIDDEN, N_EMBD),                   # 11 FF W2
            jnp.zeros((1, N_EMBD), jnp.float32),        # 12 FF b2
        ))
    return params


def ref_layernorm(x, g, b):
    mu = jnp.mean(x, axis=-1, keepdims=True)
    var = jnp.mean((x - mu) ** 2, axis=-1, keepdims=True)
    return (x - mu) / jnp.sqrt(var + EPS) * g + b


def ref_forward(idx, params):
    B, T = idx.shape
    x = params["tok_emb"][idx] + params["pos_emb"][:T][None]
    tril = jnp.tril(jnp.ones((T, T), bool))
    for (wq, wk, wv, wp, bp, g1, b1, g2, b2, w1, bf1, w2, bf2) in params["layers"]:
        h = ref_layernorm(x, g1, b1)
        q = (h @ wq).reshape(B, T, N_HEAD, HEAD_SIZE).transpose(0, 2, 1, 3)
        k = (h @ wk).reshape(B, T, N_HEAD, HEAD_SIZE).transpose(0, 2, 1, 3)
        v = (h @ wv).reshape(B, T, N_HEAD, HEAD_SIZE).transpose(0, 2, 1, 3)
        wei = jnp.einsum("bhtd,bhsd->bhts", q, k) / (N_EMBD ** 0.5)
        wei = jnp.where(tril, wei, -jnp.inf)
        wei = jax.nn.softmax(wei, axis=-1)
        att = jnp.einsum("bhts,bhsd->bhtd", wei, v).transpose(0, 2, 1, 3).reshape(B, T, N_EMBD)
        x = x + att @ wp + bp
        h2 = ref_layernorm(x, g2, b2)
        x = x + jnp.maximum(h2 @ w1 + bf1, 0.0) @ w2 + bf2
    x = ref_layernorm(x, params["ln_f_g"], params["ln_f_b"])
    return x @ params["lm_w"] + params["lm_b"]


# ---------------------------------------------------------------------------
if __name__ == "__main__":
    key = jax.random.PRNGKey(0)
    kp, ki = jax.random.split(key)
    params = init_params(kp)
    packed = prepare_weights(params)             # ONCE, outside the jitted path

    B, T = 2, 8                                  # T <= block_size (32)
    idx = jax.random.randint(ki, (B, T), 0, VOCAB, dtype=jnp.int32)

    logits = forward_jit(idx, packed)
    logits = jax.block_until_ready(logits)
    assert logits.shape == (B, T, VOCAB)

    ref = ref_forward(idx, params)               # pure-f32 reference
    # bf16 MXU operands (f32 accumulation) introduce ~1e-3 absolute error on
    # logits of magnitude ~0.2; comfortably inside the 1e-2 tolerance.
    assert jnp.allclose(logits, ref, rtol=1e-2, atol=1e-2), (
        float(jnp.max(jnp.abs(logits - ref))))

    print("KERNEL_OK")
</pallas_src>

<mosaic_0001>
module attributes {stable_mosaic.version = 11 : i64} {
  func.func @fused_forward_kernel(%arg0: i32, %arg1: memref<1x8x64xf32, #tpu.memory_space<vmem>>, %arg2: memref<4x64x512xbf16, #tpu.memory_space<vmem>>, %arg3: memref<4x256x64xbf16, #tpu.memory_space<vmem>>, %arg4: memref<64x128xbf16, #tpu.memory_space<vmem>>, %arg5: memref<26x1x64xf32, #tpu.memory_space<vmem>>, %arg6: memref<4x1x256xf32, #tpu.memory_space<vmem>>, %arg7: memref<1x128xf32, #tpu.memory_space<vmem>>, %arg8: memref<1x8x128xf32, #tpu.memory_space<vmem>>) attributes {dimension_semantics = [#tpu.dimension_semantics<parallel>], iteration_bounds = array<i64: 2>, scalar_prefetch = 0 : i64, scratch_operands = 0 : i64, tpu.core_type = #tpu.core_type<tc>, window_params = [{transform_indices = @transform_0, window_bounds = array<i64: 1, 8, 64>}, {pipeline_mode = #tpu.pipeline_mode<synchronous>, transform_indices = @transform_1, window_bounds = array<i64: 4, 64, 512>}, {pipeline_mode = #tpu.pipeline_mode<synchronous>, transform_indices = @transform_2, window_bounds = array<i64: 4, 256, 64>}, {pipeline_mode = #tpu.pipeline_mode<synchronous>, transform_indices = @transform_3, window_bounds = array<i64: 64, 128>}, {pipeline_mode = #tpu.pipeline_mode<synchronous>, transform_indices = @transform_4, window_bounds = array<i64: 26, 1, 64>}, {pipeline_mode = #tpu.pipeline_mode<synchronous>, transform_indices = @transform_5, window_bounds = array<i64: 4, 1, 256>}, {pipeline_mode = #tpu.pipeline_mode<synchronous>, transform_indices = @transform_6, window_bounds = array<i64: 1, 128>}, {transform_indices = @transform_7, window_bounds = array<i64: 1, 8, 128>}]} {
    %c0 = arith.constant 0 : index
    %c0_0 = arith.constant 0 : index
    %c0_1 = arith.constant 0 : index
    %0 = vector.load %arg1[%c0, %c0_0, %c0_1] : memref<1x8x64xf32, #tpu.memory_space<vmem>>, vector<1x8x64xf32>
    %1 = vector.shape_cast %0 : vector<1x8x64xf32> to vector<8x64xf32>
    %2 = tpu.iota {dimensions = array<i32: 0>} : vector<8x8xi32>
    %3 = tpu.iota {dimensions = array<i32: 1>} : vector<8x8xi32>
    %4 = arith.cmpi sge, %2, %3 : vector<8x8xi32>
    %cst = arith.constant 0.000000e+00 : f32
    %cst_2 = arith.constant -1.000000e+30 : f32
    %5 = vector.broadcast %cst : f32 to vector<8x8xf32>
    %6 = vector.broadcast %cst_2 : f32 to vector<8x8xf32>
    %7 = arith.select %4, %5, %6 : vector<8x8xi1>, vector<8x8xf32>
    %c0_3 = arith.constant 0 : index
    %c0_4 = arith.constant 0 : index
    %c0_5 = arith.constant 0 : index
    %8 = vector.load %arg5[%c0_3, %c0_4, %c0_5] : memref<26x1x64xf32, #tpu.memory_space<vmem>>, vector<1x1x64xf32>
    %9 = vector.shape_cast %8 : vector<1x1x64xf32> to vector<1x64xf32>
    %c1 = arith.constant 1 : index
    %c0_6 = arith.constant 0 : index
    %c0_7 = arith.constant 0 : index
    %10 = vector.load %arg5[%c1, %c0_6, %c0_7] : memref<26x1x64xf32, #tpu.memory_space<vmem>>, vector<1x1x64xf32>
    %11 = vector.shape_cast %10 : vector<1x1x64xf32> to vector<1x64xf32>
    %c2 = arith.constant 2 : index
    %c0_8 = arith.constant 0 : index
    %c0_9 = arith.constant 0 : index
    %12 = vector.load %arg5[%c2, %c0_8, %c0_9] : memref<26x1x64xf32, #tpu.memory_space<vmem>>, vector<1x1x64xf32>
    %13 = vector.shape_cast %12 : vector<1x1x64xf32> to vector<1x64xf32>
    %c3 = arith.constant 3 : index
    %c0_10 = arith.constant 0 : index
    %c0_11 = arith.constant 0 : index
    %14 = vector.load %arg5[%c3, %c0_10, %c0_11] : memref<26x1x64xf32, #tpu.memory_space<vmem>>, vector<1x1x64xf32>
    %15 = vector.shape_cast %14 : vector<1x1x64xf32> to vector<1x64xf32>
    %c4 = arith.constant 4 : index
    %c0_12 = arith.constant 0 : index
    %c0_13 = arith.constant 0 : index
    %16 = vector.load %arg5[%c4, %c0_12, %c0_13] : memref<26x1x64xf32, #tpu.memory_space<vmem>>, vector<1x1x64xf32>
    %17 = vector.shape_cast %16 : vector<1x1x64xf32> to vector<1x64xf32>
    %c5 = arith.constant 5 : index
    %c0_14 = arith.constant 0 : index
    %c0_15 = arith.constant 0 : index
    %18 = vector.load %arg5[%c5, %c0_14, %c0_15] : memref<26x1x64xf32, #tpu.memory_space<vmem>>, vector<1x1x64xf32>
    %19 = vector.shape_cast %18 : vector<1x1x64xf32> to vector<1x64xf32>
    %c0_16 = arith.constant 0 : index
    %c0_17 = arith.constant 0 : index
    %c0_18 = arith.constant 0 : index
    %20 = vector.load %arg2[%c0_16, %c0_17, %c0_18] : memref<4x64x512xbf16, #tpu.memory_space<vmem>>, vector<1x64x512xbf16>
    %21 = vector.shape_cast %20 : vector<1x64x512xbf16> to vector<64x512xbf16>
    %cst_19 = arith.constant dense<0.000000e+00> : vector<8xf32>
    %22 = vector.multi_reduction <add>, %1, %cst_19 [1] : vector<8x64xf32> to vector<8xf32>
    %23 = vector.shape_cast %22 : vector<8xf32> to vector<8x1xf32>
    %cst_20 = arith.constant 6.400000e+01 : f32
    %24 = vector.broadcast %cst_20 : f32 to vector<8x1xf32>
    %25 = arith.divf %23, %24 : vector<8x1xf32>
    %26 = vector.broadcast %25 : vector<8x1xf32> to vector<8x64xf32>
    %27 = arith.subf %1, %26 : vector<8x64xf32>
    %28 = arith.mulf %27, %27 : vector<8x64xf32>
    %cst_21 = arith.constant dense<0.000000e+00> : vector<8xf32>
    %29 = vector.multi_reduction <add>, %28, %cst_21 [1] : vector<8x64xf32> to vector<8xf32>
    %30 = vector.shape_cast %29 : vector<8xf32> to vector<8x1xf32>
    %cst_22 = arith.constant 6.400000e+01 : f32
    %31 = vector.broadcast %cst_22 : f32 to vector<8x1xf32>
    %32 = arith.divf %30, %31 : vector<8x1xf32>
    %cst_23 = arith.constant 9.99999974E-6 : f32
    %33 = vector.broadcast %cst_23 : f32 to vector<8x1xf32>
    %34 = arith.addf %32, %33 : vector<8x1xf32>
    %35 = math.rsqrt %34 : vector<8x1xf32>
    %36 = vector.broadcast %35 : vector<8x1xf32> to vector<8x64xf32>
    %37 = arith.mulf %27, %36 : vector<8x64xf32>
    %38 = vector.broadcast %9 : vector<1x64xf32> to vector<8x64xf32>
    %39 = arith.mulf %37, %38 : vector<8x64xf32>
    %40 = vector.broadcast %11 : vector<1x64xf32> to vector<8x64xf32>
    %41 = arith.addf %39, %40 : vector<8x64xf32>
    %42 = arith.truncf %41 : vector<8x64xf32> to vector<8x64xbf16>
    %43 = vector.extract_strided_slice %21 {offsets = [0, 0], sizes = [64, 192], strides = [1, 1]} : vector<64x512xbf16> to vector<64x192xbf16>
    %cst_24 = arith.constant dense<0.000000e+00> : vector<8x192xf32>
    %44 = tpu.matmul %42, %43, %cst_24 {dimension_numbers = #tpu.dot_dimension_numbers<[1], [0], [0], [1], [0, 0, 1, 1], [], []>} : vector<8x64xbf16>, vector<64x192xbf16>, vector<8x192xf32> -> vector<8x192xf32>
    %45 = arith.truncf %44 : vector<8x192xf32> to vector<8x192xbf16>
    %46 = vector.extract_strided_slice %45 {offsets = [0, 0], sizes = [8, 16], strides = [1, 1]} : vector<8x192xbf16> to vector<8x16xbf16>
    %47 = vector.extract_strided_slice %45 {offsets = [0, 64], sizes = [8, 16], strides = [1, 1]} : vector<8x192xbf16> to vector<8x16xbf16>
    %48 = vector.extract_strided_slice %45 {offsets = [0, 128], sizes = [8, 16], strides = [1, 1]} : vector<8x192xbf16> to vector<8x16xbf16>
    %cst_25 = arith.constant dense<0.000000e+00> : vector<8x8xf32>
    %49 = tpu.matmul %46, %47, %cst_25 {dimension_numbers = #tpu.dot_dimension_numbers<[1], [1], [0], [0], [0, 0, 1, 0], [], []>} : vector<8x16xbf16>, vector<8x16xbf16>, vector<8x8xf32> -> vector<8x8xf32>
    %cst_26 = arith.constant 1.250000e-01 : f32
    %50 = vector.broadcast %cst_26 : f32 to vector<8x8xf32>
    %51 = arith.mulf %49, %50 : vector<8x8xf32>
    %52 = arith.addf %51, %7 : vector<8x8xf32>
    %cst_27 = arith.constant dense<0xFF800000> : vector<8xf32>
    %53 = vector.multi_reduction <maximumf>, %52, %cst_27 [1] : vector<8x8xf32> to vector<8xf32>
    %54 = vector.shape_cast %53 : vector<8xf32> to vector<8x1xf32>
    %55 = vector.broadcast %54 : vector<8x1xf32> to vector<8x8xf32>
    %56 = arith.subf %52, %55 : vector<8x8xf32>
    %57 = math.exp %56 : vector<8x8xf32>
    %cst_28 = arith.constant dense<0.000000e+00> : vector<8xf32>
    %58 = vector.multi_reduction <add>, %57, %cst_28 [1] : vector<8x8xf32> to vector<8xf32>
    %59 = vector.shape_cast %58 : vector<8xf32> to vector<8x1xf32>
    %60 = vector.broadcast %59 : vector<8x1xf32> to vector<8x8xf32>
    %61 = arith.divf %57, %60 : vector<8x8xf32>
    %62 = arith.truncf %61 : vector<8x8xf32> to vector<8x8xbf16>
    %cst_29 = arith.constant dense<0.000000e+00> : vector<8x16xf32>
    %63 = tpu.matmul %62, %48, %cst_29 {dimension_numbers = #tpu.dot_dimension_numbers<[1], [0], [0], [1], [0, 0, 1, 1], [], []>} : vector<8x8xbf16>, vector<8x16xbf16>, vector<8x16xf32> -> vector<8x16xf32>
    %64 = vector.extract_strided_slice %45 {offsets = [0, 16], sizes = [8, 16], strides = [1, 1]} : vector<8x192xbf16> to vector<8x16xbf16>
    %65 = vector.extract_strided_slice %45 {offsets = [0, 80], sizes = [8, 16], strides = [1, 1]} : vector<8x192xbf16> to vector<8x16xbf16>
    %66 = vector.extract_strided_slice %45 {offsets = [0, 144], sizes = [8, 16], strides = [1, 1]} : vector<8x192xbf16> to vector<8x16xbf16>
    %cst_30 = arith.constant dense<0.000000e+00> : vector<8x8xf32>
    %67 = tpu.matmul %64, %65, %cst_30 {dimension_numbers = #tpu.dot_dimension_numbers<[1], [1], [0], [0], [0, 0, 1, 0], [], []>} : vector<8x16xbf16>, vector<8x16xbf16>, vector<8x8xf32> -> vector<8x8xf32>
    %cst_31 = arith.constant 1.250000e-01 : f32
    %68 = vector.broadcast %cst_31 : f32 to vector<8x8xf32>
    %69 = arith.mulf %67, %68 : vector<8x8xf32>
    %70 = arith.addf %69, %7 : vector<8x8xf32>
    %cst_32 = arith.constant dense<0xFF800000> : vector<8xf32>
    %71 = vector.multi_reduction <maximumf>, %70, %cst_32 [1] : vector<8x8xf32> to vector<8xf32>
    %72 = vector.shape_cast %71 : vector<8xf32> to vector<8x1xf32>
    %73 = vector.broadcast %72 : vector<8x1xf32> to vector<8x8xf32>
    %74 = arith.subf %70, %73 : vector<8x8xf32>
    %75 = math.exp %74 : vector<8x8xf32>
    %cst_33 = arith.constant dense<0.000000e+00> : vector<8xf32>
    %76 = vector.multi_reduction <add>, %75, %cst_33 [1] : vector<8x8xf32> to vector<8xf32>
    %77 = vector.shape_cast %76 : vector<8xf32> to vector<8x1xf32>
    %78 = vector.broadcast %77 : vector<8x1xf32> to vector<8x8xf32>
    %79 = arith.divf %75, %78 : vector<8x8xf32>
    %80 = arith.truncf %79 : vector<8x8xf32> to vector<8x8xbf16>
    %cst_34 = arith.constant dense<0.000000e+00> : vector<8x16xf32>
    %81 = tpu.matmul %80, %66, %cst_34 {dimension_numbers = #tpu.dot_dimension_numbers<[1], [0], [0], [1], [0, 0, 1, 1], [], []>} : vector<8x8xbf16>, vector<8x16xbf16>, vector<8x16xf32> -> vector<8x16xf32>
    %82 = vector.extract_strided_slice %45 {offsets = [0, 32], sizes = [8, 16], strides = [1, 1]} : vector<8x192xbf16> to vector<8x16xbf16>
    %83 = vector.extract_strided_slice %45 {offsets = [0, 96], sizes = [8, 16], strides = [1, 1]} : vector<8x192xbf16> to vector<8x16xbf16>
    %84 = vector.extract_strided_slice %45 {offsets = [0, 160], sizes = [8, 16], strides = [1, 1]} : vector<8x192xbf16> to vector<8x16xbf16>
    %cst_35 = arith.constant dense<0.000000e+00> : vector<8x8xf32>
    %85 = tpu.matmul %82, %83, %cst_35 {dimension_numbers = #tpu.dot_dimension_numbers<[1], [1], [0], [0], [0, 0, 1, 0], [], []>} : vector<8x16xbf16>, vector<8x16xbf16>, vector<8x8xf32> -> vector<8x8xf32>
    %cst_36 = arith.constant 1.250000e-01 : f32
    %86 = vector.broadcast %cst_36 : f32 to vector<8x8xf32>
    %87 = arith.mulf %85, %86 : vector<8x8xf32>
    %88 = arith.addf %87, %7 : vector<8x8xf32>
    %cst_37 = arith.constant dense<0xFF800000> : vector<8xf32>
    %89 = vector.multi_reduction <maximumf>, %88, %cst_37 [1] : vector<8x8xf32> to vector<8xf32>
    %90 = vector.shape_cast %89 : vector<8xf32> to vector<8x1xf32>
    %91 = vector.broadcast %90 : vector<8x1xf32> to vector<8x8xf32>
    %92 = arith.subf %88, %91 : vector<8x8xf32>
    %93 = math.exp %92 : vector<8x8xf32>
    %cst_38 = arith.constant dense<0.000000e+00> : vector<8xf32>
    %94 = vector.multi_reduction <add>, %93, %cst_38 [1] : vector<8x8xf32> to vector<8xf32>
    %95 = vector.shape_cast %94 : vector<8xf32> to vector<8x1xf32>
    %96 = vector.broadcast %95 : vector<8x1xf32> to vector<8x8xf32>
    %97 = arith.divf %93, %96 : vector<8x8xf32>
    %98 = arith.truncf %97 : vector<8x8xf32> to vector<8x8xbf16>
    %cst_39 = arith.constant dense<0.000000e+00> : vector<8x16xf32>
    %99 = tpu.matmul %98, %84, %cst_39 {dimension_numbers = #tpu.dot_dimension_numbers<[1], [0], [0], [1], [0, 0, 1, 1], [], []>} : vector<8x8xbf16>, vector<8x16xbf16>, vector<8x16xf32> -> vector<8x16xf32>
    %100 = vector.extract_strided_slice %45 {offsets = [0, 48], sizes = [8, 16], strides = [1, 1]} : vector<8x192xbf16> to vector<8x16xbf16>
    %101 = vector.extract_strided_slice %45 {offsets = [0, 112], sizes = [8, 16], strides = [1, 1]} : vector<8x192xbf16> to vector<8x16xbf16>
    %102 = vector.extract_strided_slice %45 {offsets = [0, 176], sizes = [8, 16], strides = [1, 1]} : vector<8x192xbf16> to vector<8x16xbf16>
    %cst_40 = arith.constant dense<0.000000e+00> : vector<8x8xf32>
    %103 = tpu.matmul %100, %101, %cst_40 {dimension_numbers = #tpu.dot_dimension_numbers<[1], [1], [0], [0], [0, 0, 1, 0], [], []>} : vector<8x16xbf16>, vector<8x16xbf16>, vector<8x8xf32> -> vector<8x8xf32>
    %cst_41 = arith.constant 1.250000e-01 : f32
    %104 = vector.broadcast %cst_41 : f32 to vector<8x8xf32>
    %105 = arith.mulf %103, %104 : vector<8x8xf32>
    %106 = arith.addf %105, %7 : vector<8x8xf32>
    %cst_42 = arith.constant dense<0xFF800000> : vector<8xf32>
    %107 = vector.multi_reduction <maximumf>, %106, %cst_42 [1] : vector<8x8xf32> to vector<8xf32>
    %108 = vector.shape_cast %107 : vector<8xf32> to vector<8x1xf32>
    %109 = vector.broadcast %108 : vector<8x1xf32> to vector<8x8xf32>
    %110 = arith.subf %106, %109 : vector<8x8xf32>
    %111 = math.exp %110 : vector<8x8xf32>
    %cst_43 = arith.constant dense<0.000000e+00> : vector<8xf32>
    %112 = vector.multi_reduction <add>, %111, %cst_43 [1] : vector<8x8xf32> to vector<8xf32>
    %113 = vector.shape_cast %112 : vector<8xf32> to vector<8x1xf32>
    %114 = vector.broadcast %113 : vector<8x1xf32> to vector<8x8xf32>
    %115 = arith.divf %111, %114 : vector<8x8xf32>
    %116 = arith.truncf %115 : vector<8x8xf32> to vector<8x8xbf16>
    %cst_44 = arith.constant dense<0.000000e+00> : vector<8x16xf32>
    %117 = tpu.matmul %116, %102, %cst_44 {dimension_numbers = #tpu.dot_dimension_numbers<[1], [0], [0], [1], [0, 0, 1, 1], [], []>} : vector<8x8xbf16>, vector<8x16xbf16>, vector<8x16xf32> -> vector<8x16xf32>
    %118 = tpu.concatenate %63, %81, %99, %117 in 1 : vector<8x16xf32>, vector<8x16xf32>, vector<8x16xf32>, vector<8x16xf32> -> vector<8x64xf32>
    %119 = arith.truncf %118 : vector<8x64xf32> to vector<8x64xbf16>
    %120 = vector.extract_strided_slice %21 {offsets = [0, 192], sizes = [64, 64], strides = [1, 1]} : vector<64x512xbf16> to vector<64x64xbf16>
    %cst_45 = arith.constant dense<0.000000e+00> : vector<8x64xf32>
    %121 = tpu.matmul %119, %120, %cst_45 {dimension_numbers = #tpu.dot_dimension_numbers<[1], [0], [0], [1], [0, 0, 1, 1], [], []>} : vector<8x64xbf16>, vector<64x64xbf16>, vector<8x64xf32> -> vector<8x64xf32>
    %122 = vector.broadcast %17 : vector<1x64xf32> to vector<8x64xf32>
    %123 = arith.addf %121, %122 : vector<8x64xf32>
    %124 = arith.addf %1, %123 : vector<8x64xf32>
    %cst_46 = arith.constant dense<0.000000e+00> : vector<8xf32>
    %125 = vector.multi_reduction <add>, %124, %cst_46 [1] : vector<8x64xf32> to vector<8xf32>
    %126 = vector.shape_cast %125 : vector<8xf32> to vector<8x1xf32>
    %cst_47 = arith.constant 6.400000e+01 : f32
    %127 = vector.broadcast %cst_47 : f32 to vector<8x1xf32>
    %128 = arith.divf %126, %127 : vector<8x1xf32>
    %129 = vector.broadcast %128 : vector<8x1xf32> to vector<8x64xf32>
    %130 = arith.subf %124, %129 : vector<8x64xf32>
    %131 = arith.mulf %130, %130 : vector<8x64xf32>
    %cst_48 = arith.constant dense<0.000000e+00> : vector<8xf32>
    %132 = vector.multi_reduction <add>, %131, %cst_48 [1] : vector<8x64xf32> to vector<8xf32>
    %133 = vector.shape_cast %132 : vector<8xf32> to vector<8x1xf32>
    %cst_49 = arith.constant 6.400000e+01 : f32
    %134 = vector.broadcast %cst_49 : f32 to vector<8x1xf32>
    %135 = arith.divf %133, %134 : vector<8x1xf32>
    %cst_50 = arith.constant 9.99999974E-6 : f32
    %136 = vector.broadcast %cst_50 : f32 to vector<8x1xf32>
    %137 = arith.addf %135, %136 : vector<8x1xf32>
    %138 = math.rsqrt %137 : vector<8x1xf32>
    %139 = vector.broadcast %138 : vector<8x1xf32> to vector<8x64xf32>
    %140 = arith.mulf %130, %139 : vector<8x64xf32>
    %141 = vector.broadcast %13 : vector<1x64xf32> to vector<8x64xf32>
    %142 = arith.mulf %140, %141 : vector<8x64xf32>
    %143 = vector.broadcast %15 : vector<1x64xf32> to vector<8x64xf32>
    %144 = arith.addf %142, %143 : vector<8x64xf32>
    %145 = arith.truncf %144 : vector<8x64xf32> to vector<8x64xbf16>
    %146 = vector.extract_strided_slice %21 {offsets = [0, 256], sizes = [64, 256], strides = [1, 1]} : vector<64x512xbf16> to vector<64x256xbf16>
    %cst_51 = arith.constant dense<0.000000e+00> : vector<8x256xf32>
    %147 = tpu.matmul %145, %146, %cst_51 {dimension_numbers = #tpu.dot_dimension_numbers<[1], [0], [0], [1], [0, 0, 1, 1], [], []>} : vector<8x64xbf16>, vector<64x256xbf16>, vector<8x256xf32> -> vector<8x256xf32>
    %c0_52 = arith.constant 0 : index
    %c0_53 = arith.constant 0 : index
    %c0_54 = arith.constant 0 : index
    %148 = vector.load %arg6[%c0_52, %c0_53, %c0_54] : memref<4x1x256xf32, #tpu.memory_space<vmem>>, vector<1x1x256xf32>
    %149 = vector.shape_cast %148 : vector<1x1x256xf32> to vector<1x256xf32>
    %150 = vector.broadcast %149 : vector<1x256xf32> to vector<8x256xf32>
    %151 = arith.addf %147, %150 : vector<8x256xf32>
    %cst_55 = arith.constant 0.000000e+00 : f32
    %152 = vector.broadcast %cst_55 : f32 to vector<8x256xf32>
    %153 = arith.maximumf %151, %152 : vector<8x256xf32>
    %154 = arith.truncf %153 : vector<8x256xf32> to vector<8x256xbf16>
    %c0_56 = arith.constant 0 : index
    %c0_57 = arith.constant 0 : index
    %c0_58 = arith.constant 0 : index
    %155 = vector.load %arg3[%c0_56, %c0_57, %c0_58] : memref<4x256x64xbf16, #tpu.memory_space<vmem>>, vector<1x256x64xbf16>
    %156 = vector.shape_cast %155 : vector<1x256x64xbf16> to vector<256x64xbf16>
    %cst_59 = arith.constant dense<0.000000e+00> : vector<8x64xf32>
    %157 = tpu.matmul %154, %156, %cst_59 {dimension_numbers = #tpu.dot_dimension_numbers<[1], [0], [0], [1], [0, 0, 1, 1], [], []>} : vector<8x256xbf16>, vector<256x64xbf16>, vector<8x64xf32> -> vector<8x64xf32>
    %158 = arith.addf %124, %157 : vector<8x64xf32>
    %159 = vector.broadcast %19 : vector<1x64xf32> to vector<8x64xf32>
    %160 = arith.addf %158, %159 : vector<8x64xf32>
    %c6 = arith.constant 6 : index
    %c0_60 = arith.constant 0 : index
    %c0_61 = arith.constant 0 : index
    %161 = vector.load %arg5[%c6, %c0_60, %c0_61] : memref<26x1x64xf32, #tpu.memory_space<vmem>>, vector<1x1x64xf32>
    %162 = vector.shape_cast %161 : vector<1x1x64xf32> to vector<1x64xf32>
    %c7 = arith.constant 7 : index
    %c0_62 = arith.constant 0 : index
    %c0_63 = arith.constant 0 : index
    %163 = vector.load %arg5[%c7, %c0_62, %c0_63] : memref<26x1x64xf32, #tpu.memory_space<vmem>>, vector<1x1x64xf32>
    %164 = vector.shape_cast %163 : vector<1x1x64xf32> to vector<1x64xf32>
    %c8 = arith.constant 8 : index
    %c0_64 = arith.constant 0 : index
    %c0_65 = arith.constant 0 : index
    %165 = vector.load %arg5[%c8, %c0_64, %c0_65] : memref<26x1x64xf32, #tpu.memory_space<vmem>>, vector<1x1x64xf32>
    %166 = vector.shape_cast %165 : vector<1x1x64xf32> to vector<1x64xf32>
    %c9 = arith.constant 9 : index
    %c0_66 = arith.constant 0 : index
    %c0_67 = arith.constant 0 : index
    %167 = vector.load %arg5[%c9, %c0_66, %c0_67] : memref<26x1x64xf32, #tpu.memory_space<vmem>>, vector<1x1x64xf32>
    %168 = vector.shape_cast %167 : vector<1x1x64xf32> to vector<1x64xf32>
    %c10 = arith.constant 10 : index
    %c0_68 = arith.constant 0 : index
    %c0_69 = arith.constant 0 : index
    %169 = vector.load %arg5[%c10, %c0_68, %c0_69] : memref<26x1x64xf32, #tpu.memory_space<vmem>>, vector<1x1x64xf32>
    %170 = vector.shape_cast %169 : vector<1x1x64xf32> to vector<1x64xf32>
    %c11 = arith.constant 11 : index
    %c0_70 = arith.constant 0 : index
    %c0_71 = arith.constant 0 : index
    %171 = vector.load %arg5[%c11, %c0_70, %c0_71] : memref<26x1x64xf32, #tpu.memory_space<vmem>>, vector<1x1x64xf32>
    %172 = vector.shape_cast %171 : vector<1x1x64xf32> to vector<1x64xf32>
    %c1_72 = arith.constant 1 : index
    %c0_73 = arith.constant 0 : index
    %c0_74 = arith.constant 0 : index
    %173 = vector.load %arg2[%c1_72, %c0_73, %c0_74] : memref<4x64x512xbf16, #tpu.memory_space<vmem>>, vector<1x64x512xbf16>
    %174 = vector.shape_cast %173 : vector<1x64x512xbf16> to vector<64x512xbf16>
    %cst_75 = arith.constant dense<0.000000e+00> : vector<8xf32>
    %175 = vector.multi_reduction <add>, %160, %cst_75 [1] : vector<8x64xf32> to vector<8xf32>
    %176 = vector.shape_cast %175 : vector<8xf32> to vector<8x1xf32>
    %cst_76 = arith.constant 6.400000e+01 : f32
    %177 = vector.broadcast %cst_76 : f32 to vector<8x1xf32>
    %178 = arith.divf %176, %177 : vector<8x1xf32>
    %179 = vector.broadcast %178 : vector<8x1xf32> to vector<8x64xf32>
    %180 = arith.subf %160, %179 : vector<8x64xf32>
    %181 = arith.mulf %180, %180 : vector<8x64xf32>
    %cst_77 = arith.constant dense<0.000000e+00> : vector<8xf32>
    %182 = vector.multi_reduction <add>, %181, %cst_77 [1] : vector<8x64xf32> to vector<8xf32>
    %183 = vector.shape_cast %182 : vector<8xf32> to vector<8x1xf32>
    %cst_78 = arith.constant 6.400000e+01 : f32
    %184 = vector.broadcast %cst_78 : f32 to vector<8x1xf32>
    %185 = arith.divf %183, %184 : vector<8x1xf32>
    %cst_79 = arith.constant 9.99999974E-6 : f32
    %186 = vector.broadcast %cst_79 : f32 to vector<8x1xf32>
    %187 = arith.addf %185, %186 : vector<8x1xf32>
    %188 = math.rsqrt %187 : vector<8x1xf32>
    %189 = vector.broadcast %188 : vector<8x1xf32> to vector<8x64xf32>
    %190 = arith.mulf %180, %189 : vector<8x64xf32>
    %191 = vector.broadcast %162 : vector<1x64xf32> to vector<8x64xf32>
    %192 = arith.mulf %190, %191 : vector<8x64xf32>
    %193 = vector.broadcast %164 : vector<1x64xf32> to vector<8x64xf32>
    %194 = arith.addf %192, %193 : vector<8x64xf32>
    %195 = arith.truncf %194 : vector<8x64xf32> to vector<8x64xbf16>
    %196 = vector.extract_strided_slice %174 {offsets = [0, 0], sizes = [64, 192], strides = [1, 1]} : vector<64x512xbf16> to vector<64x192xbf16>
    %cst_80 = arith.constant dense<0.000000e+00> : vector<8x192xf32>
    %197 = tpu.matmul %195, %196, %cst_80 {dimension_numbers = #tpu.dot_dimension_numbers<[1], [0], [0], [1], [0, 0, 1, 1], [], []>} : vector<8x64xbf16>, vector<64x192xbf16>, vector<8x192xf32> -> vector<8x192xf32>
    %198 = arith.truncf %197 : vector<8x192xf32> to vector<8x192xbf16>
    %199 = vector.extract_strided_slice %198 {offsets = [0, 0], sizes = [8, 16], strides = [1, 1]} : vector<8x192xbf16> to vector<8x16xbf16>
    %200 = vector.extract_strided_slice %198 {offsets = [0, 64], sizes = [8, 16], strides = [1, 1]} : vector<8x192xbf16> to vector<8x16xbf16>
    %201 = vector.extract_strided_slice %198 {offsets = [0, 128], sizes = [8, 16], strides = [1, 1]} : vector<8x192xbf16> to vector<8x16xbf16>
    %cst_81 = arith.constant dense<0.000000e+00> : vector<8x8xf32>
    %202 = tpu.matmul %199, %200, %cst_81 {dimension_numbers = #tpu.dot_dimension_numbers<[1], [1], [0], [0], [0, 0, 1, 0], [], []>} : vector<8x16xbf16>, vector<8x16xbf16>, vector<8x8xf32> -> vector<8x8xf32>
    %cst_82 = arith.constant 1.250000e-01 : f32
    %203 = vector.broadcast %cst_82 : f32 to vector<8x8xf32>
    %204 = arith.mulf %202, %203 : vector<8x8xf32>
    %205 = arith.addf %204, %7 : vector<8x8xf32>
    %cst_83 = arith.constant dense<0xFF800000> : vector<8xf32>
    %206 = vector.multi_reduction <maximumf>, %205, %cst_83 [1] : vector<8x8xf32> to vector<8xf32>
    %207 = vector.shape_cast %206 : vector<8xf32> to vector<8x1xf32>
    %208 = vector.broadcast %207 : vector<8x1xf32> to vector<8x8xf32>
    %209 = arith.subf %205, %208 : vector<8x8xf32>
    %210 = math.exp %209 : vector<8x8xf32>
    %cst_84 = arith.constant dense<0.000000e+00> : vector<8xf32>
    %211 = vector.multi_reduction <add>, %210, %cst_84 [1] : vector<8x8xf32> to vector<8xf32>
    %212 = vector.shape_cast %211 : vector<8xf32> to vector<8x1xf32>
    %213 = vector.broadcast %212 : vector<8x1xf32> to vector<8x8xf32>
    %214 = arith.divf %210, %213 : vector<8x8xf32>
    %215 = arith.truncf %214 : vector<8x8xf32> to vector<8x8xbf16>
    %cst_85 = arith.constant dense<0.000000e+00> : vector<8x16xf32>
    %216 = tpu.matmul %215, %201, %cst_85 {dimension_numbers = #tpu.dot_dimension_numbers<[1], [0], [0], [1], [0, 0, 1, 1], [], []>} : vector<8x8xbf16>, vector<8x16xbf16>, vector<8x16xf32> -> vector<8x16xf32>
    %217 = vector.extract_strided_slice %198 {offsets = [0, 16], sizes = [8, 16], strides = [1, 1]} : vector<8x192xbf16> to vector<8x16xbf16>
    %218 = vector.extract_strided_slice %198 {offsets = [0, 80], sizes = [8, 16], strides = [1, 1]} : vector<8x192xbf16> to vector<8x16xbf16>
    %219 = vector.extract_strided_slice %198 {offsets = [0, 144], sizes = [8, 16], strides = [1, 1]} : vector<8x192xbf16> to vector<8x16xbf16>
    %cst_86 = arith.constant dense<0.000000e+00> : vector<8x8xf32>
    %220 = tpu.matmul %217, %218, %cst_86 {dimension_numbers = #tpu.dot_dimension_numbers<[1], [1], [0], [0], [0, 0, 1, 0], [], []>} : vector<8x16xbf16>, vector<8x16xbf16>, vector<8x8xf32> -> vector<8x8xf32>
    %cst_87 = arith.constant 1.250000e-01 : f32
    %221 = vector.broadcast %cst_87 : f32 to vector<8x8xf32>
    %222 = arith.mulf %220, %221 : vector<8x8xf32>
    %223 = arith.addf %222, %7 : vector<8x8xf32>
    %cst_88 = arith.constant dense<0xFF800000> : vector<8xf32>
    %224 = vector.multi_reduction <maximumf>, %223, %cst_88 [1] : vector<8x8xf32> to vector<8xf32>
    %225 = vector.shape_cast %224 : vector<8xf32> to vector<8x1xf32>
    %226 = vector.broadcast %225 : vector<8x1xf32> to vector<8x8xf32>
    %227 = arith.subf %223, %226 : vector<8x8xf32>
    %228 = math.exp %227 : vector<8x8xf32>
    %cst_89 = arith.constant dense<0.000000e+00> : vector<8xf32>
    %229 = vector.multi_reduction <add>, %228, %cst_89 [1] : vector<8x8xf32> to vector<8xf32>
    %230 = vector.shape_cast %229 : vector<8xf32> to vector<8x1xf32>
    %231 = vector.broadcast %230 : vector<8x1xf32> to vector<8x8xf32>
    %232 = arith.divf %228, %231 : vector<8x8xf32>
    %233 = arith.truncf %232 : vector<8x8xf32> to vector<8x8xbf16>
    %cst_90 = arith.constant dense<0.000000e+00> : vector<8x16xf32>
    %234 = tpu.matmul %233, %219, %cst_90 {dimension_numbers = #tpu.dot_dimension_numbers<[1], [0], [0], [1], [0, 0, 1, 1], [], []>} : vector<8x8xbf16>, vector<8x16xbf16>, vector<8x16xf32> -> vector<8x16xf32>
    %235 = vector.extract_strided_slice %198 {offsets = [0, 32], sizes = [8, 16], strides = [1, 1]} : vector<8x192xbf16> to vector<8x16xbf16>
    %236 = vector.extract_strided_slice %198 {offsets = [0, 96], sizes = [8, 16], strides = [1, 1]} : vector<8x192xbf16> to vector<8x16xbf16>
    %237 = vector.extract_strided_slice %198 {offsets = [0, 160], sizes = [8, 16], strides = [1, 1]} : vector<8x192xbf16> to vector<8x16xbf16>
    %cst_91 = arith.constant dense<0.000000e+00> : vector<8x8xf32>
    %238 = tpu.matmul %235, %236, %cst_91 {dimension_numbers = #tpu.dot_dimension_numbers<[1], [1], [0], [0], [0, 0, 1, 0], [], []>} : vector<8x16xbf16>, vector<8x16xbf16>, vector<8x8xf32> -> vector<8x8xf32>
    %cst_92 = arith.constant 1.250000e-01 : f32
    %239 = vector.broadcast %cst_92 : f32 to vector<8x8xf32>
    %240 = arith.mulf %238, %239 : vector<8x8xf32>
    %241 = arith.addf %240, %7 : vector<8x8xf32>
    %cst_93 = arith.constant dense<0xFF800000> : vector<8xf32>
    %242 = vector.multi_reduction <maximumf>, %241, %cst_93 [1] : vector<8x8xf32> to vector<8xf32>
    %243 = vector.shape_cast %242 : vector<8xf32> to vector<8x1xf32>
    %244 = vector.broadcast %243 : vector<8x1xf32> to vector<8x8xf32>
    %245 = arith.subf %241, %244 : vector<8x8xf32>
    %246 = math.exp %245 : vector<8x8xf32>
    %cst_94 = arith.constant dense<0.000000e+00> : vector<8xf32>
    %247 = vector.multi_reduction <add>, %246, %cst_94 [1] : vector<8x8xf32> to vector<8xf32>
    %248 = vector.shape_cast %247 : vector<8xf32> to vector<8x1xf32>
    %249 = vector.broadcast %248 : vector<8x1xf32> to vector<8x8xf32>
    %250 = arith.divf %246, %249 : vector<8x8xf32>
    %251 = arith.truncf %250 : vector<8x8xf32> to vector<8x8xbf16>
    %cst_95 = arith.constant dense<0.000000e+00> : vector<8x16xf32>
    %252 = tpu.matmul %251, %237, %cst_95 {dimension_numbers = #tpu.dot_dimension_numbers<[1], [0], [0], [1], [0, 0, 1, 1], [], []>} : vector<8x8xbf16>, vector<8x16xbf16>, vector<8x16xf32> -> vector<8x16xf32>
    %253 = vector.extract_strided_slice %198 {offsets = [0, 48], sizes = [8, 16], strides = [1, 1]} : vector<8x192xbf16> to vector<8x16xbf16>
    %254 = vector.extract_strided_slice %198 {offsets = [0, 112], sizes = [8, 16], strides = [1, 1]} : vector<8x192xbf16> to vector<8x16xbf16>
    %255 = vector.extract_strided_slice %198 {offsets = [0, 176], sizes = [8, 16], strides = [1, 1]} : vector<8x192xbf16> to vector<8x16xbf16>
    %cst_96 = arith.constant dense<0.000000e+00> : vector<8x8xf32>
    %256 = tpu.matmul %253, %254, %cst_96 {dimension_numbers = #tpu.dot_dimension_numbers<[1], [1], [0], [0], [0, 0, 1, 0], [], []>} : vector<8x16xbf16>, vector<8x16xbf16>, vector<8x8xf32> -> vector<8x8xf32>
    %cst_97 = arith.constant 1.250000e-01 : f32
    %257 = vector.broadcast %cst_97 : f32 to vector<8x8xf32>
    %258 = arith.mulf %256, %257 : vector<8x8xf32>
    %259 = arith.addf %258, %7 : vector<8x8xf32>
    %cst_98 = arith.constant dense<0xFF800000> : vector<8xf32>
    %260 = vector.multi_reduction <maximumf>, %259, %cst_98 [1] : vector<8x8xf32> to vector<8xf32>
    %261 = vector.shape_cast %260 : vector<8xf32> to vector<8x1xf32>
    %262 = vector.broadcast %261 : vector<8x1xf32> to vector<8x8xf32>
    %263 = arith.subf %259, %262 : vector<8x8xf32>
    %264 = math.exp %263 : vector<8x8xf32>
    %cst_99 = arith.constant dense<0.000000e+00> : vector<8xf32>
    %265 = vector.multi_reduction <add>, %264, %cst_99 [1] : vector<8x8xf32> to vector<8xf32>
    %266 = vector.shape_cast %265 : vector<8xf32> to vector<8x1xf32>
    %267 = vector.broadcast %266 : vector<8x1xf32> to vector<8x8xf32>
    %268 = arith.divf %264, %267 : vector<8x8xf32>
    %269 = arith.truncf %268 : vector<8x8xf32> to vector<8x8xbf16>
    %cst_100 = arith.constant dense<0.000000e+00> : vector<8x16xf32>
    %270 = tpu.matmul %269, %255, %cst_100 {dimension_numbers = #tpu.dot_dimension_numbers<[1], [0], [0], [1], [0, 0, 1, 1], [], []>} : vector<8x8xbf16>, vector<8x16xbf16>, vector<8x16xf32> -> vector<8x16xf32>
    %271 = tpu.concatenate %216, %234, %252, %270 in 1 : vector<8x16xf32>, vector<8x16xf32>, vector<8x16xf32>, vector<8x16xf32> -> vector<8x64xf32>
    %272 = arith.truncf %271 : vector<8x64xf32> to vector<8x64xbf16>
    %273 = vector.extract_strided_slice %174 {offsets = [0, 192], sizes = [64, 64], strides = [1, 1]} : vector<64x512xbf16> to vector<64x64xbf16>
    %cst_101 = arith.constant dense<0.000000e+00> : vector<8x64xf32>
    %274 = tpu.matmul %272, %273, %cst_101 {dimension_numbers = #tpu.dot_dimension_numbers<[1], [0], [0], [1], [0, 0, 1, 1], [], []>} : vector<8x64xbf16>, vector<64x64xbf16>, vector<8x64xf32> -> vector<8x64xf32>
    %275 = vector.broadcast %170 : vector<1x64xf32> to vector<8x64xf32>
    %276 = arith.addf %274, %275 : vector<8x64xf32>
    %277 = arith.addf %160, %276 : vector<8x64xf32>
    %cst_102 = arith.constant dense<0.000000e+00> : vector<8xf32>
    %278 = vector.multi_reduction <add>, %277, %cst_102 [1] : vector<8x64xf32> to vector<8xf32>
    %279 = vector.shape_cast %278 : vector<8xf32> to vector<8x1xf32>
    %cst_103 = arith.constant 6.400000e+01 : f32
    %280 = vector.broadcast %cst_103 : f32 to vector<8x1xf32>
    %281 = arith.divf %279, %280 : vector<8x1xf32>
    %282 = vector.broadcast %281 : vector<8x1xf32> to vector<8x64xf32>
    %283 = arith.subf %277, %282 : vector<8x64xf32>
    %284 = arith.mulf %283, %283 : vector<8x64xf32>
    %cst_104 = arith.constant dense<0.000000e+00> : vector<8xf32>
    %285 = vector.multi_reduction <add>, %284, %cst_104 [1] : vector<8x64xf32> to vector<8xf32>
    %286 = vector.shape_cast %285 : vector<8xf32> to vector<8x1xf32>
    %cst_105 = arith.constant 6.400000e+01 : f32
    %287 = vector.broadcast %cst_105 : f32 to vector<8x1xf32>
    %288 = arith.divf %286, %287 : vector<8x1xf32>
    %cst_106 = arith.constant 9.99999974E-6 : f32
    %289 = vector.broadcast %cst_106 : f32 to vector<8x1xf32>
    %290 = arith.addf %288, %289 : vector<8x1xf32>
    %291 = math.rsqrt %290 : vector<8x1xf32>
    %292 = vector.broadcast %291 : vector<8x1xf32> to vector<8x64xf32>
    %293 = arith.mulf %283, %292 : vector<8x64xf32>
    %294 = vector.broadcast %166 : vector<1x64xf32> to vector<8x64xf32>
    %295 = arith.mulf %293, %294 : vector<8x64xf32>
    %296 = vector.broadcast %168 : vector<1x64xf32> to vector<8x64xf32>
    %297 = arith.addf %295, %296 : vector<8x64xf32>
    %298 = arith.truncf %297 : vector<8x64xf32> to vector<8x64xbf16>
    %299 = vector.extract_strided_slice %174 {offsets = [0, 256], sizes = [64, 256], strides = [1, 1]} : vector<64x512xbf16> to vector<64x256xbf16>
    %cst_107 = arith.constant dense<0.000000e+00> : vector<8x256xf32>
    %300 = tpu.matmul %298, %299, %cst_107 {dimension_numbers = #tpu.dot_dimension_numbers<[1], [0], [0], [1], [0, 0, 1, 1], [], []>} : vector<8x64xbf16>, vector<64x256xbf16>, vector<8x256xf32> -> vector<8x256xf32>
    %c1_108 = arith.constant 1 : index
    %c0_109 = arith.constant 0 : index
    %c0_110 = arith.constant 0 : index
    %301 = vector.load %arg6[%c1_108, %c0_109, %c0_110] : memref<4x1x256xf32, #tpu.memory_space<vmem>>, vector<1x1x256xf32>
    %302 = vector.shape_cast %301 : vector<1x1x256xf32> to vector<1x256xf32>
    %303 = vector.broadcast %302 : vector<1x256xf32> to vector<8x256xf32>
    %304 = arith.addf %300, %303 : vector<8x256xf32>
    %cst_111 = arith.constant 0.000000e+00 : f32
    %305 = vector.broadcast %cst_111 : f32 to vector<8x256xf32>
    %306 = arith.maximumf %304, %305 : vector<8x256xf32>
    %307 = arith.truncf %306 : vector<8x256xf32> to vector<8x256xbf16>
    %c1_112 = arith.constant 1 : index
    %c0_113 = arith.constant 0 : index
    %c0_114 = arith.constant 0 : index
    %308 = vector.load %arg3[%c1_112, %c0_113, %c0_114] : memref<4x256x64xbf16, #tpu.memory_space<vmem>>, vector<1x256x64xbf16>
    %309 = vector.shape_cast %308 : vector<1x256x64xbf16> to vector<256x64xbf16>
    %cst_115 = arith.constant dense<0.000000e+00> : vector<8x64xf32>
    %310 = tpu.matmul %307, %309, %cst_115 {dimension_numbers = #tpu.dot_dimension_numbers<[1], [0], [0], [1], [0, 0, 1, 1], [], []>} : vector<8x256xbf16>, vector<256x64xbf16>, vector<8x64xf32> -> vector<8x64xf32>
    %311 = arith.addf %277, %310 : vector<8x64xf32>
    %312 = vector.broadcast %172 : vector<1x64xf32> to vector<8x64xf32>
    %313 = arith.addf %311, %312 : vector<8x64xf32>
    %c12 = arith.constant 12 : index
    %c0_116 = arith.constant 0 : index
    %c0_117 = arith.constant 0 : index
    %314 = vector.load %arg5[%c12, %c0_116, %c0_117] : memref<26x1x64xf32, #tpu.memory_space<vmem>>, vector<1x1x64xf32>
    %315 = vector.shape_cast %314 : vector<1x1x64xf32> to vector<1x64xf32>
    %c13 = arith.constant 13 : index
    %c0_118 = arith.constant 0 : index
    %c0_119 = arith.constant 0 : index
    %316 = vector.load %arg5[%c13, %c0_118, %c0_119] : memref<26x1x64xf32, #tpu.memory_space<vmem>>, vector<1x1x64xf32>
    %317 = vector.shape_cast %316 : vector<1x1x64xf32> to vector<1x64xf32>
    %c14 = arith.constant 14 : index
    %c0_120 = arith.constant 0 : index
    %c0_121 = arith.constant 0 : index
    %318 = vector.load %arg5[%c14, %c0_120, %c0_121] : memref<26x1x64xf32, #tpu.memory_space<vmem>>, vector<1x1x64xf32>
    %319 = vector.shape_cast %318 : vector<1x1x64xf32> to vector<1x64xf32>
    %c15 = arith.constant 15 : index
    %c0_122 = arith.constant 0 : index
    %c0_123 = arith.constant 0 : index
    %320 = vector.load %arg5[%c15, %c0_122, %c0_123] : memref<26x1x64xf32, #tpu.memory_space<vmem>>, vector<1x1x64xf32>
    %321 = vector.shape_cast %320 : vector<1x1x64xf32> to vector<1x64xf32>
    %c16 = arith.constant 16 : index
    %c0_124 = arith.constant 0 : index
    %c0_125 = arith.constant 0 : index
    %322 = vector.load %arg5[%c16, %c0_124, %c0_125] : memref<26x1x64xf32, #tpu.memory_space<vmem>>, vector<1x1x64xf32>
    %323 = vector.shape_cast %322 : vector<1x1x64xf32> to vector<1x64xf32>
    %c17 = arith.constant 17 : index
    %c0_126 = arith.constant 0 : index
    %c0_127 = arith.constant 0 : index
    %324 = vector.load %arg5[%c17, %c0_126, %c0_127] : memref<26x1x64xf32, #tpu.memory_space<vmem>>, vector<1x1x64xf32>
    %325 = vector.shape_cast %324 : vector<1x1x64xf32> to vector<1x64xf32>
    %c2_128 = arith.constant 2 : index
    %c0_129 = arith.constant 0 : index
    %c0_130 = arith.constant 0 : index
    %326 = vector.load %arg2[%c2_128, %c0_129, %c0_130] : memref<4x64x512xbf16, #tpu.memory_space<vmem>>, vector<1x64x512xbf16>
    %327 = vector.shape_cast %326 : vector<1x64x512xbf16> to vector<64x512xbf16>
    %cst_131 = arith.constant dense<0.000000e+00> : vector<8xf32>
    %328 = vector.multi_reduction <add>, %313, %cst_131 [1] : vector<8x64xf32> to vector<8xf32>
    %329 = vector.shape_cast %328 : vector<8xf32> to vector<8x1xf32>
    %cst_132 = arith.constant 6.400000e+01 : f32
    %330 = vector.broadcast %cst_132 : f32 to vector<8x1xf32>
    %331 = arith.divf %329, %330 : vector<8x1xf32>
    %332 = vector.broadcast %331 : vector<8x1xf32> to vector<8x64xf32>
    %333 = arith.subf %313, %332 : vector<8x64xf32>
    %334 = arith.mulf %333, %333 : vector<8x64xf32>
    %cst_133 = arith.constant dense<0.000000e+00> : vector<8xf32>
    %335 = vector.multi_reduction <add>, %334, %cst_133 [1] : vector<8x64xf32> to vector<8xf32>
    %336 = vector.shape_cast %335 : vector<8xf32> to vector<8x1xf32>
    %cst_134 = arith.constant 6.400000e+01 : f32
    %337 = vector.broadcast %cst_134 : f32 to vector<8x1xf32>
    %338 = arith.divf %336, %337 : vector<8x1xf32>
    %cst_135 = arith.constant 9.99999974E-6 : f32
    %339 = vector.broadcast %cst_135 : f32 to vector<8x1xf32>
    %340 = arith.addf %338, %339 : vector<8x1xf32>
    %341 = math.rsqrt %340 : vector<8x1xf32>
    %342 = vector.broadcast %341 : vector<8x1xf32> to vector<8x64xf32>
    %343 = arith.mulf %333, %342 : vector<8x64xf32>
    %344 = vector.broadcast %315 : vector<1x64xf32> to vector<8x64xf32>
    %345 = arith.mulf %343, %344 : vector<8x64xf32>
    %346 = vector.broadcast %317 : vector<1x64xf32> to vector<8x64xf32>
    %347 = arith.addf %345, %346 : vector<8x64xf32>
    %348 = arith.truncf %347 : vector<8x64xf32> to vector<8x64xbf16>
    %349 = vector.extract_strided_slice %327 {offsets = [0, 0], sizes = [64, 192], strides = [1, 1]} : vector<64x512xbf16> to vector<64x192xbf16>
    %cst_136 = arith.constant dense<0.000000e+00> : vector<8x192xf32>
    %350 = tpu.matmul %348, %349, %cst_136 {dimension_numbers = #tpu.dot_dimension_numbers<[1], [0], [0], [1], [0, 0, 1, 1], [], []>} : vector<8x64xbf16>, vector<64x192xbf16>, vector<8x192xf32> -> vector<8x192xf32>
    %351 = arith.truncf %350 : vector<8x192xf32> to vector<8x192xbf16>
    %352 = vector.extract_strided_slice %351 {offsets = [0, 0], sizes = [8, 16], strides = [1, 1]} : vector<8x192xbf16> to vector<8x16xbf16>
    %353 = vector.extract_strided_slice %351 {offsets = [0, 64], sizes = [8, 16], strides = [1, 1]} : vector<8x192xbf16> to vector<8x16xbf16>
    %354 = vector.extract_strided_slice %351 {offsets = [0, 128], sizes = [8, 16], strides = [1, 1]} : vector<8x192xbf16> to vector<8x16xbf16>
    %cst_137 = arith.constant dense<0.000000e+00> : vector<8x8xf32>
    %355 = tpu.matmul %352, %353, %cst_137 {dimension_numbers = #tpu.dot_dimension_numbers<[1], [1], [0], [0], [0, 0, 1, 0], [], []>} : vector<8x16xbf16>, vector<8x16xbf16>, vector<8x8xf32> -> vector<8x8xf32>
    %cst_138 = arith.constant 1.250000e-01 : f32
    %356 = vector.broadcast %cst_138 : f32 to vector<8x8xf32>
    %357 = arith.mulf %355, %356 : vector<8x8xf32>
    %358 = arith.addf %357, %7 : vector<8x8xf32>
    %cst_139 = arith.constant dense<0xFF800000> : vector<8xf32>
    %359 = vector.multi_reduction <maximumf>, %358, %cst_139 [1] : vector<8x8xf32> to vector<8xf32>
    %360 = vector.shape_cast %359 : vector<8xf32> to vector<8x1xf32>
    %361 = vector.broadcast %360 : vector<8x1xf32> to vector<8x8xf32>
    %362 = arith.subf %358, %361 : vector<8x8xf32>
    %363 = math.exp %362 : vector<8x8xf32>
    %cst_140 = arith.constant dense<0.000000e+00> : vector<8xf32>
    %364 = vector.multi_reduction <add>, %363, %cst_140 [1] : vector<8x8xf32> to vector<8xf32>
    %365 = vector.shape_cast %364 : vector<8xf32> to vector<8x1xf32>
    %366 = vector.broadcast %365 : vector<8x1xf32> to vector<8x8xf32>
    %367 = arith.divf %363, %366 : vector<8x8xf32>
    %368 = arith.truncf %367 : vector<8x8xf32> to vector<8x8xbf16>
    %cst_141 = arith.constant dense<0.000000e+00> : vector<8x16xf32>
    %369 = tpu.matmul %368, %354, %cst_141 {dimension_numbers = #tpu.dot_dimension_numbers<[1], [0], [0], [1], [0, 0, 1, 1], [], []>} : vector<8x8xbf16>, vector<8x16xbf16>, vector<8x16xf32> -> vector<8x16xf32>
    %370 = vector.extract_strided_slice %351 {offsets = [0, 16], sizes = [8, 16], strides = [1, 1]} : vector<8x192xbf16> to vector<8x16xbf16>
    %371 = vector.extract_strided_slice %351 {offsets = [0, 80], sizes = [8, 16], strides = [1, 1]} : vector<8x192xbf16> to vector<8x16xbf16>
    %372 = vector.extract_strided_slice %351 {offsets = [0, 144], sizes = [8, 16], strides = [1, 1]} : vector<8x192xbf16> to vector<8x16xbf16>
    %cst_142 = arith.constant dense<0.000000e+00> : vector<8x8xf32>
    %373 = tpu.matmul %370, %371, %cst_142 {dimension_numbers = #tpu.dot_dimension_numbers<[1], [1], [0], [0], [0, 0, 1, 0], [], []>} : vector<8x16xbf16>, vector<8x16xbf16>, vector<8x8xf32> -> vector<8x8xf32>
    %cst_143 = arith.constant 1.250000e-01 : f32
    %374 = vector.broadcast %cst_143 : f32 to vector<8x8xf32>
    %375 = arith.mulf %373, %374 : vector<8x8xf32>
    %376 = arith.addf %375, %7 : vector<8x8xf32>
    %cst_144 = arith.constant dense<0xFF800000> : vector<8xf32>
    %377 = vector.multi_reduction <maximumf>, %376, %cst_144 [1] : vector<8x8xf32> to vector<8xf32>
    %378 = vector.shape_cast %377 : vector<8xf32> to vector<8x1xf32>
    %379 = vector.broadcast %378 : vector<8x1xf32> to vector<8x8xf32>
    %380 = arith.subf %376, %379 : vector<8x8xf32>
    %381 = math.exp %380 : vector<8x8xf32>
    %cst_145 = arith.constant dense<0.000000e+00> : vector<8xf32>
    %382 = vector.multi_reduction <add>, %381, %cst_145 [1] : vector<8x8xf32> to vector<8xf32>
    %383 = vector.shape_cast %382 : vector<8xf32> to vector<8x1xf32>
    %384 = vector.broadcast %383 : vector<8x1xf32> to vector<8x8xf32>
    %385 = arith.divf %381, %384 : vector<8x8xf32>
    %386 = arith.truncf %385 : vector<8x8xf32> to vector<8x8xbf16>
    %cst_146 = arith.constant dense<0.000000e+00> : vector<8x16xf32>
    %387 = tpu.matmul %386, %372, %cst_146 {dimension_numbers = #tpu.dot_dimension_numbers<[1], [0], [0], [1], [0, 0, 1, 1], [], []>} : vector<8x8xbf16>, vector<8x16xbf16>, vector<8x16xf32> -> vector<8x16xf32>
    %388 = vector.extract_strided_slice %351 {offsets = [0, 32], sizes = [8, 16], strides = [1, 1]} : vector<8x192xbf16> to vector<8x16xbf16>
    %389 = vector.extract_strided_slice %351 {offsets = [0, 96], sizes = [8, 16], strides = [1, 1]} : vector<8x192xbf16> to vector<8x16xbf16>
    %390 = vector.extract_strided_slice %351 {offsets = [0, 160], sizes = [8, 16], strides = [1, 1]} : vector<8x192xbf16> to vector<8x16xbf16>
    %cst_147 = arith.constant dense<0.000000e+00> : vector<8x8xf32>
    %391 = tpu.matmul %388, %389, %cst_147 {dimension_numbers = #tpu.dot_dimension_numbers<[1], [1], [0], [0], [0, 0, 1, 0], [], []>} : vector<8x16xbf16>, vector<8x16xbf16>, vector<8x8xf32> -> vector<8x8xf32>
    %cst_148 = arith.constant 1.250000e-01 : f32
    %392 = vector.broadcast %cst_148 : f32 to vector<8x8xf32>
    %393 = arith.mulf %391, %392 : vector<8x8xf32>
    %394 = arith.addf %393, %7 : vector<8x8xf32>
    %cst_149 = arith.constant dense<0xFF800000> : vector<8xf32>
    %395 = vector.multi_reduction <maximumf>, %394, %cst_149 [1] : vector<8x8xf32> to vector<8xf32>
    %396 = vector.shape_cast %395 : vector<8xf32> to vector<8x1xf32>
    %397 = vector.broadcast %396 : vector<8x1xf32> to vector<8x8xf32>
    %398 = arith.subf %394, %397 : vector<8x8xf32>
    %399 = math.exp %398 : vector<8x8xf32>
    %cst_150 = arith.constant dense<0.000000e+00> : vector<8xf32>
    %400 = vector.multi_reduction <add>, %399, %cst_150 [1] : vector<8x8xf32> to vector<8xf32>
    %401 = vector.shape_cast %400 : vector<8xf32> to vector<8x1xf32>
    %402 = vector.broadcast %401 : vector<8x1xf32> to vector<8x8xf32>
    %403 = arith.divf %399, %402 : vector<8x8xf32>
    %404 = arith.truncf %403 : vector<8x8xf32> to vector<8x8xbf16>
    %cst_151 = arith.constant dense<0.000000e+00> : vector<8x16xf32>
    %405 = tpu.matmul %404, %390, %cst_151 {dimension_numbers = #tpu.dot_dimension_numbers<[1], [0], [0], [1], [0, 0, 1, 1], [], []>} : vector<8x8xbf16>, vector<8x16xbf16>, vector<8x16xf32> -> vector<8x16xf32>
    %406 = vector.extract_strided_slice %351 {offsets = [0, 48], sizes = [8, 16], strides = [1, 1]} : vector<8x192xbf16> to vector<8x16xbf16>
    %407 = vector.extract_strided_slice %351 {offsets = [0, 112], sizes = [8, 16], strides = [1, 1]} : vector<8x192xbf16> to vector<8x16xbf16>
    %408 = vector.extract_strided_slice %351 {offsets = [0, 176], sizes = [8, 16], strides = [1, 1]} : vector<8x192xbf16> to vector<8x16xbf16>
    %cst_152 = arith.constant dense<0.000000e+00> : vector<8x8xf32>
    %409 = tpu.matmul %406, %407, %cst_152 {dimension_numbers = #tpu.dot_dimension_numbers<[1], [1], [0], [0], [0, 0, 1, 0], [], []>} : vector<8x16xbf16>, vector<8x16xbf16>, vector<8x8xf32> -> vector<8x8xf32>
    %cst_153 = arith.constant 1.250000e-01 : f32
    %410 = vector.broadcast %cst_153 : f32 to vector<8x8xf32>
    %411 = arith.mulf %409, %410 : vector<8x8xf32>
    %412 = arith.addf %411, %7 : vector<8x8xf32>
    %cst_154 = arith.constant dense<0xFF800000> : vector<8xf32>
    %413 = vector.multi_reduction <maximumf>, %412, %cst_154 [1] : vector<8x8xf32> to vector<8xf32>
    %414 = vector.shape_cast %413 : vector<8xf32> to vector<8x1xf32>
    %415 = vector.broadcast %414 : vector<8x1xf32> to vector<8x8xf32>
    %416 = arith.subf %412, %415 : vector<8x8xf32>
    %417 = math.exp %416 : vector<8x8xf32>
    %cst_155 = arith.constant dense<0.000000e+00> : vector<8xf32>
    %418 = vector.multi_reduction <add>, %417, %cst_155 [1] : vector<8x8xf32> to vector<8xf32>
    %419 = vector.shape_cast %418 : vector<8xf32> to vector<8x1xf32>
    %420 = vector.broadcast %419 : vector<8x1xf32> to vector<8x8xf32>
    %421 = arith.divf %417, %420 : vector<8x8xf32>
    %422 = arith.truncf %421 : vector<8x8xf32> to vector<8x8xbf16>
    %cst_156 = arith.constant dense<0.000000e+00> : vector<8x16xf32>
    %423 = tpu.matmul %422, %408, %cst_156 {dimension_numbers = #tpu.dot_dimension_numbers<[1], [0], [0], [1], [0, 0, 1, 1], [], []>} : vector<8x8xbf16>, vector<8x16xbf16>, vector<8x16xf32> -> vector<8x16xf32>
    %424 = tpu.concatenate %369, %387, %405, %423 in 1 : vector<8x16xf32>, vector<8x16xf32>, vector<8x16xf32>, vector<8x16xf32> -> vector<8x64xf32>
    %425 = arith.truncf %424 : vector<8x64xf32> to vector<8x64xbf16>
    %426 = vector.extract_strided_slice %327 {offsets = [0, 192], sizes = [64, 64], strides = [1, 1]} : vector<64x512xbf16> to vector<64x64xbf16>
    %cst_157 = arith.constant dense<0.000000e+00> : vector<8x64xf32>
    %427 = tpu.matmul %425, %426, %cst_157 {dimension_numbers = #tpu.dot_dimension_numbers<[1], [0], [0], [1], [0, 0, 1, 1], [], []>} : vector<8x64xbf16>, vector<64x64xbf16>, vector<8x64xf32> -> vector<8x64xf32>
    %428 = vector.broadcast %323 : vector<1x64xf32> to vector<8x64xf32>
    %429 = arith.addf %427, %428 : vector<8x64xf32>
    %430 = arith.addf %313, %429 : vector<8x64xf32>
    %cst_158 = arith.constant dense<0.000000e+00> : vector<8xf32>
    %431 = vector.multi_reduction <add>, %430, %cst_158 [1] : vector<8x64xf32> to vector<8xf32>
    %432 = vector.shape_cast %431 : vector<8xf32> to vector<8x1xf32>
    %cst_159 = arith.constant 6.400000e+01 : f32
    %433 = vector.broadcast %cst_159 : f32 to vector<8x1xf32>
    %434 = arith.divf %432, %433 : vector<8x1xf32>
    %435 = vector.broadcast %434 : vector<8x1xf32> to vector<8x64xf32>
    %436 = arith.subf %430, %435 : vector<8x64xf32>
    %437 = arith.mulf %436, %436 : vector<8x64xf32>
    %cst_160 = arith.constant dense<0.000000e+00> : vector<8xf32>
    %438 = vector.multi_reduction <add>, %437, %cst_160 [1] : vector<8x64xf32> to vector<8xf32>
    %439 = vector.shape_cast %438 : vector<8xf32> to vector<8x1xf32>
    %cst_161 = arith.constant 6.400000e+01 : f32
    %440 = vector.broadcast %cst_161 : f32 to vector<8x1xf32>
    %441 = arith.divf %439, %440 : vector<8x1xf32>
    %cst_162 = arith.constant 9.99999974E-6 : f32
    %442 = vector.broadcast %cst_162 : f32 to vector<8x1xf32>
    %443 = arith.addf %441, %442 : vector<8x1xf32>
    %444 = math.rsqrt %443 : vector<8x1xf32>
    %445 = vector.broadcast %444 : vector<8x1xf32> to vector<8x64xf32>
    %446 = arith.mulf %436, %445 : vector<8x64xf32>
    %447 = vector.broadcast %319 : vector<1x64xf32> to vector<8x64xf32>
    %448 = arith.mulf %446, %447 : vector<8x64xf32>
    %449 = vector.broadcast %321 : vector<1x64xf32> to vector<8x64xf32>
    %450 = arith.addf %448, %449 : vector<8x64xf32>
    %451 = arith.truncf %450 : vector<8x64xf32> to vector<8x64xbf16>
    %452 = vector.extract_strided_slice %327 {offsets = [0, 256], sizes = [64, 256], strides = [1, 1]} : vector<64x512xbf16> to vector<64x256xbf16>
    %cst_163 = arith.constant dense<0.000000e+00> : vector<8x256xf32>
    %453 = tpu.matmul %451, %452, %cst_163 {dimension_numbers = #tpu.dot_dimension_numbers<[1], [0], [0], [1], [0, 0, 1, 1], [], []>} : vector<8x64xbf16>, vector<64x256xbf16>, vector<8x256xf32> -> vector<8x256xf32>
    %c2_164 = arith.constant 2 : index
    %c0_165 = arith.constant 0 : index
    %c0_166 = arith.constant 0 : index
    %454 = vector.load %arg6[%c2_164, %c0_165, %c0_166] : memref<4x1x256xf32, #tpu.memory_space<vmem>>, vector<1x1x256xf32>
    %455 = vector.shape_cast %454 : vector<1x1x256xf32> to vector<1x256xf32>
    %456 = vector.broadcast %455 : vector<1x256xf32> to vector<8x256xf32>
    %457 = arith.addf %453, %456 : vector<8x256xf32>
    %cst_167 = arith.constant 0.000000e+00 : f32
    %458 = vector.broadcast %cst_167 : f32 to vector<8x256xf32>
    %459 = arith.maximumf %457, %458 : vector<8x256xf32>
    %460 = arith.truncf %459 : vector<8x256xf32> to vector<8x256xbf16>
    %c2_168 = arith.constant 2 : index
    %c0_169 = arith.constant 0 : index
    %c0_170 = arith.constant 0 : index
    %461 = vector.load %arg3[%c2_168, %c0_169, %c0_170] : memref<4x256x64xbf16, #tpu.memory_space<vmem>>, vector<1x256x64xbf16>
    %462 = vector.shape_cast %461 : vector<1x256x64xbf16> to vector<256x64xbf16>
    %cst_171 = arith.constant dense<0.000000e+00> : vector<8x64xf32>
    %463 = tpu.matmul %460, %462, %cst_171 {dimension_numbers = #tpu.dot_dimension_numbers<[1], [0], [0], [1], [0, 0, 1, 1], [], []>} : vector<8x256xbf16>, vector<256x64xbf16>, vector<8x64xf32> -> vector<8x64xf32>
    %464 = arith.addf %430, %463 : vector<8x64xf32>
    %465 = vector.broadcast %325 : vector<1x64xf32> to vector<8x64xf32>
    %466 = arith.addf %464, %465 : vector<8x64xf32>
    %c18 = arith.constant 18 : index
    %c0_172 = arith.constant 0 : index
    %c0_173 = arith.constant 0 : index
    %467 = vector.load %arg5[%c18, %c0_172, %c0_173] : memref<26x1x64xf32, #tpu.memory_space<vmem>>, vector<1x1x64xf32>
    %468 = vector.shape_cast %467 : vector<1x1x64xf32> to vector<1x64xf32>
    %c19 = arith.constant 19 : index
    %c0_174 = arith.constant 0 : index
    %c0_175 = arith.constant 0 : index
    %469 = vector.load %arg5[%c19, %c0_174, %c0_175] : memref<26x1x64xf32, #tpu.memory_space<vmem>>, vector<1x1x64xf32>
    %470 = vector.shape_cast %469 : vector<1x1x64xf32> to vector<1x64xf32>
    %c20 = arith.constant 20 : index
    %c0_176 = arith.constant 0 : index
    %c0_177 = arith.constant 0 : index
    %471 = vector.load %arg5[%c20, %c0_176, %c0_177] : memref<26x1x64xf32, #tpu.memory_space<vmem>>, vector<1x1x64xf32>
    %472 = vector.shape_cast %471 : vector<1x1x64xf32> to vector<1x64xf32>
    %c21 = arith.constant 21 : index
    %c0_178 = arith.constant 0 : index
    %c0_179 = arith.constant 0 : index
    %473 = vector.load %arg5[%c21, %c0_178, %c0_179] : memref<26x1x64xf32, #tpu.memory_space<vmem>>, vector<1x1x64xf32>
    %474 = vector.shape_cast %473 : vector<1x1x64xf32> to vector<1x64xf32>
    %c22 = arith.constant 22 : index
    %c0_180 = arith.constant 0 : index
    %c0_181 = arith.constant 0 : index
    %475 = vector.load %arg5[%c22, %c0_180, %c0_181] : memref<26x1x64xf32, #tpu.memory_space<vmem>>, vector<1x1x64xf32>
    %476 = vector.shape_cast %475 : vector<1x1x64xf32> to vector<1x64xf32>
    %c23 = arith.constant 23 : index
    %c0_182 = arith.constant 0 : index
    %c0_183 = arith.constant 0 : index
    %477 = vector.load %arg5[%c23, %c0_182, %c0_183] : memref<26x1x64xf32, #tpu.memory_space<vmem>>, vector<1x1x64xf32>
    %478 = vector.shape_cast %477 : vector<1x1x64xf32> to vector<1x64xf32>
    %c3_184 = arith.constant 3 : index
    %c0_185 = arith.constant 0 : index
    %c0_186 = arith.constant 0 : index
    %479 = vector.load %arg2[%c3_184, %c0_185, %c0_186] : memref<4x64x512xbf16, #tpu.memory_space<vmem>>, vector<1x64x512xbf16>
    %480 = vector.shape_cast %479 : vector<1x64x512xbf16> to vector<64x512xbf16>
    %cst_187 = arith.constant dense<0.000000e+00> : vector<8xf32>
    %481 = vector.multi_reduction <add>, %466, %cst_187 [1] : vector<8x64xf32> to vector<8xf32>
    %482 = vector.shape_cast %481 : vector<8xf32> to vector<8x1xf32>
    %cst_188 = arith.constant 6.400000e+01 : f32
    %483 = vector.broadcast %cst_188 : f32 to vector<8x1xf32>
    %484 = arith.divf %482, %483 : vector<8x1xf32>
    %485 = vector.broadcast %484 : vector<8x1xf32> to vector<8x64xf32>
    %486 = arith.subf %466, %485 : vector<8x64xf32>
    %487 = arith.mulf %486, %486 : vector<8x64xf32>
    %cst_189 = arith.constant dense<0.000000e+00> : vector<8xf32>
    %488 = vector.multi_reduction <add>, %487, %cst_189 [1] : vector<8x64xf32> to vector<8xf32>
    %489 = vector.shape_cast %488 : vector<8xf32> to vector<8x1xf32>
    %cst_190 = arith.constant 6.400000e+01 : f32
    %490 = vector.broadcast %cst_190 : f32 to vector<8x1xf32>
    %491 = arith.divf %489, %490 : vector<8x1xf32>
    %cst_191 = arith.constant 9.99999974E-6 : f32
    %492 = vector.broadcast %cst_191 : f32 to vector<8x1xf32>
    %493 = arith.addf %491, %492 : vector<8x1xf32>
    %494 = math.rsqrt %493 : vector<8x1xf32>
    %495 = vector.broadcast %494 : vector<8x1xf32> to vector<8x64xf32>
    %496 = arith.mulf %486, %495 : vector<8x64xf32>
    %497 = vector.broadcast %468 : vector<1x64xf32> to vector<8x64xf32>
    %498 = arith.mulf %496, %497 : vector<8x64xf32>
    %499 = vector.broadcast %470 : vector<1x64xf32> to vector<8x64xf32>
    %500 = arith.addf %498, %499 : vector<8x64xf32>
    %501 = arith.truncf %500 : vector<8x64xf32> to vector<8x64xbf16>
    %502 = vector.extract_strided_slice %480 {offsets = [0, 0], sizes = [64, 192], strides = [1, 1]} : vector<64x512xbf16> to vector<64x192xbf16>
    %cst_192 = arith.constant dense<0.000000e+00> : vector<8x192xf32>
    %503 = tpu.matmul %501, %502, %cst_192 {dimension_numbers = #tpu.dot_dimension_numbers<[1], [0], [0], [1], [0, 0, 1, 1], [], []>} : vector<8x64xbf16>, vector<64x192xbf16>, vector<8x192xf32> -> vector<8x192xf32>
    %504 = arith.truncf %503 : vector<8x192xf32> to vector<8x192xbf16>
    %505 = vector.extract_strided_slice %504 {offsets = [0, 0], sizes = [8, 16], strides = [1, 1]} : vector<8x192xbf16> to vector<8x16xbf16>
    %506 = vector.extract_strided_slice %504 {offsets = [0, 64], sizes = [8, 16], strides = [1, 1]} : vector<8x192xbf16> to vector<8x16xbf16>
    %507 = vector.extract_strided_slice %504 {offsets = [0, 128], sizes = [8, 16], strides = [1, 1]} : vector<8x192xbf16> to vector<8x16xbf16>
    %cst_193 = arith.constant dense<0.000000e+00> : vector<8x8xf32>
    %508 = tpu.matmul %505, %506, %cst_193 {dimension_numbers = #tpu.dot_dimension_numbers<[1], [1], [0], [0], [0, 0, 1, 0], [], []>} : vector<8x16xbf16>, vector<8x16xbf16>, vector<8x8xf32> -> vector<8x8xf32>
    %cst_194 = arith.constant 1.250000e-01 : f32
    %509 = vector.broadcast %cst_194 : f32 to vector<8x8xf32>
    %510 = arith.mulf %508, %509 : vector<8x8xf32>
    %511 = arith.addf %510, %7 : vector<8x8xf32>
    %cst_195 = arith.constant dense<0xFF800000> : vector<8xf32>
    %512 = vector.multi_reduction <maximumf>, %511, %cst_195 [1] : vector<8x8xf32> to vector<8xf32>
    %513 = vector.shape_cast %512 : vector<8xf32> to vector<8x1xf32>
    %514 = vector.broadcast %513 : vector<8x1xf32> to vector<8x8xf32>
    %515 = arith.subf %511, %514 : vector<8x8xf32>
    %516 = math.exp %515 : vector<8x8xf32>
    %cst_196 = arith.constant dense<0.000000e+00> : vector<8xf32>
    %517 = vector.multi_reduction <add>, %516, %cst_196 [1] : vector<8x8xf32> to vector<8xf32>
    %518 = vector.shape_cast %517 : vector<8xf32> to vector<8x1xf32>
    %519 = vector.broadcast %518 : vector<8x1xf32> to vector<8x8xf32>
    %520 = arith.divf %516, %519 : vector<8x8xf32>
    %521 = arith.truncf %520 : vector<8x8xf32> to vector<8x8xbf16>
    %cst_197 = arith.constant dense<0.000000e+00> : vector<8x16xf32>
    %522 = tpu.matmul %521, %507, %cst_197 {dimension_numbers = #tpu.dot_dimension_numbers<[1], [0], [0], [1], [0, 0, 1, 1], [], []>} : vector<8x8xbf16>, vector<8x16xbf16>, vector<8x16xf32> -> vector<8x16xf32>
    %523 = vector.extract_strided_slice %504 {offsets = [0, 16], sizes = [8, 16], strides = [1, 1]} : vector<8x192xbf16> to vector<8x16xbf16>
    %524 = vector.extract_strided_slice %504 {offsets = [0, 80], sizes = [8, 16], strides = [1, 1]} : vector<8x192xbf16> to vector<8x16xbf16>
    %525 = vector.extract_strided_slice %504 {offsets = [0, 144], sizes = [8, 16], strides = [1, 1]} : vector<8x192xbf16> to vector<8x16xbf16>
    %cst_198 = arith.constant dense<0.000000e+00> : vector<8x8xf32>
    %526 = tpu.matmul %523, %524, %cst_198 {dimension_numbers = #tpu.dot_dimension_numbers<[1], [1], [0], [0], [0, 0, 1, 0], [], []>} : vector<8x16xbf16>, vector<8x16xbf16>, vector<8x8xf32> -> vector<8x8xf32>
    %cst_199 = arith.constant 1.250000e-01 : f32
    %527 = vector.broadcast %cst_199 : f32 to vector<8x8xf32>
    %528 = arith.mulf %526, %527 : vector<8x8xf32>
    %529 = arith.addf %528, %7 : vector<8x8xf32>
    %cst_200 = arith.constant dense<0xFF800000> : vector<8xf32>
    %530 = vector.multi_reduction <maximumf>, %529, %cst_200 [1] : vector<8x8xf32> to vector<8xf32>
    %531 = vector.shape_cast %530 : vector<8xf32> to vector<8x1xf32>
    %532 = vector.broadcast %531 : vector<8x1xf32> to vector<8x8xf32>
    %533 = arith.subf %529, %532 : vector<8x8xf32>
    %534 = math.exp %533 : vector<8x8xf32>
    %cst_201 = arith.constant dense<0.000000e+00> : vector<8xf32>
    %535 = vector.multi_reduction <add>, %534, %cst_201 [1] : vector<8x8xf32> to vector<8xf32>
    %536 = vector.shape_cast %535 : vector<8xf32> to vector<8x1xf32>
    %537 = vector.broadcast %536 : vector<8x1xf32> to vector<8x8xf32>
    %538 = arith.divf %534, %537 : vector<8x8xf32>
    %539 = arith.truncf %538 : vector<8x8xf32> to vector<8x8xbf16>
    %cst_202 = arith.constant dense<0.000000e+00> : vector<8x16xf32>
    %540 = tpu.matmul %539, %525, %cst_202 {dimension_numbers = #tpu.dot_dimension_numbers<[1], [0], [0], [1], [0, 0, 1, 1], [], []>} : vector<8x8xbf16>, vector<8x16xbf16>, vector<8x16xf32> -> vector<8x16xf32>
    %541 = vector.extract_strided_slice %504 {offsets = [0, 32], sizes = [8, 16], strides = [1, 1]} : vector<8x192xbf16> to vector<8x16xbf16>
    %542 = vector.extract_strided_slice %504 {offsets = [0, 96], sizes = [8, 16], strides = [1, 1]} : vector<8x192xbf16> to vector<8x16xbf16>
    %543 = vector.extract_strided_slice %504 {offsets = [0, 160], sizes = [8, 16], strides = [1, 1]} : vector<8x192xbf16> to vector<8x16xbf16>
    %cst_203 = arith.constant dense<0.000000e+00> : vector<8x8xf32>
    %544 = tpu.matmul %541, %542, %cst_203 {dimension_numbers = #tpu.dot_dimension_numbers<[1], [1], [0], [0], [0, 0, 1, 0], [], []>} : vector<8x16xbf16>, vector<8x16xbf16>, vector<8x8xf32> -> vector<8x8xf32>
    %cst_204 = arith.constant 1.250000e-01 : f32
    %545 = vector.broadcast %cst_204 : f32 to vector<8x8xf32>
    %546 = arith.mulf %544, %545 : vector<8x8xf32>
    %547 = arith.addf %546, %7 : vector<8x8xf32>
    %cst_205 = arith.constant dense<0xFF800000> : vector<8xf32>
    %548 = vector.multi_reduction <maximumf>, %547, %cst_205 [1] : vector<8x8xf32> to vector<8xf32>
    %549 = vector.shape_cast %548 : vector<8xf32> to vector<8x1xf32>
    %550 = vector.broadcast %549 : vector<8x1xf32> to vector<8x8xf32>
    %551 = arith.subf %547, %550 : vector<8x8xf32>
    %552 = math.exp %551 : vector<8x8xf32>
    %cst_206 = arith.constant dense<0.000000e+00> : vector<8xf32>
    %553 = vector.multi_reduction <add>, %552, %cst_206 [1] : vector<8x8xf32> to vector<8xf32>
    %554 = vector.shape_cast %553 : vector<8xf32> to vector<8x1xf32>
    %555 = vector.broadcast %554 : vector<8x1xf32> to vector<8x8xf32>
    %556 = arith.divf %552, %555 : vector<8x8xf32>
    %557 = arith.truncf %556 : vector<8x8xf32> to vector<8x8xbf16>
    %cst_207 = arith.constant dense<0.000000e+00> : vector<8x16xf32>
    %558 = tpu.matmul %557, %543, %cst_207 {dimension_numbers = #tpu.dot_dimension_numbers<[1], [0], [0], [1], [0, 0, 1, 1], [], []>} : vector<8x8xbf16>, vector<8x16xbf16>, vector<8x16xf32> -> vector<8x16xf32>
    %559 = vector.extract_strided_slice %504 {offsets = [0, 48], sizes = [8, 16], strides = [1, 1]} : vector<8x192xbf16> to vector<8x16xbf16>
    %560 = vector.extract_strided_slice %504 {offsets = [0, 112], sizes = [8, 16], strides = [1, 1]} : vector<8x192xbf16> to vector<8x16xbf16>
    %561 = vector.extract_strided_slice %504 {offsets = [0, 176], sizes = [8, 16], strides = [1, 1]} : vector<8x192xbf16> to vector<8x16xbf16>
    %cst_208 = arith.constant dense<0.000000e+00> : vector<8x8xf32>
    %562 = tpu.matmul %559, %560, %cst_208 {dimension_numbers = #tpu.dot_dimension_numbers<[1], [1], [0], [0], [0, 0, 1, 0], [], []>} : vector<8x16xbf16>, vector<8x16xbf16>, vector<8x8xf32> -> vector<8x8xf32>
    %cst_209 = arith.constant 1.250000e-01 : f32
    %563 = vector.broadcast %cst_209 : f32 to vector<8x8xf32>
    %564 = arith.mulf %562, %563 : vector<8x8xf32>
    %565 = arith.addf %564, %7 : vector<8x8xf32>
    %cst_210 = arith.constant dense<0xFF800000> : vector<8xf32>
    %566 = vector.multi_reduction <maximumf>, %565, %cst_210 [1] : vector<8x8xf32> to vector<8xf32>
    %567 = vector.shape_cast %566 : vector<8xf32> to vector<8x1xf32>
    %568 = vector.broadcast %567 : vector<8x1xf32> to vector<8x8xf32>
    %569 = arith.subf %565, %568 : vector<8x8xf32>
    %570 = math.exp %569 : vector<8x8xf32>
    %cst_211 = arith.constant dense<0.000000e+00> : vector<8xf32>
    %571 = vector.multi_reduction <add>, %570, %cst_211 [1] : vector<8x8xf32> to vector<8xf32>
    %572 = vector.shape_cast %571 : vector<8xf32> to vector<8x1xf32>
    %573 = vector.broadcast %572 : vector<8x1xf32> to vector<8x8xf32>
    %574 = arith.divf %570, %573 : vector<8x8xf32>
    %575 = arith.truncf %574 : vector<8x8xf32> to vector<8x8xbf16>
    %cst_212 = arith.constant dense<0.000000e+00> : vector<8x16xf32>
    %576 = tpu.matmul %575, %561, %cst_212 {dimension_numbers = #tpu.dot_dimension_numbers<[1], [0], [0], [1], [0, 0, 1, 1], [], []>} : vector<8x8xbf16>, vector<8x16xbf16>, vector<8x16xf32> -> vector<8x16xf32>
    %577 = tpu.concatenate %522, %540, %558, %576 in 1 : vector<8x16xf32>, vector<8x16xf32>, vector<8x16xf32>, vector<8x16xf32> -> vector<8x64xf32>
    %578 = arith.truncf %577 : vector<8x64xf32> to vector<8x64xbf16>
    %579 = vector.extract_strided_slice %480 {offsets = [0, 192], sizes = [64, 64], strides = [1, 1]} : vector<64x512xbf16> to vector<64x64xbf16>
    %cst_213 = arith.constant dense<0.000000e+00> : vector<8x64xf32>
    %580 = tpu.matmul %578, %579, %cst_213 {dimension_numbers = #tpu.dot_dimension_numbers<[1], [0], [0], [1], [0, 0, 1, 1], [], []>} : vector<8x64xbf16>, vector<64x64xbf16>, vector<8x64xf32> -> vector<8x64xf32>
    %581 = vector.broadcast %476 : vector<1x64xf32> to vector<8x64xf32>
    %582 = arith.addf %580, %581 : vector<8x64xf32>
    %583 = arith.addf %466, %582 : vector<8x64xf32>
    %cst_214 = arith.constant dense<0.000000e+00> : vector<8xf32>
    %584 = vector.multi_reduction <add>, %583, %cst_214 [1] : vector<8x64xf32> to vector<8xf32>
    %585 = vector.shape_cast %584 : vector<8xf32> to vector<8x1xf32>
    %cst_215 = arith.constant 6.400000e+01 : f32
    %586 = vector.broadcast %cst_215 : f32 to vector<8x1xf32>
    %587 = arith.divf %585, %586 : vector<8x1xf32>
    %588 = vector.broadcast %587 : vector<8x1xf32> to vector<8x64xf32>
    %589 = arith.subf %583, %588 : vector<8x64xf32>
    %590 = arith.mulf %589, %589 : vector<8x64xf32>
    %cst_216 = arith.constant dense<0.000000e+00> : vector<8xf32>
    %591 = vector.multi_reduction <add>, %590, %cst_216 [1] : vector<8x64xf32> to vector<8xf32>
    %592 = vector.shape_cast %591 : vector<8xf32> to vector<8x1xf32>
    %cst_217 = arith.constant 6.400000e+01 : f32
    %593 = vector.broadcast %cst_217 : f32 to vector<8x1xf32>
    %594 = arith.divf %592, %593 : vector<8x1xf32>
    %cst_218 = arith.constant 9.99999974E-6 : f32
    %595 = vector.broadcast %cst_218 : f32 to vector<8x1xf32>
    %596 = arith.addf %594, %595 : vector<8x1xf32>
    %597 = math.rsqrt %596 : vector<8x1xf32>
    %598 = vector.broadcast %597 : vector<8x1xf32> to vector<8x64xf32>
    %599 = arith.mulf %589, %598 : vector<8x64xf32>
    %600 = vector.broadcast %472 : vector<1x64xf32> to vector<8x64xf32>
    %601 = arith.mulf %599, %600 : vector<8x64xf32>
    %602 = vector.broadcast %474 : vector<1x64xf32> to vector<8x64xf32>
    %603 = arith.addf %601, %602 : vector<8x64xf32>
    %604 = arith.truncf %603 : vector<8x64xf32> to vector<8x64xbf16>
    %605 = vector.extract_strided_slice %480 {offsets = [0, 256], sizes = [64, 256], strides = [1, 1]} : vector<64x512xbf16> to vector<64x256xbf16>
    %cst_219 = arith.constant dense<0.000000e+00> : vector<8x256xf32>
    %606 = tpu.matmul %604, %605, %cst_219 {dimension_numbers = #tpu.dot_dimension_numbers<[1], [0], [0], [1], [0, 0, 1, 1], [], []>} : vector<8x64xbf16>, vector<64x256xbf16>, vector<8x256xf32> -> vector<8x256xf32>
    %c3_220 = arith.constant 3 : index
    %c0_221 = arith.constant 0 : index
    %c0_222 = arith.constant 0 : index
    %607 = vector.load %arg6[%c3_220, %c0_221, %c0_222] : memref<4x1x256xf32, #tpu.memory_space<vmem>>, vector<1x1x256xf32>
    %608 = vector.shape_cast %607 : vector<1x1x256xf32> to vector<1x256xf32>
    %609 = vector.broadcast %608 : vector<1x256xf32> to vector<8x256xf32>
    %610 = arith.addf %606, %609 : vector<8x256xf32>
    %cst_223 = arith.constant 0.000000e+00 : f32
    %611 = vector.broadcast %cst_223 : f32 to vector<8x256xf32>
    %612 = arith.maximumf %610, %611 : vector<8x256xf32>
    %613 = arith.truncf %612 : vector<8x256xf32> to vector<8x256xbf16>
    %c3_224 = arith.constant 3 : index
    %c0_225 = arith.constant 0 : index
    %c0_226 = arith.constant 0 : index
    %614 = vector.load %arg3[%c3_224, %c0_225, %c0_226] : memref<4x256x64xbf16, #tpu.memory_space<vmem>>, vector<1x256x64xbf16>
    %615 = vector.shape_cast %614 : vector<1x256x64xbf16> to vector<256x64xbf16>
    %cst_227 = arith.constant dense<0.000000e+00> : vector<8x64xf32>
    %616 = tpu.matmul %613, %615, %cst_227 {dimension_numbers = #tpu.dot_dimension_numbers<[1], [0], [0], [1], [0, 0, 1, 1], [], []>} : vector<8x256xbf16>, vector<256x64xbf16>, vector<8x64xf32> -> vector<8x64xf32>
    %617 = arith.addf %583, %616 : vector<8x64xf32>
    %618 = vector.broadcast %478 : vector<1x64xf32> to vector<8x64xf32>
    %619 = arith.addf %617, %618 : vector<8x64xf32>
    %c24 = arith.constant 24 : index
    %c0_228 = arith.constant 0 : index
    %c0_229 = arith.constant 0 : index
    %620 = vector.load %arg5[%c24, %c0_228, %c0_229] : memref<26x1x64xf32, #tpu.memory_space<vmem>>, vector<1x1x64xf32>
    %621 = vector.shape_cast %620 : vector<1x1x64xf32> to vector<1x64xf32>
    %c25 = arith.constant 25 : index
    %c0_230 = arith.constant 0 : index
    %c0_231 = arith.constant 0 : index
    %622 = vector.load %arg5[%c25, %c0_230, %c0_231] : memref<26x1x64xf32, #tpu.memory_space<vmem>>, vector<1x1x64xf32>
    %623 = vector.shape_cast %622 : vector<1x1x64xf32> to vector<1x64xf32>
    %cst_232 = arith.constant dense<0.000000e+00> : vector<8xf32>
    %624 = vector.multi_reduction <add>, %619, %cst_232 [1] : vector<8x64xf32> to vector<8xf32>
    %625 = vector.shape_cast %624 : vector<8xf32> to vector<8x1xf32>
    %cst_233 = arith.constant 6.400000e+01 : f32
    %626 = vector.broadcast %cst_233 : f32 to vector<8x1xf32>
    %627 = arith.divf %625, %626 : vector<8x1xf32>
    %628 = vector.broadcast %627 : vector<8x1xf32> to vector<8x64xf32>
    %629 = arith.subf %619, %628 : vector<8x64xf32>
    %630 = arith.mulf %629, %629 : vector<8x64xf32>
    %cst_234 = arith.constant dense<0.000000e+00> : vector<8xf32>
    %631 = vector.multi_reduction <add>, %630, %cst_234 [1] : vector<8x64xf32> to vector<8xf32>
    %632 = vector.shape_cast %631 : vector<8xf32> to vector<8x1xf32>
    %cst_235 = arith.constant 6.400000e+01 : f32
    %633 = vector.broadcast %cst_235 : f32 to vector<8x1xf32>
    %634 = arith.divf %632, %633 : vector<8x1xf32>
    %cst_236 = arith.constant 9.99999974E-6 : f32
    %635 = vector.broadcast %cst_236 : f32 to vector<8x1xf32>
    %636 = arith.addf %634, %635 : vector<8x1xf32>
    %637 = math.rsqrt %636 : vector<8x1xf32>
    %638 = vector.broadcast %637 : vector<8x1xf32> to vector<8x64xf32>
    %639 = arith.mulf %629, %638 : vector<8x64xf32>
    %640 = vector.broadcast %621 : vector<1x64xf32> to vector<8x64xf32>
    %641 = arith.mulf %639, %640 : vector<8x64xf32>
    %642 = vector.broadcast %623 : vector<1x64xf32> to vector<8x64xf32>
    %643 = arith.addf %641, %642 : vector<8x64xf32>
    %644 = arith.truncf %643 : vector<8x64xf32> to vector<8x64xbf16>
    %c0_237 = arith.constant 0 : index
    %c0_238 = arith.constant 0 : index
    %645 = vector.load %arg4[%c0_237, %c0_238] : memref<64x128xbf16, #tpu.memory_space<vmem>>, vector<64x128xbf16>
    %cst_239 = arith.constant dense<0.000000e+00> : vector<8x128xf32>
    %646 = tpu.matmul %644, %645, %cst_239 {dimension_numbers = #tpu.dot_dimension_numbers<[1], [0], [0], [1], [0, 0, 1, 1], [], []>} : vector<8x64xbf16>, vector<64x128xbf16>, vector<8x128xf32> -> vector<8x128xf32>
    %c0_240 = arith.constant 0 : index
    %c0_241 = arith.constant 0 : index
    %647 = vector.load %arg7[%c0_240, %c0_241] : memref<1x128xf32, #tpu.memory_space<vmem>>, vector<1x128xf32>
    %648 = vector.broadcast %647 : vector<1x128xf32> to vector<8x128xf32>
    %649 = arith.addf %646, %648 : vector<8x128xf32>
    %c0_242 = arith.constant 0 : index
    %c0_243 = arith.constant 0 : index
    %c0_244 = arith.constant 0 : index
    %650 = vector.load %arg8[%c0_242, %c0_243, %c0_244] : memref<1x8x128xf32, #tpu.memory_space<vmem>>, vector<1x8x128xf32>
    %651 = vector.shape_cast %650 : vector<1x8x128xf32> to vector<8x128xf32>
    %652 = vector.shape_cast %649 : vector<8x128xf32> to vector<1x8x128xf32>
    tpu.vector_store %arg8[%c0_242, %c0_243, %c0_244], %652 {strides = array<i32>} : memref<1x8x128xf32, #tpu.memory_space<vmem>>, vector<1x8x128xf32>,
    return
  }
  func.func @transform_0(%arg0: i32) -> (i32, i32, i32) {
    %c0_i32 = arith.constant 0 : i32
    %c0_i32_0 = arith.constant 0 : i32
    %c0_i32_1 = arith.constant 0 : i32
    return %arg0, %c0_i32, %c0_i32_0 : i32, i32, i32
  }
  func.func @transform_1(%arg0: i32) -> (i32, i32, i32) {
    %c0_i32 = arith.constant 0 : i32
    %c0_i32_0 = arith.constant 0 : i32
    %c0_i32_1 = arith.constant 0 : i32
    %c0_i32_2 = arith.constant 0 : i32
    return %c0_i32, %c0_i32_0, %c0_i32_1 : i32, i32, i32
  }
  func.func @transform_2(%arg0: i32) -> (i32, i32, i32) {
    %c0_i32 = arith.constant 0 : i32
    %c0_i32_0 = arith.constant 0 : i32
    %c0_i32_1 = arith.constant 0 : i32
    %c0_i32_2 = arith.constant 0 : i32
    return %c0_i32, %c0_i32_0, %c0_i32_1 : i32, i32, i32
  }
  func.func @transform_3(%arg0: i32) -> (i32, i32) {
    %c0_i32 = arith.constant 0 : i32
    %c0_i32_0 = arith.constant 0 : i32
    %c0_i32_1 = arith.constant 0 : i32
    return %c0_i32, %c0_i32_0 : i32, i32
  }
  func.func @transform_4(%arg0: i32) -> (i32, i32, i32) {
    %c0_i32 = arith.constant 0 : i32
    %c0_i32_0 = arith.constant 0 : i32
    %c0_i32_1 = arith.constant 0 : i32
    %c0_i32_2 = arith.constant 0 : i32
    return %c0_i32, %c0_i32_0, %c0_i32_1 : i32, i32, i32
  }
  func.func @transform_5(%arg0: i32) -> (i32, i32, i32) {
    %c0_i32 = arith.constant 0 : i32
    %c0_i32_0 = arith.constant 0 : i32
    %c0_i32_1 = arith.constant 0 : i32
    %c0_i32_2 = arith.constant 0 : i32
    return %c0_i32, %c0_i32_0, %c0_i32_1 : i32, i32, i32
  }
  func.func @transform_6(%arg0: i32) -> (i32, i32) {
    %c0_i32 = arith.constant 0 : i32
    %c0_i32_0 = arith.constant 0 : i32
    %c0_i32_1 = arith.constant 0 : i32
    return %c0_i32, %c0_i32_0 : i32, i32
  }
  func.func @transform_7(%arg0: i32) -> (i32, i32, i32) {
    %c0_i32 = arith.constant 0 : i32
    %c0_i32_0 = arith.constant 0 : i32
    %c0_i32_1 = arith.constant 0 : i32
    return %arg0, %c0_i32, %c0_i32_0 : i32, i32, i32
  }
}

</mosaic_0001>

<llo_original>
// kernel: forward.1
$region0: #{forward.1}
  #allocation0 [shape = 'u32[]', space=smem, size = 0x4, offset = 0x4, fixed_abs, tag = 'smem constant byte address 0x4 - core index']
  #allocation1 [shape = 'u32[144,128]{1,0:T(1,128)}', space=vmem, size = 0x12000, scoped, tag = 'internal scratch']
  %s0 = inlined_call_operand.vmem [shape: f32[2,8,64], index: 0, kind: input, shape index: {}]
  %s1 = inlined_call_operand.vmem [shape: bf16[4,64,512], index: 1, kind: input, shape index: {}]
  %s2 = inlined_call_operand.vmem [shape: bf16[4,256,64], index: 2, kind: input, shape index: {}]
  %s3 = inlined_call_operand.vmem [shape: bf16[64,128], index: 3, kind: input, shape index: {}]
  %s4 = inlined_call_operand.vmem [shape: f32[26,1,64], index: 4, kind: input, shape index: {}]
  %s5 = inlined_call_operand.vmem [shape: f32[4,1,256], index: 5, kind: input, shape index: {}]
  %s6 = inlined_call_operand.vmem [shape: f32[1,128], index: 6, kind: input, shape index: {}]
  %s7 = inlined_call_operand.hbm [shape: f32[2,8,128], index: 7, kind: output, shape index: {}]
  %s8 = sld [smem:[#allocation0]]
  $region61: #{forward.1} parent=0
    _
  %s10 = ssub.s32 1, %s8
  %s11 = scalar_select 0, %s10, %s8
  $region1: #{forward.1} parent=0
    #allocation2 [shape = 'u8[8192]{0}', space=vmem, size = 0x2000, scoped, tag = 'output window, operand 0']
    #allocation3 [shape = 's32[2]{0}', space=sflag, size = 0x8, scoped, tag = 'scoped memory for forward.1']
    %12 = vsyncpa [#allocation3], 0
    %s13 = scalar_lea.sflag [#allocation3], 1
    %14 = vsyncpa %s13, 0
    loop: start=0, step=1, limit=4
    $region2: #{forward.1} parent=1 // loop_pre_header
      _
    $region3: #{forward.1} parent=1 // loop_header
      %s16 = sphi 0, %s20
      %p17 = scmp.ge.s32.totalorder %s16, 4
      %s26 = sphi 0, %s28
      %s29 = sphi 0, %s26
      %s30 = sphi 0, %s29
      %s46 = sphi 0, %s30
      %s50 = sphi 0, %s50
      %s52 = sphi 0, %s50
      %s53 = sphi 0, %s52
      %s67 = sphi 0, %s53
      %s71 = sphi 0, %s71
      %s73 = sphi 0, %s71
      %s74 = sphi 0, %s73
      %s88 = sphi 0, %s74
      %s92 = sphi 0, %s92
      %s94 = sphi 0, %s92
      %s95 = sphi 0, %s94
      %s109 = sphi 0, %s95
      %s113 = sphi 0, %s113
      %s115 = sphi 0, %s113
      %s116 = sphi 0, %s115
      %s130 = sphi 0, %s116
      %s134 = sphi 0, %s134
      %s136 = sphi 0, %s134
      %s137 = sphi 0, %s136
      %s151 = sphi 0, %s137
      %s155 = sphi 0, %s155
      %s157 = sphi 0, %s155
      %s158 = sphi 0, %s157
      %s172 = sphi 0, %s158
      %s178 = sphi 0, %s180
      %s181 = sphi 0, %s178
      %s182 = sphi 0, %s181
      %s198 = sphi 0, %s182
    $region4: #{forward.1} parent=1 // loop_header_branch
      %19 = sbr.rel (%p17) target = $region8
    $region5: #{forward.1} parent=1 // loop_body
      %s21 = ssub.s32 %s16, 1
      %s22 = ssub.s32 %s16, 2
      %s23 = sadd.s32 %s16, 1
      %s24 = ssub.s32 %s16, %s23
      %p25 = scmp.eq.s32.totalorder %s24, 0
      %s27 = sadd.s32 %s26, 1
      %s28 = scalar_select %p25, %s26, %s27
      %p31 = pneg %p25
      %p32 = scmp.eq.s32.totalorder %s16, 1
      %p33 = por %p31, %p32
      %p34 = scmp.ne.s32.totalorder %s26, %s29
      %p35 = scmp.eq.s32.totalorder %s16, 0
      %p36 = por %p34, %p35
      %p37 = scmp.ne.s32.totalorder %s26, %s29
      %p38 = scmp.eq.s32.totalorder %s21, 1
      %p39 = por %p37, %p38
      %p40 = scmp.ne.s32.totalorder %s29, %s30
      %p41 = scmp.eq.s32.totalorder %s21, 0
      %p42 = por %p40, %p41
      %p43 = scmp.ne.s32.totalorder %s29, %s30
      %p44 = scmp.eq.s32.totalorder %s22, 1
      %p45 = por %p43, %p44
      %p47 = scmp.ne.s32.totalorder %s30, %s46
      %p48 = scmp.eq.s32.totalorder %s22, 0
      %p49 = por %p47, %p48
      %s51 = sadd.s32 %s50, 1
      %p54 = scmp.eq.s32.totalorder %s16, 1
      %p55 = scmp.ne.s32.totalorder %s50, %s52
      %p56 = scmp.eq.s32.totalorder %s16, 0
      %p57 = por %p55, %p56
      %p58 = scmp.ne.s32.totalorder %s50, %s52
      %p59 = scmp.eq.s32.totalorder %s21, 1
      %p60 = por %p58, %p59
      %p61 = scmp.ne.s32.totalorder %s52, %s53
      %p62 = scmp.eq.s32.totalorder %s21, 0
      %p63 = por %p61, %p62
      %p64 = scmp.ne.s32.totalorder %s52, %s53
      %p65 = scmp.eq.s32.totalorder %s22, 1
      %p66 = por %p64, %p65
      %p68 = scmp.ne.s32.totalorder %s53, %s67
      %p69 = scmp.eq.s32.totalorder %s22, 0
      %p70 = por %p68, %p69
      %s72 = sadd.s32 %s71, 1
      %p75 = scmp.eq.s32.totalorder %s16, 1
      %p76 = scmp.ne.s32.totalorder %s71, %s73
      %p77 = scmp.eq.s32.totalorder %s16, 0
      %p78 = por %p76, %p77
      %p79 = scmp.ne.s32.totalorder %s71, %s73
      %p80 = scmp.eq.s32.totalorder %s21, 1
      %p81 = por %p79, %p80
      %p82 = scmp.ne.s32.totalorder %s73, %s74
      %p83 = scmp.eq.s32.totalorder %s21, 0
      %p84 = por %p82, %p83
      %p85 = scmp.ne.s32.totalorder %s73, %s74
      %p86 = scmp.eq.s32.totalorder %s22, 1
      %p87 = por %p85, %p86
      %p89 = scmp.ne.s32.totalorder %s74, %s88
      %p90 = scmp.eq.s32.totalorder %s22, 0
      %p91 = por %p89, %p90
      %s93 = sadd.s32 %s92, 1
      %p96 = scmp.eq.s32.totalorder %s16, 1
      %p97 = scmp.ne.s32.totalorder %s92, %s94
      %p98 = scmp.eq.s32.totalorder %s16, 0
      %p99 = por %p97, %p98
      %p100 = scmp.ne.s32.totalorder %s92, %s94
      %p101 = scmp.eq.s32.totalorder %s21, 1
      %p102 = por %p100, %p101
      %p103 = scmp.ne.s32.totalorder %s94, %s95
      %p104 = scmp.eq.s32.totalorder %s21, 0
      %p105 = por %p103, %p104
      %p106 = scmp.ne.s32.totalorder %s94, %s95
      %p107 = scmp.eq.s32.totalorder %s22, 1
      %p108 = por %p106, %p107
      %p110 = scmp.ne.s32.totalorder %s95, %s109
      %p111 = scmp.eq.s32.totalorder %s22, 0
      %p112 = por %p110, %p111
      %s114 = sadd.s32 %s113, 1
      %p117 = scmp.eq.s32.totalorder %s16, 1
      %p118 = scmp.ne.s32.totalorder %s113, %s115
      %p119 = scmp.eq.s32.totalorder %s16, 0
      %p120 = por %p118, %p119
      %p121 = scmp.ne.s32.totalorder %s113, %s115
      %p122 = scmp.eq.s32.totalorder %s21, 1
      %p123 = por %p121, %p122
      %p124 = scmp.ne.s32.totalorder %s115, %s116
      %p125 = scmp.eq.s32.totalorder %s21, 0
      %p126 = por %p124, %p125
      %p127 = scmp.ne.s32.totalorder %s115, %s116
      %p128 = scmp.eq.s32.totalorder %s22, 1
      %p129 = por %p127, %p128
      %p131 = scmp.ne.s32.totalorder %s116, %s130
      %p132 = scmp.eq.s32.totalorder %s22, 0
      %p133 = por %p131, %p132
      %s135 = sadd.s32 %s134, 1
      %p138 = scmp.eq.s32.totalorder %s16, 1
      %p139 = scmp.ne.s32.totalorder %s134, %s136
      %p140 = scmp.eq.s32.totalorder %s16, 0
      %p141 = por %p139, %p140
      %p142 = scmp.ne.s32.totalorder %s134, %s136
      %p143 = scmp.eq.s32.totalorder %s21, 1
      %p144 = por %p142, %p143
      %p145 = scmp.ne.s32.totalorder %s136, %s137
      %p146 = scmp.eq.s32.totalorder %s21, 0
      %p147 = por %p145, %p146
      %p148 = scmp.ne.s32.totalorder %s136, %s137
      %p149 = scmp.eq.s32.totalorder %s22, 1
      %p150 = por %p148, %p149
      %p152 = scmp.ne.s32.totalorder %s137, %s151
      %p153 = scmp.eq.s32.totalorder %s22, 0
      %p154 = por %p152, %p153
      %s156 = sadd.s32 %s155, 1
      %p159 = scmp.eq.s32.totalorder %s16, 1
      %p160 = scmp.ne.s32.totalorder %s155, %s157
      %p161 = scmp.eq.s32.totalorder %s16, 0
      %p162 = por %p160, %p161
      %p163 = scmp.ne.s32.totalorder %s155, %s157
      %p164 = scmp.eq.s32.totalorder %s21, 1
      %p165 = por %p163, %p164
      %p166 = scmp.ne.s32.totalorder %s157, %s158
      %p167 = scmp.eq.s32.totalorder %s21, 0
      %p168 = por %p166, %p167
      %p169 = scmp.ne.s32.totalorder %s157, %s158
      %p170 = scmp.eq.s32.totalorder %s22, 1
      %p171 = por %p169, %p170
      %p173 = scmp.ne.s32.totalorder %s158, %s172
      %p174 = scmp.eq.s32.totalorder %s22, 0
      %p175 = por %p173, %p174
      %s176 = ssub.s32 %s16, %s23
      %p177 = scmp.eq.s32.totalorder %s176, 0
      %s179 = sadd.s32 %s178, 1
      %s180 = scalar_select %p177, %s178, %s179
      %p183 = pneg %p177
      %p184 = scmp.eq.s32.totalorder %s16, 1
      %p185 = por %p183, %p184
      %p186 = scmp.ne.s32.totalorder %s178, %s181
      %p187 = scmp.eq.s32.totalorder %s16, 0
      %p188 = por %p186, %p187
      %p189 = scmp.ne.s32.totalorder %s178, %s181
      %p190 = scmp.eq.s32.totalorder %s21, 1
      %p191 = por %p189, %p190
      %p192 = scmp.ne.s32.totalorder %s181, %s182
      %p193 = scmp.eq.s32.totalorder %s21, 0
      %p194 = por %p192, %p193
      %p195 = scmp.ne.s32.totalorder %s181, %s182
      %p196 = scmp.eq.s32.totalorder %s22, 1
      %p197 = por %p195, %p196
      %p199 = scmp.ne.s32.totalorder %s182, %s198
      %p200 = scmp.eq.s32.totalorder %s22, 0
      %p201 = por %p199, %p200
      %p202 = scmp.le.s32.totalorder 1, %s16
      %p203 = scmp.lt.s32.totalorder %s16, 3
      %p204 = pnand %p202, %p203
      %p205 = pneg %p204
      // Predicated region
      $region9: #{forward.1} parent=5 // pred_check
        _
      $region10: #{forward.1} parent=5 // pred_check_branch
        %207 = sbr.rel (%p204) target = $region12
      $region11: #{forward.1} parent=5 // pred_region
        %s208 = ssub.s32 %s16, 1
        // Predicated region
        $region13: #{forward.1} parent=11 // pred_check
          %p209 = pneg %p63
        $region14: #{forward.1} parent=11 // pred_check_branch
          %211 = sbr.rel (%p209) target = $region16
        $region15: #{forward.1} parent=11 // pred_region
          _
        $region16: #{forward.1} parent=11 // pred_fallthru
          _
        // Predicated region
        $region17: #{forward.1} parent=11 // pred_check
          %p212 = pneg %p84
        $region18: #{forward.1} parent=11 // pred_check_branch
          %214 = sbr.rel (%p212) target = $region20
        $region19: #{forward.1} parent=11 // pred_region
          _
        $region20: #{forward.1} parent=11 // pred_fallthru
          _
        // Predicated region
        $region21: #{forward.1} parent=11 // pred_check
          %p215 = pneg %p105
        $region22: #{forward.1} parent=11 // pred_check_branch
          %217 = sbr.rel (%p215) target = $region24
        $region23: #{forward.1} parent=11 // pred_region
          _
        $region24: #{forward.1} parent=11 // pred_fallthru
          _
        // Predicated region
        $region25: #{forward.1} parent=11 // pred_check
          %p218 = pneg %p126
        $region26: #{forward.1} parent=11 // pred_check_branch
          %220 = sbr.rel (%p218) target = $region28
        $region27: #{forward.1} parent=11 // pred_region
          _
        $region28: #{forward.1} parent=11 // pred_fallthru
          _
        // Predicated region
        $region29: #{forward.1} parent=11 // pred_check
          %p221 = pneg %p147
        $region30: #{forward.1} parent=11 // pred_check_branch
          %223 = sbr.rel (%p221) target = $region32
        $region31: #{forward.1} parent=11 // pred_region
          _
        $region32: #{forward.1} parent=11 // pred_fallthru
          _
        // Predicated region
        $region33: #{forward.1} parent=11 // pred_check
          %p224 = pneg %p168
        $region34: #{forward.1} parent=11 // pred_check_branch
          %226 = sbr.rel (%p224) target = $region36
        $region35: #{forward.1} parent=11 // pred_region
          _
        $region36: #{forward.1} parent=11 // pred_fallthru
          _
      $region12: #{forward.1} parent=5 // pred_fallthru
        _
      %p227 = scmp.lt.s32.totalorder %s16, 2
      // Predicated region
      $region37: #{forward.1} parent=5 // pred_check
        %p228 = pneg %p227
      $region38: #{forward.1} parent=5 // pred_check_branch
        %230 = sbr.rel (%p228) target = $region40
      $region39: #{forward.1} parent=5 // pred_region
        // Predicated region
        $region41: #{forward.1} parent=39 // pred_check
          %p231 = pneg %p36
        $region42: #{forward.1} parent=39 // pred_check_branch
          %233 = sbr.rel (%p231) target = $region44
        $region43: #{forward.1} parent=39 // pred_region
          %p234 = scmp.lt.s32.totalorder %s16, 1
          %s235 = scalar_select %p234, %s16, 1
          %s236 = smul.addr %s235, 8
          %s237 = scalar_lea.vmem %s0, %s236
        $region44: #{forward.1} parent=39 // pred_fallthru
          _
      $region40: #{forward.1} parent=5 // pred_fallthru
        _
      %p238 = scmp.le.s32.totalorder 1, %s16
      %p239 = scmp.lt.s32.totalorder %s16, 3
      %p240 = pnand %p238, %p239
      %p241 = pneg %p240
      // Predicated region
      $region45: #{forward.1} parent=5 // pred_check
        _
      $region46: #{forward.1} parent=5 // pred_check_branch
        %243 = sbr.rel (%p240) target = $region48
      $region47: #{forward.1} parent=5 // pred_region
        %s244 = ssub.s32 %s16, 1
        %p245 = scmp.lt.s32.totalorder %s21, 1
        %s246 = scalar_select %p245, %s21, 1
        %s247 = smul.addr %s246, 8
        %s248 = scalar_lea.vmem %s0, %s247
        %p249 = pneg %p42
        %p250 = pneg %p39
        %p251 = pneg %p63
        %p252 = pneg %p60
        %p253 = pneg %p84
        %p254 = pneg %p81
        %p255 = pneg %p105
        %p256 = pneg %p102
        %p257 = pneg %p126
        %p258 = pneg %p123
        %p259 = pneg %p147
        %p260 = pneg %p144
        %p261 = pneg %p168
        %p262 = pneg %p165
        %p263 = pneg %p194
        %p264 = pneg %p191
        %s265 = sand.u32 %s181, 1
        %s266 = scalar_lea.sflag [#allocation3], %s265
        %s267 = sand.u32 %s181, 1
        %s268 = smul.addr %s267, 8
        %s269 = scalar_lea.vmem [#allocation2], %s268
        %p270 = scmp.lt.s32.totalorder %s21, 1
        %s271 = scalar_select %p270, %s21, 1
        %s272 = smul.addr %s271, 8
        %s273 = scalar_lea.vmem %s0, %s272
        %v275 = vld [vmem:[%s273] sm:$0xff]
        %v276 = vlaneseq
        %v277 = vshrl.u32 %v276, 7
        %v278 = vlaneseq
        %v279 = vand.u32 %v278, 127
        %vm280 = vcmp.ge.s32.totalorder %v277, %v279
        %v281 = vsel %vm280, 0.0, -1e+30
        %v282 = vld [vmem:[%s4] sm:$0x1]
        %s283 = scalar_lea.vmem %s4, 1
        %v284 = vld [vmem:[%s283] sm:$0x1]
        %s285 = scalar_lea.vmem %s4, 2
        %v286 = vld [vmem:[%s285] sm:$0x1]
        %s287 = scalar_lea.vmem %s4, 3
        %v288 = vld [vmem:[%s287] sm:$0x1]
        %s289 = scalar_lea.vmem %s4, 4
        %v290 = vld [vmem:[%s289] sm:$0x1]
        %s291 = scalar_lea.vmem %s4, 5
        %v292 = vld [vmem:[%s291] sm:$0x1]
        %v293 = vld [vmem:[%s1] sm:$0xff]
        %v294 = vld [vmem:[%s1 + $0x8] sm:$0xff]
        %v295 = vld [vmem:[%s1 + $0x10] sm:$0xff]
        %v296 = vld [vmem:[%s1 + $0x18] sm:$0xff]
        %v297 = vld [vmem:[%s1 + $0x20] sm:$0xff]
        %v298 = vld [vmem:[%s1 + $0x28] sm:$0xff]
        %v299 = vld [vmem:[%s1 + $0x30] sm:$0xff]
        %v300 = vld [vmem:[%s1 + $0x38] sm:$0xff]
        %v301 = vld [vmem:[%s1 + $0x40] sm:$0xff]
        %v302 = vld [vmem:[%s1 + $0x48] sm:$0xff]
        %v303 = vld [vmem:[%s1 + $0x50] sm:$0xff]
        %v304 = vld [vmem:[%s1 + $0x58] sm:$0xff]
        %v305 = vld [vmem:[%s1 + $0x60] sm:$0xff]
        %v306 = vld [vmem:[%s1 + $0x68] sm:$0xff]
        %v307 = vld [vmem:[%s1 + $0x70] sm:$0xff]
        %v308 = vld [vmem:[%s1 + $0x78] sm:$0xff]
        %vm309 = vcmask 523264
        %v310 = vsel %vm309, %v275, 0.0
        %311 = vadd.xlane.f32.xlu0 %v310
        %v312 = vpop.xlane.xlu0 %311
        %v313 = vrcp.pop 64.0
        %v314 = vmul.f32 %v312, %v313
        %v315 = vsub.f32 %v275, %v314
        %v316 = vmul.f32 %v315, %v315
        %v317 = vsel %vm309, %v316, 0.0
        %318 = vadd.xlane.f32.xlu0 %v317
        %v319 = vpop.xlane.xlu0 %318
        %v320 = vmul.f32 %v319, %v313
        %v321 = vadd.f32 %v320, 1e-05
        %v322 = vrsqrt.pop %v321
        %v323 = vmul.f32 %v315, %v322
        %v325 = vlaneseq
        %v326 = vshrl.u32 %v325, 7
        %v327 = vsub.s32 0, %v326
        %v328 = vrot.slane %v282, %v327
        %v330 = vmul.f32 %v323, %v328
        %v332 = vlaneseq
        %v333 = vshrl.u32 %v332, 7
        %v334 = vsub.s32 0, %v333
        %v335 = vrot.slane %v284, %v334
        %v337 = vadd.f32 %v330, %v335
        %v338 = vpack.c.bf16 %v337, %v337
        %v347 = vunpack.c.l.b16 %v293
        %v348 = vunpack.c.h.b16 %v293
        %v349 = vunpack.c.l.b16 %v295
        %v350 = vunpack.c.h.b16 %v295
        %v351 = vunpack.c.l.b16 %v297
        %v352 = vunpack.c.h.b16 %v297
        %v353 = vunpack.c.l.b16 %v299
        %v354 = vunpack.c.h.b16 %v299
        %v355 = vunpack.c.l.b16 %v301
        %v356 = vunpack.c.h.b16 %v301
        %v357 = vunpack.c.l.b16 %v303
        %v358 = vunpack.c.h.b16 %v303
        %v359 = vunpack.c.l.b16 %v305
        %v360 = vunpack.c.h.b16 %v305
        %v361 = vunpack.c.l.b16 %v307
        %v362 = vunpack.c.h.b16 %v307
        %v363 = vpack.c.b16 %v349, %v347
        %v364 = vpack.c.b16 %v350, %v348
        %v365 = vpack.c.b16 %v353, %v351
        %v366 = vpack.c.b16 %v354, %v352
        %v367 = vpack.c.b16 %v357, %v355
        %v368 = vpack.c.b16 %v358, %v356
        %v369 = vpack.c.b16 %v361, %v359
        %v370 = vpack.c.b16 %v362, %v360
        %v380 = vsel %vm309, %v338, 0
        %382 = vmatprep.subr.bf16.mxu0 %v364
        %383 = vmatpush1.bf16.msra.mxu0 %v363
        %384 = vmatprep.subr.bf16.mxu0 %v366
        %385 = vmatpush1.bf16.msra.mxu0 %v365
        %386 = vmatprep.subr.bf16.mxu0 %v368
        %387 = vmatpush1.bf16.msra.mxu0 %v367
        %388 = vmatprep.subr.bf16.mxu0 %v370
        %389 = vmatpush1.bf16.msra.mxu0 %v369
        %390 = vmatprep.subr.bf16.mxu0 0
        %391 = vmatpush1.bf16.msra.mxu0 0
        %392 = vmatprep.subr.bf16.mxu0 0
        %393 = vmatpush1.bf16.msra.mxu0 0
        %394 = vmatprep.subr.bf16.mxu0 0
        %395 = vmatpush1.bf16.msra.mxu0 0
        %396 = vmatprep.subr.bf16.mxu0 0
        %397 = vmatpush1.bf16.msra.mxu0 0
        %398 = vmatprep.subr.bf16.mxu0 0
        %399 = vmatpush1.bf16.msra.mxu0 0
        %400 = vmatprep.subr.bf16.mxu0 0
        %401 = vmatpush1.bf16.msra.mxu0 0
        %402 = vmatprep.subr.bf16.mxu0 0
        %403 = vmatpush1.bf16.msra.mxu0 0
        %404 = vmatprep.subr.bf16.mxu0 0
        %405 = vmatpush1.bf16.msra.mxu0 0
        %406 = vmatprep.subr.bf16.mxu0 0
        %407 = vmatpush1.bf16.msra.mxu0 0
        %408 = vmatprep.subr.bf16.mxu0 0
        %409 = vmatpush1.bf16.msra.mxu0 0
        %410 = vmatprep.subr.bf16.mxu0 0
        %411 = vmatpush1.bf16.msra.mxu0 0
        %412 = vmatprep.subr.bf16.mxu0 0
        %413 = vmatpush1.bf16.msra.mxu0 0
        %414 = vmatprep.mubr.bf16.mxu0 0
        %415 = vmatmul.mubr.bf16.gmra.mrb[0].mxu0 %v380
        %v416 = vpop.f32.mrb[0].mxu0
        %v417 = vadd.f32 0.0, %v416
        %v418 = vpop.f32.mrb[0].mxu0
        %v419 = vadd.f32 0.0, %v418
        %v420 = vpop.f32.mrb[0].mxu0
        %v421 = vpop.f32.mrb[0].mxu0
        %422 = vdwg.mxu0
        %v423 = vpack.c.bf16 %v417, %v417
        %v424 = vpack.c.bf16 %v419, %v419
        %426 = vrot.lane.b32.xlu0 %v423, 64
        %v427 = vpop.permute.xlu0 %426
        %vm428 = vcmask 130048
        %v430 = vsel %vm428, %v423, 0
        %v433 = vsel %vm428, %v427, 0
        %435 = vmatprep.subr.bf16.mxu0 0
        %436 = vmatpush1.bf16.xpose.msra.mxu0 %v433
        %437 = vmatprep.subr.bf16.mxu0 0
        %438 = vmatpush1.bf16.xpose.msra.mxu0 0
        %439 = vmatprep.subr.bf16.mxu0 0
        %440 = vmatpush1.bf16.xpose.msra.mxu0 0
        %441 = vmatprep.subr.bf16.mxu0 0
        %442 = vmatpush1.bf16.xpose.msra.mxu0 0
        %443 = vmatprep.subr.bf16.mxu0 0
        %444 = vmatpush1.bf16.xpose.msra.mxu0 0
        %445 = vmatprep.subr.bf16.mxu0 0
        %446 = vmatpush1.bf16.xpose.msra.mxu0 0
        %447 = vmatprep.subr.bf16.mxu0 0
        %448 = vmatpush1.bf16.xpose.msra.mxu0 0
        %449 = vmatprep.subr.bf16.mxu0 0
        %450 = vmatpush1.bf16.xpose.msra.mxu0 0
        %451 = vmatprep.subr.bf16.mxu0 0
        %452 = vmatpush1.bf16.xpose.msra.mxu0 0
        %453 = vmatprep.subr.bf16.mxu0 0
        %454 = vmatpush1.bf16.xpose.msra.mxu0 0
        %455 = vmatprep.subr.bf16.mxu0 0
        %456 = vmatpush1.bf16.xpose.msra.mxu0 0
        %457 = vmatprep.subr.bf16.mxu0 0
        %458 = vmatpush1.bf16.xpose.msra.mxu0 0
        %459 = vmatprep.subr.bf16.mxu0 0
        %460 = vmatpush1.bf16.xpose.msra.mxu0 0
        %461 = vmatprep.subr.bf16.mxu0 0
        %462 = vmatpush1.bf16.xpose.msra.mxu0 0
        %463 = vmatprep.subr.bf16.mxu0 0
        %464 = vmatpush1.bf16.xpose.msra.mxu0 0
        %465 = vmatprep.subr.bf16.mxu0 0
        %466 = vmatpush1.bf16.xpose.msra.mxu0 0
        %467 = vmatprep.mubr.bf16.mxu0 0
        %468 = vmatmul.mubr.bf16.gmra.mrb[0].mxu0 %v430
        %v469 = vpop.f32.mrb[0].mxu0
        %v470 = vadd.f32 0.0, %v469
        %v471 = vpop.f32.mrb[0].mxu0
        %v472 = vpop.f32.mrb[0].mxu0
        %v473 = vpop.f32.mrb[0].mxu0
        %474 = vdwg.mxu0
        %v475 = vmul.f32 %v470, 0.125
        %v476 = vadd.f32 %v475, %v281
        %vm477 = vcmask 64512
        %v478 = vsel %vm477, %v476, -inf
        %479 = vmax.xlane.f32.xlu0 %v478
        %v480 = vpop.xlane.xlu0 %479
        %v481 = vsub.f32 %v476, %v480
        %v482 = vmul.f32 %v481, 1.442695
        %v483 = vpow.pop %v482
        %v484 = vsel %vm477, %v483, 0.0
        %485 = vadd.xlane.f32.xlu0 %v484
        %v486 = vpop.xlane.xlu0 %485
        %v487 = vrcp.pop %v486
        %v488 = vmul.f32 %v483, %v487
        %v489 = vpack.c.bf16 %v488, %v488
        %v491 = vsel %vm477, %v489, 0
        %vm493 = vcmask 1043456
        %v495 = vsel %vm493, %v424, 0
        %497 = vmatprep.subr.bf16.mxu0 0
        %498 = vmatpush1.bf16.msra.mxu0 %v495
        %499 = vmatprep.subr.bf16.mxu0 0
        %500 = vmatpush1.bf16.msra.mxu0 0
        %501 = vmatprep.subr.bf16.mxu0 0
        %502 = vmatpush1.bf16.msra.mxu0 0
        %503 = vmatprep.subr.bf16.mxu0 0
        %504 = vmatpush1.bf16.msra.mxu0 0
        %505 = vmatprep.subr.bf16.mxu0 0
        %506 = vmatpush1.bf16.msra.mxu0 0
        %507 = vmatprep.subr.bf16.mxu0 0
        %508 = vmatpush1.bf16.msra.mxu0 0
        %509 = vmatprep.subr.bf16.mxu0 0
        %510 = vmatpush1.bf16.msra.mxu0 0
        %511 = vmatprep.subr.bf16.mxu0 0
        %512 = vmatpush1.bf16.msra.mxu0 0
        %513 = vmatprep.subr.bf16.mxu0 0
        %514 = vmatpush1.bf16.msra.mxu0 0
        %515 = vmatprep.subr.bf16.mxu0 0
        %516 = vmatpush1.bf16.msra.mxu0 0
        %517 = vmatprep.subr.bf16.mxu0 0
        %518 = vmatpush1.bf16.msra.mxu0 0
        %519 = vmatprep.subr.bf16.mxu0 0
        %520 = vmatpush1.bf16.msra.mxu0 0
        %521 = vmatprep.subr.bf16.mxu0 0
        %522 = vmatpush1.bf16.msra.mxu0 0
        %523 = vmatprep.subr.bf16.mxu0 0
        %524 = vmatpush1.bf16.msra.mxu0 0
        %525 = vmatprep.subr.bf16.mxu0 0
        %526 = vmatpush1.bf16.msra.mxu0 0
        %527 = vmatprep.subr.bf16.mxu0 0
        %528 = vmatpush1.bf16.msra.mxu0 0
        %529 = vmatprep.mubr.bf16.mxu0 0
        %530 = vmatmul.mubr.bf16.gmra.mrb[0].mxu0 %v491
        %v531 = vpop.f32.mrb[0].mxu0
        %v532 = vadd.f32 0.0, %v531
        %v533 = vpop.f32.mrb[0].mxu0
        %v534 = vpop.f32.mrb[0].mxu0
        %v535 = vpop.f32.mrb[0].mxu0
        %536 = vdwg.mxu0
        %537 = vrot.lane.b32.xlu0 %v423, 112
        %v538 = vpop.permute.xlu0 %537
        %539 = vrot.lane.b32.xlu0 %v423, 48
        %v540 = vpop.permute.xlu0 %539
        %v542 = vsel %vm428, %v538, 0
        %v545 = vsel %vm428, %v540, 0
        %547 = vmatprep.subr.bf16.mxu0 0
        %548 = vmatpush1.bf16.xpose.msra.mxu0 %v545
        %549 = vmatprep.subr.bf16.mxu0 0
        %550 = vmatpush1.bf16.xpose.msra.mxu0 0
        %551 = vmatprep.subr.bf16.mxu0 0
        %552 = vmatpush1.bf16.xpose.msra.mxu0 0
        %553 = vmatprep.subr.bf16.mxu0 0
        %554 = vmatpush1.bf16.xpose.msra.mxu0 0
        %555 = vmatprep.subr.bf16.mxu0 0
        %556 = vmatpush1.bf16.xpose.msra.mxu0 0
        %557 = vmatprep.subr.bf16.mxu0 0
        %558 = vmatpush1.bf16.xpose.msra.mxu0 0
        %559 = vmatprep.subr.bf16.mxu0 0
        %560 = vmatpush1.bf16.xpose.msra.mxu0 0
        %561 = vmatprep.subr.bf16.mxu0 0
        %562 = vmatpush1.bf16.xpose.msra.mxu0 0
        %563 = vmatprep.subr.bf16.mxu0 0
        %564 = vmatpush1.bf16.xpose.msra.mxu0 0
        %565 = vmatprep.subr.bf16.mxu0 0
        %566 = vmatpush1.bf16.xpose.msra.mxu0 0
        %567 = vmatprep.subr.bf16.mxu0 0
        %568 = vmatpush1.bf16.xpose.msra.mxu0 0
        %569 = vmatprep.subr.bf16.mxu0 0
        %570 = vmatpush1.bf16.xpose.msra.mxu0 0
        %571 = vmatprep.subr.bf16.mxu0 0
        %572 = vmatpush1.bf16.xpose.msra.mxu0 0
        %573 = vmatprep.subr.bf16.mxu0 0
        %574 = vmatpush1.bf16.xpose.msra.mxu0 0
        %575 = vmatprep.subr.bf16.mxu0 0
        %576 = vmatpush1.bf16.xpose.msra.mxu0 0
        %577 = vmatprep.subr.bf16.mxu0 0
        %578 = vmatpush1.bf16.xpose.msra.mxu0 0
        %579 = vmatprep.mubr.bf16.mxu0 0
        %580 = vmatmul.mubr.bf16.gmra.mrb[0].mxu0 %v542
        %v581 = vpop.f32.mrb[0].mxu0
        %v582 = vadd.f32 0.0, %v581
        %v583 = vpop.f32.mrb[0].mxu0
        %v584 = vpop.f32.mrb[0].mxu0
        %v585 = vpop.f32.mrb[0].mxu0
        %586 = vdwg.mxu0
        %v587 = vmul.f32 %v582, 0.125
        %v588 = vadd.f32 %v587, %v281
        %v589 = vsel %vm477, %v588, -inf
        %590 = vmax.xlane.f32.xlu0 %v589
        %v591 = vpop.xlane.xlu0 %590
        %v592 = vsub.f32 %v588, %v591
        %v593 = vmul.f32 %v592, 1.442695
        %v594 = vpow.pop %v593
        %v595 = vsel %vm477, %v594, 0.0
        %596 = vadd.xlane.f32.xlu0 %v595
        %v597 = vpop.xlane.xlu0 %596
        %v598 = vrcp.pop %v597
        %v599 = vmul.f32 %v594, %v598
        %v600 = vpack.c.bf16 %v599, %v599
        %602 = vrot.lane.b32.xlu0 %v424, 112
        %v603 = vpop.permute.xlu0 %602
        %v605 = vsel %vm477, %v600, 0
        %v608 = vsel %vm493, %v603, 0
        %610 = vmatprep.subr.bf16.mxu0 0
        %611 = vmatpush1.bf16.msra.mxu0 %v608
        %612 = vmatprep.subr.bf16.mxu0 0
        %613 = vmatpush1.bf16.msra.mxu0 0
        %614 = vmatprep.subr.bf16.mxu0 0
        %615 = vmatpush1.bf16.msra.mxu0 0
        %616 = vmatprep.subr.bf16.mxu0 0
        %617 = vmatpush1.bf16.msra.mxu0 0
        %618 = vmatprep.subr.bf16.mxu0 0
        %619 = vmatpush1.bf16.msra.mxu0 0
        %620 = vmatprep.subr.bf16.mxu0 0
        %621 = vmatpush1.bf16.msra.mxu0 0
        %622 = vmatprep.subr.bf16.mxu0 0
        %623 = vmatpush1.bf16.msra.mxu0 0
        %624 = vmatprep.subr.bf16.mxu0 0
        %625 = vmatpush1.bf16.msra.mxu0 0
        %626 = vmatprep.subr.bf16.mxu0 0
        %627 = vmatpush1.bf16.msra.mxu0 0
        %628 = vmatprep.subr.bf16.mxu0 0
        %629 = vmatpush1.bf16.msra.mxu0 0
        %630 = vmatprep.subr.bf16.mxu0 0
        %631 = vmatpush1.bf16.msra.mxu0 0
        %632 = vmatprep.subr.bf16.mxu0 0
        %633 = vmatpush1.bf16.msra.mxu0 0
        %634 = vmatprep.subr.bf16.mxu0 0
        %635 = vmatpush1.bf16.msra.mxu0 0
        %636 = vmatprep.subr.bf16.mxu0 0
        %637 = vmatpush1.bf16.msra.mxu0 0
        %638 = vmatprep.subr.bf16.mxu0 0
        %639 = vmatpush1.bf16.msra.mxu0 0
        %640 = vmatprep.subr.bf16.mxu0 0
        %641 = vmatpush1.bf16.msra.mxu0 0
        %642 = vmatprep.mubr.bf16.mxu0 0
        %643 = vmatmul.mubr.bf16.gmra.mrb[0].mxu0 %v605
        %v644 = vpop.f32.mrb[0].mxu0
        %v645 = vadd.f32 0.0, %v644
        %v646 = vpop.f32.mrb[0].mxu0
        %v647 = vpop.f32.mrb[0].mxu0
        %v648 = vpop.f32.mrb[0].mxu0
        %649 = vdwg.mxu0
        %650 = vrot.lane.b32.xlu0 %v423, 96
        %v651 = vpop.permute.xlu0 %650
        %652 = vrot.lane.b32.xlu0 %v423, 32
        %v653 = vpop.permute.xlu0 %652
        %v655 = vsel %vm428, %v651, 0
        %v658 = vsel %vm428, %v653, 0
        %660 = vmatprep.subr.bf16.mxu0 0
        %661 = vmatpush1.bf16.xpose.msra.mxu0 %v658
        %662 = vmatprep.subr.bf16.mxu0 0
        %663 = vmatpush1.bf16.xpose.msra.mxu0 0
        %664 = vmatprep.subr.bf16.mxu0 0
        %665 = vmatpush1.bf16.xpose.msra.mxu0 0
        %666 = vmatprep.subr.bf16.mxu0 0
        %667 = vmatpush1.bf16.xpose.msra.mxu0 0
        %668 = vmatprep.subr.bf16.mxu0 0
        %669 = vmatpush1.bf16.xpose.msra.mxu0 0
        %670 = vmatprep.subr.bf16.mxu0 0
        %671 = vmatpush1.bf16.xpose.msra.mxu0 0
        %672 = vmatprep.subr.bf16.mxu0 0
        %673 = vmatpush1.bf16.xpose.msra.mxu0 0
        %674 = vmatprep.subr.bf16.mxu0 0
        %675 = vmatpush1.bf16.xpose.msra.mxu0 0
        %676 = vmatprep.subr.bf16.mxu0 0
        %677 = vmatpush1.bf16.xpose.msra.mxu0 0
        %678 = vmatprep.subr.bf16.mxu0 0
        %679 = vmatpush1.bf16.xpose.msra.mxu0 0
        %680 = vmatprep.subr.bf16.mxu0 0
        %681 = vmatpush1.bf16.xpose.msra.mxu0 0
        %682 = vmatprep.subr.bf16.mxu0 0
        %683 = vmatpush1.bf16.xpose.msra.mxu0 0
        %684 = vmatprep.subr.bf16.mxu0 0
        %685 = vmatpush1.bf16.xpose.msra.mxu0 0
        %686 = vmatprep.subr.bf16.mxu0 0
        %687 = vmatpush1.bf16.xpose.msra.mxu0 0
        %688 = vmatprep.subr.bf16.mxu0 0
        %689 = vmatpush1.bf16.xpose.msra.mxu0 0
        %690 = vmatprep.subr.bf16.mxu0 0
        %691 = vmatpush1.bf16.xpose.msra.mxu0 0
        %692 = vmatprep.mubr.bf16.mxu0 0
        %693 = vmatmul.mubr.bf16.gmra.mrb[0].mxu0 %v655
        %v694 = vpop.f32.mrb[0].mxu0
        %v695 = vadd.f32 0.0, %v694
        %v696 = vpop.f32.mrb[0].mxu0
        %v697 = vpop.f32.mrb[0].mxu0
        %v698 = vpop.f32.mrb[0].mxu0
        %699 = vdwg.mxu0
        %v700 = vmul.f32 %v695, 0.125
        %v701 = vadd.f32 %v700, %v281
        %v702 = vsel %vm477, %v701, -inf
        %703 = vmax.xlane.f32.xlu0 %v702
        %v704 = vpop.xlane.xlu0 %703
        %v705 = vsub.f32 %v701, %v704
        %v706 = vmul.f32 %v705, 1.442695
        %v707 = vpow.pop %v706
        %v708 = vsel %vm477, %v707, 0.0
        %709 = vadd.xlane.f32.xlu0 %v708
        %v710 = vpop.xlane.xlu0 %709
        %v711 = vrcp.pop %v710
        %v712 = vmul.f32 %v707, %v711
        %v713 = vpack.c.bf16 %v712, %v712
        %714 = vrot.lane.b32.xlu0 %v424, 96
        %v715 = vpop.permute.xlu0 %714
        %v717 = vsel %vm477, %v713, 0
        %v720 = vsel %vm493, %v715, 0
        %722 = vmatprep.subr.bf16.mxu0 0
        %723 = vmatpush1.bf16.msra.mxu0 %v720
        %724 = vmatprep.subr.bf16.mxu0 0
        %725 = vmatpush1.bf16.msra.mxu0 0
        %726 = vmatprep.subr.bf16.mxu0 0
        %727 = vmatpush1.bf16.msra.mxu0 0
        %728 = vmatprep.subr.bf16.mxu0 0
        %729 = vmatpush1.bf16.msra.mxu0 0
        %730 = vmatprep.subr.bf16.mxu0 0
        %731 = vmatpush1.bf16.msra.mxu0 0
        %732 = vmatprep.subr.bf16.mxu0 0
        %733 = vmatpush1.bf16.msra.mxu0 0
        %734 = vmatprep.subr.bf16.mxu0 0
        %735 = vmatpush1.bf16.msra.mxu0 0
        %736 = vmatprep.subr.bf16.mxu0 0
        %737 = vmatpush1.bf16.msra.mxu0 0
        %738 = vmatprep.subr.bf16.mxu0 0
        %739 = vmatpush1.bf16.msra.mxu0 0
        %740 = vmatprep.subr.bf16.mxu0 0
        %741 = vmatpush1.bf16.msra.mxu0 0
        %742 = vmatprep.subr.bf16.mxu0 0
        %743 = vmatpush1.bf16.msra.mxu0 0
        %744 = vmatprep.subr.bf16.mxu0 0
        %745 = vmatpush1.bf16.msra.mxu0 0
        %746 = vmatprep.subr.bf16.mxu0 0
        %747 = vmatpush1.bf16.msra.mxu0 0
        %748 = vmatprep.subr.bf16.mxu0 0
        %749 = vmatpush1.bf16.msra.mxu0 0
        %750 = vmatprep.subr.bf16.mxu0 0
        %751 = vmatpush1.bf16.msra.mxu0 0
        %752 = vmatprep.subr.bf16.mxu0 0
        %753 = vmatpush1.bf16.msra.mxu0 0
        %754 = vmatprep.mubr.bf16.mxu0 0
        %755 = vmatmul.mubr.bf16.gmra.mrb[0].mxu0 %v717
        %v756 = vpop.f32.mrb[0].mxu0
        %v757 = vadd.f32 0.0, %v756
        %v758 = vpop.f32.mrb[0].mxu0
        %v759 = vpop.f32.mrb[0].mxu0
        %v760 = vpop.f32.mrb[0].mxu0
        %761 = vdwg.mxu0
        %762 = vrot.lane.b32.xlu0 %v423, 80
        %v763 = vpop.permute.xlu0 %762
        %764 = vrot.lane.b32.xlu0 %v423, 16
        %v765 = vpop.permute.xlu0 %764
        %v767 = vsel %vm428, %v763, 0
        %v770 = vsel %vm428, %v765, 0
        %772 = vmatprep.subr.bf16.mxu0 0
        %773 = vmatpush1.bf16.xpose.msra.mxu0 %v770
        %774 = vmatprep.subr.bf16.mxu0 0
        %775 = vmatpush1.bf16.xpose.msra.mxu0 0
        %776 = vmatprep.subr.bf16.mxu0 0
        %777 = vmatpush1.bf16.xpose.msra.mxu0 0
        %778 = vmatprep.subr.bf16.mxu0 0
        %779 = vmatpush1.bf16.xpose.msra.mxu0 0
        %780 = vmatprep.subr.bf16.mxu0 0
        %781 = vmatpush1.bf16.xpose.msra.mxu0 0
        %782 = vmatprep.subr.bf16.mxu0 0
        %783 = vmatpush1.bf16.xpose.msra.mxu0 0
        %784 = vmatprep.subr.bf16.mxu0 0
        %785 = vmatpush1.bf16.xpose.msra.mxu0 0
        %786 = vmatprep.subr.bf16.mxu0 0
        %787 = vmatpush1.bf16.xpose.msra.mxu0 0
        %788 = vmatprep.subr.bf16.mxu0 0
        %789 = vmatpush1.bf16.xpose.msra.mxu0 0
        %790 = vmatprep.subr.bf16.mxu0 0
        %791 = vmatpush1.bf16.xpose.msra.mxu0 0
        %792 = vmatprep.subr.bf16.mxu0 0
        %793 = vmatpush1.bf16.xpose.msra.mxu0 0
        %794 = vmatprep.subr.bf16.mxu0 0
        %795 = vmatpush1.bf16.xpose.msra.mxu0 0
        %796 = vmatprep.subr.bf16.mxu0 0
        %797 = vmatpush1.bf16.xpose.msra.mxu0 0
        %798 = vmatprep.subr.bf16.mxu0 0
        %799 = vmatpush1.bf16.xpose.msra.mxu0 0
        %800 = vmatprep.subr.bf16.mxu0 0
        %801 = vmatpush1.bf16.xpose.msra.mxu0 0
        %802 = vmatprep.subr.bf16.mxu0 0
        %803 = vmatpush1.bf16.xpose.msra.mxu0 0
        %804 = vmatprep.mubr.bf16.mxu0 0
        %805 = vmatmul.mubr.bf16.gmra.mrb[0].mxu0 %v767
        %v806 = vpop.f32.mrb[0].mxu0
        %v807 = vadd.f32 0.0, %v806
        %v808 = vpop.f32.mrb[0].mxu0
        %v809 = vpop.f32.mrb[0].mxu0
        %v810 = vpop.f32.mrb[0].mxu0
        %811 = vdwg.mxu0
        %v812 = vmul.f32 %v807, 0.125
        %v813 = vadd.f32 %v812, %v281
        %v814 = vsel %vm477, %v813, -inf
        %815 = vmax.xlane.f32.xlu0 %v814
        %v816 = vpop.xlane.xlu0 %815
        %v817 = vsub.f32 %v813, %v816
        %v818 = vmul.f32 %v817, 1.442695
        %v819 = vpow.pop %v818
        %v820 = vsel %vm477, %v819, 0.0
        %821 = vadd.xlane.f32.xlu0 %v820
        %v822 = vpop.xlane.xlu0 %821
        %v823 = vrcp.pop %v822
        %v824 = vmul.f32 %v819, %v823
        %v825 = vpack.c.bf16 %v824, %v824
        %826 = vrot.lane.b32.xlu0 %v424, 80
        %v827 = vpop.permute.xlu0 %826
        %v829 = vsel %vm477, %v825, 0
        %v832 = vsel %vm493, %v827, 0
        %834 = vmatprep.subr.bf16.mxu0 0
        %835 = vmatpush1.bf16.msra.mxu0 %v832
        %836 = vmatprep.subr.bf16.mxu0 0
        %837 = vmatpush1.bf16.msra.mxu0 0
        %838 = vmatprep.subr.bf16.mxu0 0
        %839 = vmatpush1.bf16.msra.mxu0 0
        %840 = vmatprep.subr.bf16.mxu0 0
        %841 = vmatpush1.bf16.msra.mxu0 0
        %842 = vmatprep.subr.bf16.mxu0 0
        %843 = vmatpush1.bf16.msra.mxu0 0
        %844 = vmatprep.subr.bf16.mxu0 0
        %845 = vmatpush1.bf16.msra.mxu0 0
        %846 = vmatprep.subr.bf16.mxu0 0
        %847 = vmatpush1.bf16.msra.mxu0 0
        %848 = vmatprep.subr.bf16.mxu0 0
        %849 = vmatpush1.bf16.msra.mxu0 0
        %850 = vmatprep.subr.bf16.mxu0 0
        %851 = vmatpush1.bf16.msra.mxu0 0
        %852 = vmatprep.subr.bf16.mxu0 0
        %853 = vmatpush1.bf16.msra.mxu0 0
        %854 = vmatprep.subr.bf16.mxu0 0
        %855 = vmatpush1.bf16.msra.mxu0 0
        %856 = vmatprep.subr.bf16.mxu0 0
        %857 = vmatpush1.bf16.msra.mxu0 0
        %858 = vmatprep.subr.bf16.mxu0 0
        %859 = vmatpush1.bf16.msra.mxu0 0
        %860 = vmatprep.subr.bf16.mxu0 0
        %861 = vmatpush1.bf16.msra.mxu0 0
        %862 = vmatprep.subr.bf16.mxu0 0
        %863 = vmatpush1.bf16.msra.mxu0 0
        %864 = vmatprep.subr.bf16.mxu0 0
        %865 = vmatpush1.bf16.msra.mxu0 0
        %866 = vmatprep.mubr.bf16.mxu0 0
        %867 = vmatmul.mubr.bf16.gmra.mrb[0].mxu0 %v829
        %v868 = vpop.f32.mrb[0].mxu0
        %v869 = vadd.f32 0.0, %v868
        %v870 = vpop.f32.mrb[0].mxu0
        %v871 = vpop.f32.mrb[0].mxu0
        %v872 = vpop.f32.mrb[0].mxu0
        %873 = vdwg.mxu0
        %875 = vrot.lane.b32.xlu0 %v645, 16
        %v876 = vpop.permute.xlu0 %875
        %879 = vrot.lane.b32.xlu0 %v757, 32
        %v880 = vpop.permute.xlu0 %879
        %883 = vrot.lane.b32.xlu0 %v869, 48
        %v884 = vpop.permute.xlu0 %883
        %v886 = vsel %vm428, %v532, %v876
        %vm887 = vcmask 261120
        %v888 = vsel %vm887, %v886, %v880
        %vm889 = vcmask 392192
        %v890 = vsel %vm889, %v888, %v884
        %v891 = vpack.c.bf16 %v890, %v890
        %v893 = vlaneseq
        %v894 = vshrl.u32 %v893, 7
        %v895 = vsub.s32 0, %v894
        %v896 = vrot.slane %v290, %v895
        %898 = vrot.lane.b32.xlu0 %v364, 64
        %v899 = vpop.permute.xlu0 %898
        %900 = vrot.lane.b32.xlu0 %v366, 64
        %v901 = vpop.permute.xlu0 %900
        %902 = vrot.lane.b32.xlu0 %v368, 64
        %v903 = vpop.permute.xlu0 %902
        %904 = vrot.lane.b32.xlu0 %v370, 64
        %v905 = vpop.permute.xlu0 %904
        %v911 = vsel %vm309, %v891, 0
        %913 = vmatprep.subr.bf16.mxu0 0
        %914 = vmatpush1.bf16.msra.mxu0 %v899
        %915 = vmatprep.subr.bf16.mxu0 0
        %916 = vmatpush1.bf16.msra.mxu0 %v901
        %917 = vmatprep.subr.bf16.mxu0 0
        %918 = vmatpush1.bf16.msra.mxu0 %v903
        %919 = vmatprep.subr.bf16.mxu0 0
        %920 = vmatpush1.bf16.msra.mxu0 %v905
        %921 = vmatprep.subr.bf16.mxu0 0
        %922 = vmatpush1.bf16.msra.mxu0 0
        %923 = vmatprep.subr.bf16.mxu0 0
        %924 = vmatpush1.bf16.msra.mxu0 0
        %925 = vmatprep.subr.bf16.mxu0 0
        %926 = vmatpush1.bf16.msra.mxu0 0
        %927 = vmatprep.subr.bf16.mxu0 0
        %928 = vmatpush1.bf16.msra.mxu0 0
        %929 = vmatprep.subr.bf16.mxu0 0
        %930 = vmatpush1.bf16.msra.mxu0 0
        %931 = vmatprep.subr.bf16.mxu0 0
        %932 = vmatpush1.bf16.msra.mxu0 0
        %933 = vmatprep.subr.bf16.mxu0 0
        %934 = vmatpush1.bf16.msra.mxu0 0
        %935 = vmatprep.subr.bf16.mxu0 0
        %936 = vmatpush1.bf16.msra.mxu0 0
        %937 = vmatprep.subr.bf16.mxu0 0
        %938 = vmatpush1.bf16.msra.mxu0 0
        %939 = vmatprep.subr.bf16.mxu0 0
        %940 = vmatpush1.bf16.msra.mxu0 0
        %941 = vmatprep.subr.bf16.mxu0 0
        %942 = vmatpush1.bf16.msra.mxu0 0
        %943 = vmatprep.subr.bf16.mxu0 0
        %944 = vmatpush1.bf16.msra.mxu0 0
        %945 = vmatprep.mubr.bf16.mxu0 0
        %946 = vmatmul.mubr.bf16.gmra.mrb[0].mxu0 %v911
        %v947 = vpop.f32.mrb[0].mxu0
        %v948 = vadd.f32 %v896, %v947
        %v949 = vpop.f32.mrb[0].mxu0
        %v950 = vpop.f32.mrb[0].mxu0
        %v951 = vpop.f32.mrb[0].mxu0
        %952 = vdwg.mxu0
        %v953 = vadd.f32 %v275, %v948
        %v954 = vsel %vm309, %v953, 0.0
        %955 = vadd.xlane.f32.xlu0 %v954
        %v956 = vpop.xlane.xlu0 %955
        %v957 = vmul.f32 %v956, %v313
        %v958 = vsub.f32 %v953, %v957
        %v959 = vmul.f32 %v958, %v958
        %v960 = vsel %vm309, %v959, 0.0
        %961 = vadd.xlane.f32.xlu0 %v960
        %v962 = vpop.xlane.xlu0 %961
        %v963 = vmul.f32 %v962, %v313
        %v964 = vadd.f32 %v963, 1e-05
        %v965 = vrsqrt.pop %v964
        %v966 = vmul.f32 %v958, %v965
        %v968 = vlaneseq
        %v969 = vshrl.u32 %v968, 7
        %v970 = vsub.s32 0, %v969
        %v971 = vrot.slane %v286, %v970
        %v973 = vmul.f32 %v966, %v971
        %v975 = vlaneseq
        %v976 = vshrl.u32 %v975, 7
        %v977 = vsub.s32 0, %v976
        %v978 = vrot.slane %v288, %v977
        %v980 = vadd.f32 %v973, %v978
        %v981 = vpack.c.bf16 %v980, %v980
        %v982 = vld [vmem:[%s5] sm:$0x3]
        %v984 = vlaneseq
        %v985 = vshrl.u32 %v984, 7
        %v986 = vsub.s32 0, %v985
        %v987 = vrot.slane %v982, %v986
        %v988 = vlaneseq
        %v989 = vshrl.u32 %v988, 7
        %v990 = vsub.s32 1, %v989
        %v991 = vrot.slane %v982, %v990
        %v1002 = vunpack.c.l.b16 %v294
        %v1003 = vunpack.c.h.b16 %v294
        %v1004 = vunpack.c.l.b16 %v296
        %v1005 = vunpack.c.h.b16 %v296
        %v1006 = vunpack.c.l.b16 %v298
        %v1007 = vunpack.c.h.b16 %v298
        %v1008 = vunpack.c.l.b16 %v300
        %v1009 = vunpack.c.h.b16 %v300
        %v1010 = vunpack.c.l.b16 %v302
        %v1011 = vunpack.c.h.b16 %v302
        %v1012 = vunpack.c.l.b16 %v304
        %v1013 = vunpack.c.h.b16 %v304
        %v1014 = vunpack.c.l.b16 %v306
        %v1015 = vunpack.c.h.b16 %v306
        %v1016 = vunpack.c.l.b16 %v308
        %v1017 = vunpack.c.h.b16 %v308
        %v1018 = vpack.c.b16 %v1004, %v1002
        %v1019 = vpack.c.b16 %v1005, %v1003
        %v1020 = vpack.c.b16 %v1008, %v1006
        %v1021 = vpack.c.b16 %v1009, %v1007
        %v1022 = vpack.c.b16 %v1012, %v1010
        %v1023 = vpack.c.b16 %v1013, %v1011
        %v1024 = vpack.c.b16 %v1016, %v1014
        %v1025 = vpack.c.b16 %v1017, %v1015
        %v1035 = vsel %vm309, %v981, 0
        %1037 = vmatprep.subr.bf16.mxu0 %v1019
        %1038 = vmatpush1.bf16.msra.mxu0 %v1018
        %1039 = vmatprep.subr.bf16.mxu0 %v1021
        %1040 = vmatpush1.bf16.msra.mxu0 %v1020
        %1041 = vmatprep.subr.bf16.mxu0 %v1023
        %1042 = vmatpush1.bf16.msra.mxu0 %v1022
        %1043 = vmatprep.subr.bf16.mxu0 %v1025
        %1044 = vmatpush1.bf16.msra.mxu0 %v1024
        %1045 = vmatprep.subr.bf16.mxu0 0
        %1046 = vmatpush1.bf16.msra.mxu0 0
        %1047 = vmatprep.subr.bf16.mxu0 0
        %1048 = vmatpush1.bf16.msra.mxu0 0
        %1049 = vmatprep.subr.bf16.mxu0 0
        %1050 = vmatpush1.bf16.msra.mxu0 0
        %1051 = vmatprep.subr.bf16.mxu0 0
        %1052 = vmatpush1.bf16.msra.mxu0 0
        %1053 = vmatprep.subr.bf16.mxu0 0
        %1054 = vmatpush1.bf16.msra.mxu0 0
        %1055 = vmatprep.subr.bf16.mxu0 0
        %1056 = vmatpush1.bf16.msra.mxu0 0
        %1057 = vmatprep.subr.bf16.mxu0 0
        %1058 = vmatpush1.bf16.msra.mxu0 0
        %1059 = vmatprep.subr.bf16.mxu0 0
        %1060 = vmatpush1.bf16.msra.mxu0 0
        %1061 = vmatprep.subr.bf16.mxu0 0
        %1062 = vmatpush1.bf16.msra.mxu0 0
        %1063 = vmatprep.subr.bf16.mxu0 0
        %1064 = vmatpush1.bf16.msra.mxu0 0
        %1065 = vmatprep.subr.bf16.mxu0 0
        %1066 = vmatpush1.bf16.msra.mxu0 0
        %1067 = vmatprep.subr.bf16.mxu0 0
        %1068 = vmatpush1.bf16.msra.mxu0 0
        %1069 = vmatprep.mubr.bf16.mxu0 0
        %1070 = vmatmul.mubr.bf16.gmra.mrb[0].mxu0 %v1035
        %v1071 = vpop.f32.mrb[0].mxu0
        %v1072 = vadd.f32 %v987, %v1071
        %v1073 = vpop.f32.mrb[0].mxu0
        %v1074 = vadd.f32 %v991, %v1073
        %v1075 = vpop.f32.mrb[0].mxu0
        %v1076 = vpop.f32.mrb[0].mxu0
        %1077 = vdwg.mxu0
        %v1078 = vmax.f32 %v1072, 0.0
        %v1079 = vmax.f32 %v1074, 0.0
        %v1080 = vpack.c.bf16 %v1078, %v1078
        %v1081 = vpack.c.bf16 %v1079, %v1079
        %v1082 = vld [vmem:[%s2] sm:$0xf]
        %v1083 = vld [vmem:[%s2 + $0x4] sm:$0xf]
        %v1084 = vld [vmem:[%s2 + $0x8] sm:$0xf]
        %v1085 = vld [vmem:[%s2 + $0xc] sm:$0xf]
        %v1086 = vld [vmem:[%s2 + $0x10] sm:$0xf]
        %v1087 = vld [vmem:[%s2 + $0x14] sm:$0xf]
        %v1088 = vld [vmem:[%s2 + $0x18] sm:$0xf]
        %v1089 = vld [vmem:[%s2 + $0x1c] sm:$0xf]
        %v1090 = vld [vmem:[%s2 + $0x20] sm:$0xf]
        %v1091 = vld [vmem:[%s2 + $0x24] sm:$0xf]
        %v1092 = vld [vmem:[%s2 + $0x28] sm:$0xf]
        %v1093 = vld [vmem:[%s2 + $0x2c] sm:$0xf]
        %v1094 = vld [vmem:[%s2 + $0x30] sm:$0xf]
        %v1095 = vld [vmem:[%s2 + $0x34] sm:$0xf]
        %v1096 = vld [vmem:[%s2 + $0x38] sm:$0xf]
        %v1097 = vld [vmem:[%s2 + $0x3c] sm:$0xf]
        %v1098 = vld [vmem:[%s2 + $0x40] sm:$0xf]
        %v1099 = vld [vmem:[%s2 + $0x44] sm:$0xf]
        %v1100 = vld [vmem:[%s2 + $0x48] sm:$0xf]
        %v1101 = vld [vmem:[%s2 + $0x4c] sm:$0xf]
        %v1102 = vld [vmem:[%s2 + $0x50] sm:$0xf]
        %v1103 = vld [vmem:[%s2 + $0x54] sm:$0xf]
        %v1104 = vld [vmem:[%s2 + $0x58] sm:$0xf]
        %v1105 = vld [vmem:[%s2 + $0x5c] sm:$0xf]
        %v1106 = vld [vmem:[%s2 + $0x60] sm:$0xf]
        %v1107 = vld [vmem:[%s2 + $0x64] sm:$0xf]
        %v1108 = vld [vmem:[%s2 + $0x68] sm:$0xf]
        %v1109 = vld [vmem:[%s2 + $0x6c] sm:$0xf]
        %v1110 = vld [vmem:[%s2 + $0x70] sm:$0xf]
        %v1111 = vld [vmem:[%s2 + $0x74] sm:$0xf]
        %v1112 = vld [vmem:[%s2 + $0x78] sm:$0xf]
        %v1113 = vld [vmem:[%s2 + $0x7c] sm:$0xf]
        %v1146 = vunpack.c.l.b16 %v1082
        %v1147 = vunpack.c.l.b16 %v1083
        %v1148 = vunpack.c.l.b16 %v1084
        %v1149 = vunpack.c.l.b16 %v1085
        %v1150 = vunpack.c.l.b16 %v1086
        %v1151 = vunpack.c.l.b16 %v1087
        %v1152 = vunpack.c.l.b16 %v1088
        %v1153 = vunpack.c.l.b16 %v1089
        %v1154 = vunpack.c.l.b16 %v1090
        %v1155 = vunpack.c.l.b16 %v1091
        %v1156 = vunpack.c.l.b16 %v1092
        %v1157 = vunpack.c.l.b16 %v1093
        %v1158 = vunpack.c.l.b16 %v1094
        %v1159 = vunpack.c.l.b16 %v1095
        %v1160 = vunpack.c.l.b16 %v1096
        %v1161 = vunpack.c.l.b16 %v1097
        %v1162 = vunpack.c.l.b16 %v1098
        %v1163 = vunpack.c.l.b16 %v1099
        %v1164 = vunpack.c.l.b16 %v1100
        %v1165 = vunpack.c.l.b16 %v1101
        %v1166 = vunpack.c.l.b16 %v1102
        %v1167 = vunpack.c.l.b16 %v1103
        %v1168 = vunpack.c.l.b16 %v1104
        %v1169 = vunpack.c.l.b16 %v1105
        %v1170 = vunpack.c.l.b16 %v1106
        %v1171 = vunpack.c.l.b16 %v1107
        %v1172 = vunpack.c.l.b16 %v1108
        %v1173 = vunpack.c.l.b16 %v1109
        %v1174 = vunpack.c.l.b16 %v1110
        %v1175 = vunpack.c.l.b16 %v1111
        %v1176 = vunpack.c.l.b16 %v1112
        %v1177 = vunpack.c.l.b16 %v1113
        %v1178 = vpack.c.b16 %v1147, %v1146
        %v1179 = vpack.c.b16 %v1149, %v1148
        %v1180 = vpack.c.b16 %v1151, %v1150
        %v1181 = vpack.c.b16 %v1153, %v1152
        %v1182 = vpack.c.b16 %v1155, %v1154
        %v1183 = vpack.c.b16 %v1157, %v1156
        %v1184 = vpack.c.b16 %v1159, %v1158
        %v1185 = vpack.c.b16 %v1161, %v1160
        %v1186 = vpack.c.b16 %v1163, %v1162
        %v1187 = vpack.c.b16 %v1165, %v1164
        %v1188 = vpack.c.b16 %v1167, %v1166
        %v1189 = vpack.c.b16 %v1169, %v1168
        %v1190 = vpack.c.b16 %v1171, %v1170
        %v1191 = vpack.c.b16 %v1173, %v1172
        %v1192 = vpack.c.b16 %v1175, %v1174
        %v1193 = vpack.c.b16 %v1177, %v1176
        %1210 = vmatprep.subr.bf16.mxu0 0
        %1211 = vmatpush1.bf16.msra.mxu0 %v1178
        %1212 = vmatprep.subr.bf16.mxu0 0
        %1213 = vmatpush1.bf16.msra.mxu0 %v1179
        %1214 = vmatprep.subr.bf16.mxu0 0
        %1215 = vmatpush1.bf16.msra.mxu0 %v1180
        %1216 = vmatprep.subr.bf16.mxu0 0
        %1217 = vmatpush1.bf16.msra.mxu0 %v1181
        %1218 = vmatprep.subr.bf16.mxu0 0
        %1219 = vmatpush1.bf16.msra.mxu0 %v1182
        %1220 = vmatprep.subr.bf16.mxu0 0
        %1221 = vmatpush1.bf16.msra.mxu0 %v1183
        %1222 = vmatprep.subr.bf16.mxu0 0
        %1223 = vmatpush1.bf16.msra.mxu0 %v1184
        %1224 = vmatprep.subr.bf16.mxu0 0
        %1225 = vmatpush1.bf16.msra.mxu0 %v1185
        %1226 = vmatprep.subr.bf16.mxu0 0
        %1227 = vmatpush1.bf16.msra.mxu0 %v1186
        %1228 = vmatprep.subr.bf16.mxu0 0
        %1229 = vmatpush1.bf16.msra.mxu0 %v1187
        %1230 = vmatprep.subr.bf16.mxu0 0
        %1231 = vmatpush1.bf16.msra.mxu0 %v1188
        %1232 = vmatprep.subr.bf16.mxu0 0
        %1233 = vmatpush1.bf16.msra.mxu0 %v1189
        %1234 = vmatprep.subr.bf16.mxu0 0
        %1235 = vmatpush1.bf16.msra.mxu0 %v1190
        %1236 = vmatprep.subr.bf16.mxu0 0
        %1237 = vmatpush1.bf16.msra.mxu0 %v1191
        %1238 = vmatprep.subr.bf16.mxu0 0
        %1239 = vmatpush1.bf16.msra.mxu0 %v1192
        %1240 = vmatprep.subr.bf16.mxu0 0
        %1241 = vmatpush1.bf16.msra.mxu0 %v1193
        %1242 = vmatprep.mubr.bf16.mxu0 %v1081
        %1243 = vmatmul.mubr.bf16.gmra.mrb[0].mxu0 %v1080
        %v1244 = vpop.f32.mrb[0].mxu0
        %v1245 = vadd.f32 0.0, %v1244
        %v1246 = vpop.f32.mrb[0].mxu0
        %v1247 = vpop.f32.mrb[0].mxu0
        %v1248 = vpop.f32.mrb[0].mxu0
        %1249 = vdwg.mxu0
        %v1250 = vadd.f32 %v953, %v1245
        %v1252 = vlaneseq
        %v1253 = vshrl.u32 %v1252, 7
        %v1254 = vsub.s32 0, %v1253
        %v1255 = vrot.slane %v292, %v1254
        %v1257 = vadd.f32 %v1250, %v1255
        %s1258 = scalar_lea.vmem %s4, 6
        %v1259 = vld [vmem:[%s1258] sm:$0x1]
        %s1260 = scalar_lea.vmem %s4, 7
        %v1261 = vld [vmem:[%s1260] sm:$0x1]
        %s1262 = scalar_lea.vmem %s4, 8
        %v1263 = vld [vmem:[%s1262] sm:$0x1]
        %s1264 = scalar_lea.vmem %s4, 9
        %v1265 = vld [vmem:[%s1264] sm:$0x1]
        %s1266 = scalar_lea.vmem %s4, 10
        %v1267 = vld [vmem:[%s1266] sm:$0x1]
        %s1268 = scalar_lea.vmem %s4, 11
        %v1269 = vld [vmem:[%s1268] sm:$0x1]
        %s1270 = scalar_lea.vmem %s1, 128
        %v1271 = vld [vmem:[%s1270] sm:$0xff]
        %v1272 = vld [vmem:[%s1270 + $0x8] sm:$0xff]
        %v1273 = vld [vmem:[%s1270 + $0x10] sm:$0xff]
        %v1274 = vld [vmem:[%s1270 + $0x18] sm:$0xff]
        %v1275 = vld [vmem:[%s1270 + $0x20] sm:$0xff]
        %v1276 = vld [vmem:[%s1270 + $0x28] sm:$0xff]
        %v1277 = vld [vmem:[%s1270 + $0x30] sm:$0xff]
        %v1278 = vld [vmem:[%s1270 + $0x38] sm:$0xff]
        %v1279 = vld [vmem:[%s1270 + $0x40] sm:$0xff]
        %v1280 = vld [vmem:[%s1270 + $0x48] sm:$0xff]
        %v1281 = vld [vmem:[%s1270 + $0x50] sm:$0xff]
        %v1282 = vld [vmem:[%s1270 + $0x58] sm:$0xff]
        %v1283 = vld [vmem:[%s1270 + $0x60] sm:$0xff]
        %v1284 = vld [vmem:[%s1270 + $0x68] sm:$0xff]
        %v1285 = vld [vmem:[%s1270 + $0x70] sm:$0xff]
        %v1286 = vld [vmem:[%s1270 + $0x78] sm:$0xff]
        %v1287 = vsel %vm309, %v1257, 0.0
        %1288 = vadd.xlane.f32.xlu0 %v1287
        %v1289 = vpop.xlane.xlu0 %1288
        %v1290 = vmul.f32 %v1289, %v313
        %v1291 = vsub.f32 %v1257, %v1290
        %v1292 = vmul.f32 %v1291, %v1291
        %v1293 = vsel %vm309, %v1292, 0.0
        %1294 = vadd.xlane.f32.xlu0 %v1293
        %v1295 = vpop.xlane.xlu0 %1294
        %v1296 = vmul.f32 %v1295, %v313
        %v1297 = vadd.f32 %v1296, 1e-05
        %v1298 = vrsqrt.pop %v1297
        %v1299 = vmul.f32 %v1291, %v1298
        %v1301 = vlaneseq
        %v1302 = vshrl.u32 %v1301, 7
        %v1303 = vsub.s32 0, %v1302
        %v1304 = vrot.slane %v1259, %v1303
        %v1306 = vmul.f32 %v1299, %v1304
        %v1308 = vlaneseq
        %v1309 = vshrl.u32 %v1308, 7
        %v1310 = vsub.s32 0, %v1309
        %v1311 = vrot.slane %v1261, %v1310
        %v1313 = vadd.f32 %v1306, %v1311
        %v1314 = vpack.c.bf16 %v1313, %v1313
        %v1323 = vunpack.c.l.b16 %v1271
        %v1324 = vunpack.c.h.b16 %v1271
        %v1325 = vunpack.c.l.b16 %v1273
        %v1326 = vunpack.c.h.b16 %v1273
        %v1327 = vunpack.c.l.b16 %v1275
        %v1328 = vunpack.c.h.b16 %v1275
        %v1329 = vunpack.c.l.b16 %v1277
        %v1330 = vunpack.c.h.b16 %v1277
        %v1331 = vunpack.c.l.b16 %v1279
        %v1332 = vunpack.c.h.b16 %v1279
        %v1333 = vunpack.c.l.b16 %v1281
        %v1334 = vunpack.c.h.b16 %v1281
        %v1335 = vunpack.c.l.b16 %v1283
        %v1336 = vunpack.c.h.b16 %v1283
        %v1337 = vunpack.c.l.b16 %v1285
        %v1338 = vunpack.c.h.b16 %v1285
        %v1339 = vpack.c.b16 %v1325, %v1323
        %v1340 = vpack.c.b16 %v1326, %v1324
        %v1341 = vpack.c.b16 %v1329, %v1327
        %v1342 = vpack.c.b16 %v1330, %v1328
        %v1343 = vpack.c.b16 %v1333, %v1331
        %v1344 = vpack.c.b16 %v1334, %v1332
        %v1345 = vpack.c.b16 %v1337, %v1335
        %v1346 = vpack.c.b16 %v1338, %v1336
        %v1356 = vsel %vm309, %v1314, 0
        %1358 = vmatprep.subr.bf16.mxu0 %v1340
        %1359 = vmatpush1.bf16.msra.mxu0 %v1339
        %1360 = vmatprep.subr.bf16.mxu0 %v1342
        %1361 = vmatpush1.bf16.msra.mxu0 %v1341
        %1362 = vmatprep.subr.bf16.mxu0 %v1344
        %1363 = vmatpush1.bf16.msra.mxu0 %v1343
        %1364 = vmatprep.subr.bf16.mxu0 %v1346
        %1365 = vmatpush1.bf16.msra.mxu0 %v1345
        %1366 = vmatprep.subr.bf16.mxu0 0
        %1367 = vmatpush1.bf16.msra.mxu0 0
        %1368 = vmatprep.subr.bf16.mxu0 0
        %1369 = vmatpush1.bf16.msra.mxu0 0
        %1370 = vmatprep.subr.bf16.mxu0 0
        %1371 = vmatpush1.bf16.msra.mxu0 0
        %1372 = vmatprep.subr.bf16.mxu0 0
        %1373 = vmatpush1.bf16.msra.mxu0 0
        %1374 = vmatprep.subr.bf16.mxu0 0
        %1375 = vmatpush1.bf16.msra.mxu0 0
        %1376 = vmatprep.subr.bf16.mxu0 0
        %1377 = vmatpush1.bf16.msra.mxu0 0
        %1378 = vmatprep.subr.bf16.mxu0 0
        %1379 = vmatpush1.bf16.msra.mxu0 0
        %1380 = vmatprep.subr.bf16.mxu0 0
        %1381 = vmatpush1.bf16.msra.mxu0 0
        %1382 = vmatprep.subr.bf16.mxu0 0
        %1383 = vmatpush1.bf16.msra.mxu0 0
        %1384 = vmatprep.subr.bf16.mxu0 0
        %1385 = vmatpush1.bf16.msra.mxu0 0
        %1386 = vmatprep.subr.bf16.mxu0 0
        %1387 = vmatpush1.bf16.msra.mxu0 0
        %1388 = vmatprep.subr.bf16.mxu0 0
        %1389 = vmatpush1.bf16.msra.mxu0 0
        %1390 = vmatprep.mubr.bf16.mxu0 0
        %1391 = vmatmul.mubr.bf16.gmra.mrb[0].mxu0 %v1356
        %v1392 = vpop.f32.mrb[0].mxu0
        %v1393 = vadd.f32 0.0, %v1392
        %v1394 = vpop.f32.mrb[0].mxu0
        %v1395 = vadd.f32 0.0, %v1394
        %v1396 = vpop.f32.mrb[0].mxu0
        %v1397 = vpop.f32.mrb[0].mxu0
        %1398 = vdwg.mxu0
        %v1399 = vpack.c.bf16 %v1393, %v1393
        %v1400 = vpack.c.bf16 %v1395, %v1395
        %1402 = vrot.lane.b32.xlu0 %v1399, 64
        %v1403 = vpop.permute.xlu0 %1402
        %v1405 = vsel %vm428, %v1399, 0
        %v1408 = vsel %vm428, %v1403, 0
        %1410 = vmatprep.subr.bf16.mxu0 0
        %1411 = vmatpush1.bf16.xpose.msra.mxu0 %v1408
        %1412 = vmatprep.subr.bf16.mxu0 0
        %1413 = vmatpush1.bf16.xpose.msra.mxu0 0
        %1414 = vmatprep.subr.bf16.mxu0 0
        %1415 = vmatpush1.bf16.xpose.msra.mxu0 0
        %1416 = vmatprep.subr.bf16.mxu0 0
        %1417 = vmatpush1.bf16.xpose.msra.mxu0 0
        %1418 = vmatprep.subr.bf16.mxu0 0
        %1419 = vmatpush1.bf16.xpose.msra.mxu0 0
        %1420 = vmatprep.subr.bf16.mxu0 0
        %1421 = vmatpush1.bf16.xpose.msra.mxu0 0
        %1422 = vmatprep.subr.bf16.mxu0 0
        %1423 = vmatpush1.bf16.xpose.msra.mxu0 0
        %1424 = vmatprep.subr.bf16.mxu0 0
        %1425 = vmatpush1.bf16.xpose.msra.mxu0 0
        %1426 = vmatprep.subr.bf16.mxu0 0
        %1427 = vmatpush1.bf16.xpose.msra.mxu0 0
        %1428 = vmatprep.subr.bf16.mxu0 0
        %1429 = vmatpush1.bf16.xpose.msra.mxu0 0
        %1430 = vmatprep.subr.bf16.mxu0 0
        %1431 = vmatpush1.bf16.xpose.msra.mxu0 0
        %1432 = vmatprep.subr.bf16.mxu0 0
        %1433 = vmatpush1.bf16.xpose.msra.mxu0 0
        %1434 = vmatprep.subr.bf16.mxu0 0
        %1435 = vmatpush1.bf16.xpose.msra.mxu0 0
        %1436 = vmatprep.subr.bf16.mxu0 0
        %1437 = vmatpush1.bf16.xpose.msra.mxu0 0
        %1438 = vmatprep.subr.bf16.mxu0 0
        %1439 = vmatpush1.bf16.xpose.msra.mxu0 0
        %1440 = vmatprep.subr.bf16.mxu0 0
        %1441 = vmatpush1.bf16.xpose.msra.mxu0 0
        %1442 = vmatprep.mubr.bf16.mxu0 0
        %1443 = vmatmul.mubr.bf16.gmra.mrb[0].mxu0 %v1405
        %v1444 = vpop.f32.mrb[0].mxu0
        %v1445 = vadd.f32 0.0, %v1444
        %v1446 = vpop.f32.mrb[0].mxu0
        %v1447 = vpop.f32.mrb[0].mxu0
        %v1448 = vpop.f32.mrb[0].mxu0
        %1449 = vdwg.mxu0
        %v1450 = vmul.f32 %v1445, 0.125
        %v1451 = vadd.f32 %v1450, %v281
        %v1452 = vsel %vm477, %v1451, -inf
        %1453 = vmax.xlane.f32.xlu0 %v1452
        %v1454 = vpop.xlane.xlu0 %1453
        %v1455 = vsub.f32 %v1451, %v1454
        %v1456 = vmul.f32 %v1455, 1.442695
        %v1457 = vpow.pop %v1456
        %v1458 = vsel %vm477, %v1457, 0.0
        %1459 = vadd.xlane.f32.xlu0 %v1458
        %v1460 = vpop.xlane.xlu0 %1459
        %v1461 = vrcp.pop %v1460
        %v1462 = vmul.f32 %v1457, %v1461
        %v1463 = vpack.c.bf16 %v1462, %v1462
        %v1465 = vsel %vm477, %v1463, 0
        %v1468 = vsel %vm493, %v1400, 0
        %1470 = vmatprep.subr.bf16.mxu0 0
        %1471 = vmatpush1.bf16.msra.mxu0 %v1468
        %1472 = vmatprep.subr.bf16.mxu0 0
        %1473 = vmatpush1.bf16.msra.mxu0 0
        %1474 = vmatprep.subr.bf16.mxu0 0
        %1475 = vmatpush1.bf16.msra.mxu0 0
        %1476 = vmatprep.subr.bf16.mxu0 0
        %1477 = vmatpush1.bf16.msra.mxu0 0
        %1478 = vmatprep.subr.bf16.mxu0 0
        %1479 = vmatpush1.bf16.msra.mxu0 0
        %1480 = vmatprep.subr.bf16.mxu0 0
        %1481 = vmatpush1.bf16.msra.mxu0 0
        %1482 = vmatprep.subr.bf16.mxu0 0
        %1483 = vmatpush1.bf16.msra.mxu0 0
        %1484 = vmatprep.subr.bf16.mxu0 0
        %1485 = vmatpush1.bf16.msra.mxu0 0
        %1486 = vmatprep.subr.bf16.mxu0 0
        %1487 = vmatpush1.bf16.msra.mxu0 0
        %1488 = vmatprep.subr.bf16.mxu0 0
        %1489 = vmatpush1.bf16.msra.mxu0 0
        %1490 = vmatprep.subr.bf16.mxu0 0
        %1491 = vmatpush1.bf16.msra.mxu0 0
        %1492 = vmatprep.subr.bf16.mxu0 0
        %1493 = vmatpush1.bf16.msra.mxu0 0
        %1494 = vmatprep.subr.bf16.mxu0 0
        %1495 = vmatpush1.bf16.msra.mxu0 0
        %1496 = vmatprep.subr.bf16.mxu0 0
        %1497 = vmatpush1.bf16.msra.mxu0 0
        %1498 = vmatprep.subr.bf16.mxu0 0
        %1499 = vmatpush1.bf16.msra.mxu0 0
        %1500 = vmatprep.subr.bf16.mxu0 0
        %1501 = vmatpush1.bf16.msra.mxu0 0
        %1502 = vmatprep.mubr.bf16.mxu0 0
        %1503 = vmatmul.mubr.bf16.gmra.mrb[0].mxu0 %v1465
        %v1504 = vpop.f32.mrb[0].mxu0
        %v1505 = vadd.f32 0.0, %v1504
        %v1506 = vpop.f32.mrb[0].mxu0
        %v1507 = vpop.f32.mrb[0].mxu0
        %v1508 = vpop.f32.mrb[0].mxu0
        %1509 = vdwg.mxu0
        %1510 = vrot.lane.b32.xlu0 %v1399, 112
        %v1511 = vpop.permute.xlu0 %1510
        %1512 = vrot.lane.b32.xlu0 %v1399, 48
        %v1513 = vpop.permute.xlu0 %1512
        %v1515 = vsel %vm428, %v1511, 0
        %v1518 = vsel %vm428, %v1513, 0
        %1520 = vmatprep.subr.bf16.mxu0 0
        %1521 = vmatpush1.bf16.xpose.msra.mxu0 %v1518
        %1522 = vmatprep.subr.bf16.mxu0 0
        %1523 = vmatpush1.bf16.xpose.msra.mxu0 0
        %1524 = vmatprep.subr.bf16.mxu0 0
        %1525 = vmatpush1.bf16.xpose.msra.mxu0 0
        %1526 = vmatprep.subr.bf16.mxu0 0
        %1527 = vmatpush1.bf16.xpose.msra.mxu0 0
        %1528 = vmatprep.subr.bf16.mxu0 0
        %1529 = vmatpush1.bf16.xpose.msra.mxu0 0
        %1530 = vmatprep.subr.bf16.mxu0 0
        %1531 = vmatpush1.bf16.xpose.msra.mxu0 0
        %1532 = vmatprep.subr.bf16.mxu0 0
        %1533 = vmatpush1.bf16.xpose.msra.mxu0 0
        %1534 = vmatprep.subr.bf16.mxu0 0
        %1535 = vmatpush1.bf16.xpose.msra.mxu0 0
        %1536 = vmatprep.subr.bf16.mxu0 0
        %1537 = vmatpush1.bf16.xpose.msra.mxu0 0
        %1538 = vmatprep.subr.bf16.mxu0 0
        %1539 = vmatpush1.bf16.xpose.msra.mxu0 0
        %1540 = vmatprep.subr.bf16.mxu0 0
        %1541 = vmatpush1.bf16.xpose.msra.mxu0 0
        %1542 = vmatprep.subr.bf16.mxu0 0
        %1543 = vmatpush1.bf16.xpose.msra.mxu0 0
        %1544 = vmatprep.subr.bf16.mxu0 0
        %1545 = vmatpush1.bf16.xpose.msra.mxu0 0
        %1546 = vmatprep.subr.bf16.mxu0 0
        %1547 = vmatpush1.bf16.xpose.msra.mxu0 0
        %1548 = vmatprep.subr.bf16.mxu0 0
        %1549 = vmatpush1.bf16.xpose.msra.mxu0 0
        %1550 = vmatprep.subr.bf16.mxu0 0
        %1551 = vmatpush1.bf16.xpose.msra.mxu0 0
        %1552 = vmatprep.mubr.bf16.mxu0 0
        %1553 = vmatmul.mubr.bf16.gmra.mrb[0].mxu0 %v1515
        %v1554 = vpop.f32.mrb[0].mxu0
        %v1555 = vadd.f32 0.0, %v1554
        %v1556 = vpop.f32.mrb[0].mxu0
        %v1557 = vpop.f32.mrb[0].mxu0
        %v1558 = vpop.f32.mrb[0].mxu0
        %1559 = vdwg.mxu0
        %v1560 = vmul.f32 %v1555, 0.125
        %v1561 = vadd.f32 %v1560, %v281
        %v1562 = vsel %vm477, %v1561, -inf
        %1563 = vmax.xlane.f32.xlu0 %v1562
        %v1564 = vpop.xlane.xlu0 %1563
        %v1565 = vsub.f32 %v1561, %v1564
        %v1566 = vmul.f32 %v1565, 1.442695
        %v1567 = vpow.pop %v1566
        %v1568 = vsel %vm477, %v1567, 0.0
        %1569 = vadd.xlane.f32.xlu0 %v1568
        %v1570 = vpop.xlane.xlu0 %1569
        %v1571 = vrcp.pop %v1570
        %v1572 = vmul.f32 %v1567, %v1571
        %v1573 = vpack.c.bf16 %v1572, %v1572
        %1575 = vrot.lane.b32.xlu0 %v1400, 112
        %v1576 = vpop.permute.xlu0 %1575
        %v1578 = vsel %vm477, %v1573, 0
        %v1581 = vsel %vm493, %v1576, 0
        %1583 = vmatprep.subr.bf16.mxu0 0
        %1584 = vmatpush1.bf16.msra.mxu0 %v1581
        %1585 = vmatprep.subr.bf16.mxu0 0
        %1586 = vmatpush1.bf16.msra.mxu0 0
        %1587 = vmatprep.subr.bf16.mxu0 0
        %1588 = vmatpush1.bf16.msra.mxu0 0
        %1589 = vmatprep.subr.bf16.mxu0 0
        %1590 = vmatpush1.bf16.msra.mxu0 0
        %1591 = vmatprep.subr.bf16.mxu0 0
        %1592 = vmatpush1.bf16.msra.mxu0 0
        %1593 = vmatprep.subr.bf16.mxu0 0
        %1594 = vmatpush1.bf16.msra.mxu0 0
        %1595 = vmatprep.subr.bf16.mxu0 0
        %1596 = vmatpush1.bf16.msra.mxu0 0
        %1597 = vmatprep.subr.bf16.mxu0 0
        %1598 = vmatpush1.bf16.msra.mxu0 0
        %1599 = vmatprep.subr.bf16.mxu0 0
        %1600 = vmatpush1.bf16.msra.mxu0 0
        %1601 = vmatprep.subr.bf16.mxu0 0
        %1602 = vmatpush1.bf16.msra.mxu0 0
        %1603 = vmatprep.subr.bf16.mxu0 0
        %1604 = vmatpush1.bf16.msra.mxu0 0
        %1605 = vmatprep.subr.bf16.mxu0 0
        %1606 = vmatpush1.bf16.msra.mxu0 0
        %1607 = vmatprep.subr.bf16.mxu0 0
        %1608 = vmatpush1.bf16.msra.mxu0 0
        %1609 = vmatprep.subr.bf16.mxu0 0
        %1610 = vmatpush1.bf16.msra.mxu0 0
        %1611 = vmatprep.subr.bf16.mxu0 0
        %1612 = vmatpush1.bf16.msra.mxu0 0
        %1613 = vmatprep.subr.bf16.mxu0 0
        %1614 = vmatpush1.bf16.msra.mxu0 0
        %1615 = vmatprep.mubr.bf16.mxu0 0
        %1616 = vmatmul.mubr.bf16.gmra.mrb[0].mxu0 %v1578
        %v1617 = vpop.f32.mrb[0].mxu0
        %v1618 = vadd.f32 0.0, %v1617
        %v1619 = vpop.f32.mrb[0].mxu0
        %v1620 = vpop.f32.mrb[0].mxu0
        %v1621 = vpop.f32.mrb[0].mxu0
        %1622 = vdwg.mxu0
        %1623 = vrot.lane.b32.xlu0 %v1399, 96
        %v1624 = vpop.permute.xlu0 %1623
        %1625 = vrot.lane.b32.xlu0 %v1399, 32
        %v1626 = vpop.permute.xlu0 %1625
        %v1628 = vsel %vm428, %v1624, 0
        %v1631 = vsel %vm428, %v1626, 0
        %1633 = vmatprep.subr.bf16.mxu0 0
        %1634 = vmatpush1.bf16.xpose.msra.mxu0 %v1631
        %1635 = vmatprep.subr.bf16.mxu0 0
        %1636 = vmatpush1.bf16.xpose.msra.mxu0 0
        %1637 = vmatprep.subr.bf16.mxu0 0
        %1638 = vmatpush1.bf16.xpose.msra.mxu0 0
        %1639 = vmatprep.subr.bf16.mxu0 0
        %1640 = vmatpush1.bf16.xpose.msra.mxu0 0
        %1641 = vmatprep.subr.bf16.mxu0 0
        %1642 = vmatpush1.bf16.xpose.msra.mxu0 0
        %1643 = vmatprep.subr.bf16.mxu0 0
        %1644 = vmatpush1.bf16.xpose.msra.mxu0 0
        %1645 = vmatprep.subr.bf16.mxu0 0
        %1646 = vmatpush1.bf16.xpose.msra.mxu0 0
        %1647 = vmatprep.subr.bf16.mxu0 0
        %1648 = vmatpush1.bf16.xpose.msra.mxu0 0
        %1649 = vmatprep.subr.bf16.mxu0 0
        %1650 = vmatpush1.bf16.xpose.msra.mxu0 0
        %1651 = vmatprep.subr.bf16.mxu0 0
        %1652 = vmatpush1.bf16.xpose.msra.mxu0 0
        %1653 = vmatprep.subr.bf16.mxu0 0
        %1654 = vmatpush1.bf16.xpose.msra.mxu0 0
        %1655 = vmatprep.subr.bf16.mxu0 0
        %1656 = vmatpush1.bf16.xpose.msra.mxu0 0
        %1657 = vmatprep.subr.bf16.mxu0 0
        %1658 = vmatpush1.bf16.xpose.msra.mxu0 0
        %1659 = vmatprep.subr.bf16.mxu0 0
        %1660 = vmatpush1.bf16.xpose.msra.mxu0 0
        %1661 = vmatprep.subr.bf16.mxu0 0
        %1662 = vmatpush1.bf16.xpose.msra.mxu0 0
        %1663 = vmatprep.subr.bf16.mxu0 0
        %1664 = vmatpush1.bf16.xpose.msra.mxu0 0
        %1665 = vmatprep.mubr.bf16.mxu0 0
        %1666 = vmatmul.mubr.bf16.gmra.mrb[0].mxu0 %v1628
        %v1667 = vpop.f32.mrb[0].mxu0
        %v1668 = vadd.f32 0.0, %v1667
        %v1669 = vpop.f32.mrb[0].mxu0
        %v1670 = vpop.f32.mrb[0].mxu0
        %v1671 = vpop.f32.mrb[0].mxu0
        %1672 = vdwg.mxu0
        %v1673 = vmul.f32 %v1668, 0.125
        %v1674 = vadd.f32 %v1673, %v281
        %v1675 = vsel %vm477, %v1674, -inf
        %1676 = vmax.xlane.f32.xlu0 %v1675
        %v1677 = vpop.xlane.xlu0 %1676
        %v1678 = vsub.f32 %v1674, %v1677
        %v1679 = vmul.f32 %v1678, 1.442695
        %v1680 = vpow.pop %v1679
        %v1681 = vsel %vm477, %v1680, 0.0
        %1682 = vadd.xlane.f32.xlu0 %v1681
        %v1683 = vpop.xlane.xlu0 %1682
        %v1684 = vrcp.pop %v1683
        %v1685 = vmul.f32 %v1680, %v1684
        %v1686 = vpack.c.bf16 %v1685, %v1685
        %1687 = vrot.lane.b32.xlu0 %v1400, 96
        %v1688 = vpop.permute.xlu0 %1687
        %v1690 = vsel %vm477, %v1686, 0
        %v1693 = vsel %vm493, %v1688, 0
        %1695 = vmatprep.subr.bf16.mxu0 0
        %1696 = vmatpush1.bf16.msra.mxu0 %v1693
        %1697 = vmatprep.subr.bf16.mxu0 0
        %1698 = vmatpush1.bf16.msra.mxu0 0
        %1699 = vmatprep.subr.bf16.mxu0 0
        %1700 = vmatpush1.bf16.msra.mxu0 0
        %1701 = vmatprep.subr.bf16.mxu0 0
        %1702 = vmatpush1.bf16.msra.mxu0 0
        %1703 = vmatprep.subr.bf16.mxu0 0
        %1704 = vmatpush1.bf16.msra.mxu0 0
        %1705 = vmatprep.subr.bf16.mxu0 0
        %1706 = vmatpush1.bf16.msra.mxu0 0
        %1707 = vmatprep.subr.bf16.mxu0 0
        %1708 = vmatpush1.bf16.msra.mxu0 0
        %1709 = vmatprep.subr.bf16.mxu0 0
        %1710 = vmatpush1.bf16.msra.mxu0 0
        %1711 = vmatprep.subr.bf16.mxu0 0
        %1712 = vmatpush1.bf16.msra.mxu0 0
        %1713 = vmatprep.subr.bf16.mxu0 0
        %1714 = vmatpush1.bf16.msra.mxu0 0
        %1715 = vmatprep.subr.bf16.mxu0 0
        %1716 = vmatpush1.bf16.msra.mxu0 0
        %1717 = vmatprep.subr.bf16.mxu0 0
        %1718 = vmatpush1.bf16.msra.mxu0 0
        %1719 = vmatprep.subr.bf16.mxu0 0
        %1720 = vmatpush1.bf16.msra.mxu0 0
        %1721 = vmatprep.subr.bf16.mxu0 0
        %1722 = vmatpush1.bf16.msra.mxu0 0
        %1723 = vmatprep.subr.bf16.mxu0 0
        %1724 = vmatpush1.bf16.msra.mxu0 0
        %1725 = vmatprep.subr.bf16.mxu0 0
        %1726 = vmatpush1.bf16.msra.mxu0 0
        %1727 = vmatprep.mubr.bf16.mxu0 0
        %1728 = vmatmul.mubr.bf16.gmra.mrb[0].mxu0 %v1690
        %v1729 = vpop.f32.mrb[0].mxu0
        %v1730 = vadd.f32 0.0, %v1729
        %v1731 = vpop.f32.mrb[0].mxu0
        %v1732 = vpop.f32.mrb[0].mxu0
        %v1733 = vpop.f32.mrb[0].mxu0
        %1734 = vdwg.mxu0
        %1735 = vrot.lane.b32.xlu0 %v1399, 80
        %v1736 = vpop.permute.xlu0 %1735
        %1737 = vrot.lane.b32.xlu0 %v1399, 16
        %v1738 = vpop.permute.xlu0 %1737
        %v1740 = vsel %vm428, %v1736, 0
        %v1743 = vsel %vm428, %v1738, 0
        %1745 = vmatprep.subr.bf16.mxu0 0
        %1746 = vmatpush1.bf16.xpose.msra.mxu0 %v1743
        %1747 = vmatprep.subr.bf16.mxu0 0
        %1748 = vmatpush1.bf16.xpose.msra.mxu0 0
        %1749 = vmatprep.subr.bf16.mxu0 0
        %1750 = vmatpush1.bf16.xpose.msra.mxu0 0
        %1751 = vmatprep.subr.bf16.mxu0 0
        %1752 = vmatpush1.bf16.xpose.msra.mxu0 0
        %1753 = vmatprep.subr.bf16.mxu0 0
        %1754 = vmatpush1.bf16.xpose.msra.mxu0 0
        %1755 = vmatprep.subr.bf16.mxu0 0
        %1756 = vmatpush1.bf16.xpose.msra.mxu0 0
        %1757 = vmatprep.subr.bf16.mxu0 0
        %1758 = vmatpush1.bf16.xpose.msra.mxu0 0
        %1759 = vmatprep.subr.bf16.mxu0 0
        %1760 = vmatpush1.bf16.xpose.msra.mxu0 0
        %1761 = vmatprep.subr.bf16.mxu0 0
        %1762 = vmatpush1.bf16.xpose.msra.mxu0 0
        %1763 = vmatprep.subr.bf16.mxu0 0
        %1764 = vmatpush1.bf16.xpose.msra.mxu0 0
        %1765 = vmatprep.subr.bf16.mxu0 0
        %1766 = vmatpush1.bf16.xpose.msra.mxu0 0
        %1767 = vmatprep.subr.bf16.mxu0 0
        %1768 = vmatpush1.bf16.xpose.msra.mxu0 0
        %1769 = vmatprep.subr.bf16.mxu0 0
        %1770 = vmatpush1.bf16.xpose.msra.mxu0 0
        %1771 = vmatprep.subr.bf16.mxu0 0
        %1772 = vmatpush1.bf16.xpose.msra.mxu0 0
        %1773 = vmatprep.subr.bf16.mxu0 0
        %1774 = vmatpush1.bf16.xpose.msra.mxu0 0
        %1775 = vmatprep.subr.bf16.mxu0 0
        %1776 = vmatpush1.bf16.xpose.msra.mxu0 0
        %1777 = vmatprep.mubr.bf16.mxu0 0
        %1778 = vmatmul.mubr.bf16.gmra.mrb[0].mxu0 %v1740
        %v1779 = vpop.f32.mrb[0].mxu0
        %v1780 = vadd.f32 0.0, %v1779
        %v1781 = vpop.f32.mrb[0].mxu0
        %v1782 = vpop.f32.mrb[0].mxu0
        %v1783 = vpop.f32.mrb[0].mxu0
        %1784 = vdwg.mxu0
        %v1785 = vmul.f32 %v1780, 0.125
        %v1786 = vadd.f32 %v1785, %v281
        %v1787 = vsel %vm477, %v1786, -inf
        %1788 = vmax.xlane.f32.xlu0 %v1787
        %v1789 = vpop.xlane.xlu0 %1788
        %v1790 = vsub.f32 %v1786, %v1789
        %v1791 = vmul.f32 %v1790, 1.442695
        %v1792 = vpow.pop %v1791
        %v1793 = vsel %vm477, %v1792, 0.0
        %1794 = vadd.xlane.f32.xlu0 %v1793
        %v1795 = vpop.xlane.xlu0 %1794
        %v1796 = vrcp.pop %v1795
        %v1797 = vmul.f32 %v1792, %v1796
        %v1798 = vpack.c.bf16 %v1797, %v1797
        %1799 = vrot.lane.b32.xlu0 %v1400, 80
        %v1800 = vpop.permute.xlu0 %1799
        %v1802 = vsel %vm477, %v1798, 0
        %v1805 = vsel %vm493, %v1800, 0
        %1807 = vmatprep.subr.bf16.mxu0 0
        %1808 = vmatpush1.bf16.msra.mxu0 %v1805
        %1809 = vmatprep.subr.bf16.mxu0 0
        %1810 = vmatpush1.bf16.msra.mxu0 0
        %1811 = vmatprep.subr.bf16.mxu0 0
        %1812 = vmatpush1.bf16.msra.mxu0 0
        %1813 = vmatprep.subr.bf16.mxu0 0
        %1814 = vmatpush1.bf16.msra.mxu0 0
        %1815 = vmatprep.subr.bf16.mxu0 0
        %1816 = vmatpush1.bf16.msra.mxu0 0
        %1817 = vmatprep.subr.bf16.mxu0 0
        %1818 = vmatpush1.bf16.msra.mxu0 0
        %1819 = vmatprep.subr.bf16.mxu0 0
        %1820 = vmatpush1.bf16.msra.mxu0 0
        %1821 = vmatprep.subr.bf16.mxu0 0
        %1822 = vmatpush1.bf16.msra.mxu0 0
        %1823 = vmatprep.subr.bf16.mxu0 0
        %1824 = vmatpush1.bf16.msra.mxu0 0
        %1825 = vmatprep.subr.bf16.mxu0 0
        %1826 = vmatpush1.bf16.msra.mxu0 0
        %1827 = vmatprep.subr.bf16.mxu0 0
        %1828 = vmatpush1.bf16.msra.mxu0 0
        %1829 = vmatprep.subr.bf16.mxu0 0
        %1830 = vmatpush1.bf16.msra.mxu0 0
        %1831 = vmatprep.subr.bf16.mxu0 0
        %1832 = vmatpush1.bf16.msra.mxu0 0
        %1833 = vmatprep.subr.bf16.mxu0 0
        %1834 = vmatpush1.bf16.msra.mxu0 0
        %1835 = vmatprep.subr.bf16.mxu0 0
        %1836 = vmatpush1.bf16.msra.mxu0 0
        %1837 = vmatprep.subr.bf16.mxu0 0
        %1838 = vmatpush1.bf16.msra.mxu0 0
        %1839 = vmatprep.mubr.bf16.mxu0 0
        %1840 = vmatmul.mubr.bf16.gmra.mrb[0].mxu0 %v1802
        %v1841 = vpop.f32.mrb[0].mxu0
        %v1842 = vadd.f32 0.0, %v1841
        %v1843 = vpop.f32.mrb[0].mxu0
        %v1844 = vpop.f32.mrb[0].mxu0
        %v1845 = vpop.f32.mrb[0].mxu0
        %1846 = vdwg.mxu0
        %1848 = vrot.lane.b32.xlu0 %v1618, 16
        %v1849 = vpop.permute.xlu0 %1848
        %1852 = vrot.lane.b32.xlu0 %v1730, 32
        %v1853 = vpop.permute.xlu0 %1852
        %1856 = vrot.lane.b32.xlu0 %v1842, 48
        %v1857 = vpop.permute.xlu0 %1856
        %v1859 = vsel %vm428, %v1505, %v1849
        %v1860 = vsel %vm887, %v1859, %v1853
        %v1861 = vsel %vm889, %v1860, %v1857
        %v1862 = vpack.c.bf16 %v1861, %v1861
        %v1864 = vlaneseq
        %v1865 = vshrl.u32 %v1864, 7
        %v1866 = vsub.s32 0, %v1865
        %v1867 = vrot.slane %v1267, %v1866
        %1869 = vrot.lane.b32.xlu0 %v1340, 64
        %v1870 = vpop.permute.xlu0 %1869
        %1871 = vrot.lane.b32.xlu0 %v1342, 64
        %v1872 = vpop.permute.xlu0 %1871
        %1873 = vrot.lane.b32.xlu0 %v1344, 64
        %v1874 = vpop.permute.xlu0 %1873
        %1875 = vrot.lane.b32.xlu0 %v1346, 64
        %v1876 = vpop.permute.xlu0 %1875
        %v1882 = vsel %vm309, %v1862, 0
        %1884 = vmatprep.subr.bf16.mxu0 0
        %1885 = vmatpush1.bf16.msra.mxu0 %v1870
        %1886 = vmatprep.subr.bf16.mxu0 0
        %1887 = vmatpush1.bf16.msra.mxu0 %v1872
        %1888 = vmatprep.subr.bf16.mxu0 0
        %1889 = vmatpush1.bf16.msra.mxu0 %v1874
        %1890 = vmatprep.subr.bf16.mxu0 0
        %1891 = vmatpush1.bf16.msra.mxu0 %v1876
        %1892 = vmatprep.subr.bf16.mxu0 0
        %1893 = vmatpush1.bf16.msra.mxu0 0
        %1894 = vmatprep.subr.bf16.mxu0 0
        %1895 = vmatpush1.bf16.msra.mxu0 0
        %1896 = vmatprep.subr.bf16.mxu0 0
        %1897 = vmatpush1.bf16.msra.mxu0 0
        %1898 = vmatprep.subr.bf16.mxu0 0
        %1899 = vmatpush1.bf16.msra.mxu0 0
        %1900 = vmatprep.subr.bf16.mxu0 0
        %1901 = vmatpush1.bf16.msra.mxu0 0
        %1902 = vmatprep.subr.bf16.mxu0 0
        %1903 = vmatpush1.bf16.msra.mxu0 0
        %1904 = vmatprep.subr.bf16.mxu0 0
        %1905 = vmatpush1.bf16.msra.mxu0 0
        %1906 = vmatprep.subr.bf16.mxu0 0
        %1907 = vmatpush1.bf16.msra.mxu0 0
        %1908 = vmatprep.subr.bf16.mxu0 0
        %1909 = vmatpush1.bf16.msra.mxu0 0
        %1910 = vmatprep.subr.bf16.mxu0 0
        %1911 = vmatpush1.bf16.msra.mxu0 0
        %1912 = vmatprep.subr.bf16.mxu0 0
        %1913 = vmatpush1.bf16.msra.mxu0 0
        %1914 = vmatprep.subr.bf16.mxu0 0
        %1915 = vmatpush1.bf16.msra.mxu0 0
        %1916 = vmatprep.mubr.bf16.mxu0 0
        %1917 = vmatmul.mubr.bf16.gmra.mrb[0].mxu0 %v1882
        %v1918 = vpop.f32.mrb[0].mxu0
        %v1919 = vadd.f32 %v1867, %v1918
        %v1920 = vpop.f32.mrb[0].mxu0
        %v1921 = vpop.f32.mrb[0].mxu0
        %v1922 = vpop.f32.mrb[0].mxu0
        %1923 = vdwg.mxu0
        %v1924 = vadd.f32 %v1257, %v1919
        %v1925 = vsel %vm309, %v1924, 0.0
        %1926 = vadd.xlane.f32.xlu0 %v1925
        %v1927 = vpop.xlane.xlu0 %1926
        %v1928 = vmul.f32 %v1927, %v313
        %v1929 = vsub.f32 %v1924, %v1928
        %v1930 = vmul.f32 %v1929, %v1929
        %v1931 = vsel %vm309, %v1930, 0.0
        %1932 = vadd.xlane.f32.xlu0 %v1931
        %v1933 = vpop.xlane.xlu0 %1932
        %v1934 = vmul.f32 %v1933, %v313
        %v1935 = vadd.f32 %v1934, 1e-05
        %v1936 = vrsqrt.pop %v1935
        %v1937 = vmul.f32 %v1929, %v1936
        %v1939 = vlaneseq
        %v1940 = vshrl.u32 %v1939, 7
        %v1941 = vsub.s32 0, %v1940
        %v1942 = vrot.slane %v1263, %v1941
        %v1944 = vmul.f32 %v1937, %v1942
        %v1946 = vlaneseq
        %v1947 = vshrl.u32 %v1946, 7
        %v1948 = vsub.s32 0, %v1947
        %v1949 = vrot.slane %v1265, %v1948
        %v1951 = vadd.f32 %v1944, %v1949
        %v1952 = vpack.c.bf16 %v1951, %v1951
        %s1953 = scalar_lea.vmem %s5, 2
        %v1954 = vld [vmem:[%s1953] sm:$0x3]
        %v1956 = vlaneseq
        %v1957 = vshrl.u32 %v1956, 7
        %v1958 = vsub.s32 0, %v1957
        %v1959 = vrot.slane %v1954, %v1958
        %v1960 = vlaneseq
        %v1961 = vshrl.u32 %v1960, 7
        %v1962 = vsub.s32 1, %v1961
        %v1963 = vrot.slane %v1954, %v1962
        %v1974 = vunpack.c.l.b16 %v1272
        %v1975 = vunpack.c.h.b16 %v1272
        %v1976 = vunpack.c.l.b16 %v1274
        %v1977 = vunpack.c.h.b16 %v1274
        %v1978 = vunpack.c.l.b16 %v1276
        %v1979 = vunpack.c.h.b16 %v1276
        %v1980 = vunpack.c.l.b16 %v1278
        %v1981 = vunpack.c.h.b16 %v1278
        %v1982 = vunpack.c.l.b16 %v1280
        %v1983 = vunpack.c.h.b16 %v1280
        %v1984 = vunpack.c.l.b16 %v1282
        %v1985 = vunpack.c.h.b16 %v1282
        %v1986 = vunpack.c.l.b16 %v1284
        %v1987 = vunpack.c.h.b16 %v1284
        %v1988 = vunpack.c.l.b16 %v1286
        %v1989 = vunpack.c.h.b16 %v1286
        %v1990 = vpack.c.b16 %v1976, %v1974
        %v1991 = vpack.c.b16 %v1977, %v1975
        %v1992 = vpack.c.b16 %v1980, %v1978
        %v1993 = vpack.c.b16 %v1981, %v1979
        %v1994 = vpack.c.b16 %v1984, %v1982
        %v1995 = vpack.c.b16 %v1985, %v1983
        %v1996 = vpack.c.b16 %v1988, %v1986
        %v1997 = vpack.c.b16 %v1989, %v1987
        %v2007 = vsel %vm309, %v1952, 0
        %2009 = vmatprep.subr.bf16.mxu0 %v1991
        %2010 = vmatpush1.bf16.msra.mxu0 %v1990
        %2011 = vmatprep.subr.bf16.mxu0 %v1993
        %2012 = vmatpush1.bf16.msra.mxu0 %v1992
        %2013 = vmatprep.subr.bf16.mxu0 %v1995
        %2014 = vmatpush1.bf16.msra.mxu0 %v1994
        %2015 = vmatprep.subr.bf16.mxu0 %v1997
        %2016 = vmatpush1.bf16.msra.mxu0 %v1996
        %2017 = vmatprep.subr.bf16.mxu0 0
        %2018 = vmatpush1.bf16.msra.mxu0 0
        %2019 = vmatprep.subr.bf16.mxu0 0
        %2020 = vmatpush1.bf16.msra.mxu0 0
        %2021 = vmatprep.subr.bf16.mxu0 0
        %2022 = vmatpush1.bf16.msra.mxu0 0
        %2023 = vmatprep.subr.bf16.mxu0 0
        %2024 = vmatpush1.bf16.msra.mxu0 0
        %2025 = vmatprep.subr.bf16.mxu0 0
        %2026 = vmatpush1.bf16.msra.mxu0 0
        %2027 = vmatprep.subr.bf16.mxu0 0
        %2028 = vmatpush1.bf16.msra.mxu0 0
        %2029 = vmatprep.subr.bf16.mxu0 0
        %2030 = vmatpush1.bf16.msra.mxu0 0
        %2031 = vmatprep.subr.bf16.mxu0 0
        %2032 = vmatpush1.bf16.msra.mxu0 0
        %2033 = vmatprep.subr.bf16.mxu0 0
        %2034 = vmatpush1.bf16.msra.mxu0 0
        %2035 = vmatprep.subr.bf16.mxu0 0
        %2036 = vmatpush1.bf16.msra.mxu0 0
        %2037 = vmatprep.subr.bf16.mxu0 0
        %2038 = vmatpush1.bf16.msra.mxu0 0
        %2039 = vmatprep.subr.bf16.mxu0 0
        %2040 = vmatpush1.bf16.msra.mxu0 0
        %2041 = vmatprep.mubr.bf16.mxu0 0
        %2042 = vmatmul.mubr.bf16.gmra.mrb[0].mxu0 %v2007
        %v2043 = vpop.f32.mrb[0].mxu0
        %v2044 = vadd.f32 %v1959, %v2043
        %v2045 = vpop.f32.mrb[0].mxu0
        %v2046 = vadd.f32 %v1963, %v2045
        %v2047 = vpop.f32.mrb[0].mxu0
        %v2048 = vpop.f32.mrb[0].mxu0
        %2049 = vdwg.mxu0
        %v2050 = vmax.f32 %v2044, 0.0
        %v2051 = vmax.f32 %v2046, 0.0
        %v2052 = vpack.c.bf16 %v2050, %v2050
        %v2053 = vpack.c.bf16 %v2051, %v2051
        %s2054 = scalar_lea.vmem %s2, 128
        %v2055 = vld [vmem:[%s2054] sm:$0xf]
        %v2056 = vld [vmem:[%s2054 + $0x4] sm:$0xf]
        %v2057 = vld [vmem:[%s2054 + $0x8] sm:$0xf]
        %v2058 = vld [vmem:[%s2054 + $0xc] sm:$0xf]
        %v2059 = vld [vmem:[%s2054 + $0x10] sm:$0xf]
        %v2060 = vld [vmem:[%s2054 + $0x14] sm:$0xf]
        %v2061 = vld [vmem:[%s2054 + $0x18] sm:$0xf]
        %v2062 = vld [vmem:[%s2054 + $0x1c] sm:$0xf]
        %v2063 = vld [vmem:[%s2054 + $0x20] sm:$0xf]
        %v2064 = vld [vmem:[%s2054 + $0x24] sm:$0xf]
        %v2065 = vld [vmem:[%s2054 + $0x28] sm:$0xf]
        %v2066 = vld [vmem:[%s2054 + $0x2c] sm:$0xf]
        %v2067 = vld [vmem:[%s2054 + $0x30] sm:$0xf]
        %v2068 = vld [vmem:[%s2054 + $0x34] sm:$0xf]
        %v2069 = vld [vmem:[%s2054 + $0x38] sm:$0xf]
        %v2070 = vld [vmem:[%s2054 + $0x3c] sm:$0xf]
        %v2071 = vld [vmem:[%s2054 + $0x40] sm:$0xf]
        %v2072 = vld [vmem:[%s2054 + $0x44] sm:$0xf]
        %v2073 = vld [vmem:[%s2054 + $0x48] sm:$0xf]
        %v2074 = vld [vmem:[%s2054 + $0x4c] sm:$0xf]
        %v2075 = vld [vmem:[%s2054 + $0x50] sm:$0xf]
        %v2076 = vld [vmem:[%s2054 + $0x54] sm:$0xf]
        %v2077 = vld [vmem:[%s2054 + $0x58] sm:$0xf]
        %v2078 = vld [vmem:[%s2054 + $0x5c] sm:$0xf]
        %v2079 = vld [vmem:[%s2054 + $0x60] sm:$0xf]
        %v2080 = vld [vmem:[%s2054 + $0x64] sm:$0xf]
        %v2081 = vld [vmem:[%s2054 + $0x68] sm:$0xf]
        %v2082 = vld [vmem:[%s2054 + $0x6c] sm:$0xf]
        %v2083 = vld [vmem:[%s2054 + $0x70] sm:$0xf]
        %v2084 = vld [vmem:[%s2054 + $0x74] sm:$0xf]
        %v2085 = vld [vmem:[%s2054 + $0x78] sm:$0xf]
        %v2086 = vld [vmem:[%s2054 + $0x7c] sm:$0xf]
        %v2119 = vunpack.c.l.b16 %v2055
        %v2120 = vunpack.c.l.b16 %v2056
        %v2121 = vunpack.c.l.b16 %v2057
        %v2122 = vunpack.c.l.b16 %v2058
        %v2123 = vunpack.c.l.b16 %v2059
        %v2124 = vunpack.c.l.b16 %v2060
        %v2125 = vunpack.c.l.b16 %v2061
        %v2126 = vunpack.c.l.b16 %v2062
        %v2127 = vunpack.c.l.b16 %v2063
        %v2128 = vunpack.c.l.b16 %v2064
        %v2129 = vunpack.c.l.b16 %v2065
        %v2130 = vunpack.c.l.b16 %v2066
        %v2131 = vunpack.c.l.b16 %v2067
        %v2132 = vunpack.c.l.b16 %v2068
        %v2133 = vunpack.c.l.b16 %v2069
        %v2134 = vunpack.c.l.b16 %v2070
        %v2135 = vunpack.c.l.b16 %v2071
        %v2136 = vunpack.c.l.b16 %v2072
        %v2137 = vunpack.c.l.b16 %v2073
        %v2138 = vunpack.c.l.b16 %v2074
        %v2139 = vunpack.c.l.b16 %v2075
        %v2140 = vunpack.c.l.b16 %v2076
        %v2141 = vunpack.c.l.b16 %v2077
        %v2142 = vunpack.c.l.b16 %v2078
        %v2143 = vunpack.c.l.b16 %v2079
        %v2144 = vunpack.c.l.b16 %v2080
        %v2145 = vunpack.c.l.b16 %v2081
        %v2146 = vunpack.c.l.b16 %v2082
        %v2147 = vunpack.c.l.b16 %v2083
        %v2148 = vunpack.c.l.b16 %v2084
        %v2149 = vunpack.c.l.b16 %v2085
        %v2150 = vunpack.c.l.b16 %v2086
        %v2151 = vpack.c.b16 %v2120, %v2119
        %v2152 = vpack.c.b16 %v2122, %v2121
        %v2153 = vpack.c.b16 %v2124, %v2123
        %v2154 = vpack.c.b16 %v2126, %v2125
        %v2155 = vpack.c.b16 %v2128, %v2127
        %v2156 = vpack.c.b16 %v2130, %v2129
        %v2157 = vpack.c.b16 %v2132, %v2131
        %v2158 = vpack.c.b16 %v2134, %v2133
        %v2159 = vpack.c.b16 %v2136, %v2135
        %v2160 = vpack.c.b16 %v2138, %v2137
        %v2161 = vpack.c.b16 %v2140, %v2139
        %v2162 = vpack.c.b16 %v2142, %v2141
        %v2163 = vpack.c.b16 %v2144, %v2143
        %v2164 = vpack.c.b16 %v2146, %v2145
        %v2165 = vpack.c.b16 %v2148, %v2147
        %v2166 = vpack.c.b16 %v2150, %v2149
        %2183 = vmatprep.subr.bf16.mxu0 0
        %2184 = vmatpush1.bf16.msra.mxu0 %v2151
        %2185 = vmatprep.subr.bf16.mxu0 0
        %2186 = vmatpush1.bf16.msra.mxu0 %v2152
        %2187 = vmatprep.subr.bf16.mxu0 0
        %2188 = vmatpush1.bf16.msra.mxu0 %v2153
        %2189 = vmatprep.subr.bf16.mxu0 0
        %2190 = vmatpush1.bf16.msra.mxu0 %v2154
        %2191 = vmatprep.subr.bf16.mxu0 0
        %2192 = vmatpush1.bf16.msra.mxu0 %v2155
        %2193 = vmatprep.subr.bf16.mxu0 0
        %2194 = vmatpush1.bf16.msra.mxu0 %v2156
        %2195 = vmatprep.subr.bf16.mxu0 0
        %2196 = vmatpush1.bf16.msra.mxu0 %v2157
        %2197 = vmatprep.subr.bf16.mxu0 0
        %2198 = vmatpush1.bf16.msra.mxu0 %v2158
        %2199 = vmatprep.subr.bf16.mxu0 0
        %2200 = vmatpush1.bf16.msra.mxu0 %v2159
        %2201 = vmatprep.subr.bf16.mxu0 0
        %2202 = vmatpush1.bf16.msra.mxu0 %v2160
        %2203 = vmatprep.subr.bf16.mxu0 0
        %2204 = vmatpush1.bf16.msra.mxu0 %v2161
        %2205 = vmatprep.subr.bf16.mxu0 0
        %2206 = vmatpush1.bf16.msra.mxu0 %v2162
        %2207 = vmatprep.subr.bf16.mxu0 0
        %2208 = vmatpush1.bf16.msra.mxu0 %v2163
        %2209 = vmatprep.subr.bf16.mxu0 0
        %2210 = vmatpush1.bf16.msra.mxu0 %v2164
        %2211 = vmatprep.subr.bf16.mxu0 0
        %2212 = vmatpush1.bf16.msra.mxu0 %v2165
        %2213 = vmatprep.subr.bf16.mxu0 0
        %2214 = vmatpush1.bf16.msra.mxu0 %v2166
        %2215 = vmatprep.mubr.bf16.mxu0 %v2053
        %2216 = vmatmul.mubr.bf16.gmra.mrb[0].mxu0 %v2052
        %v2217 = vpop.f32.mrb[0].mxu0
        %v2218 = vadd.f32 0.0, %v2217
        %v2219 = vpop.f32.mrb[0].mxu0
        %v2220 = vpop.f32.mrb[0].mxu0
        %v2221 = vpop.f32.mrb[0].mxu0
        %2222 = vdwg.mxu0
        %v2223 = vadd.f32 %v1924, %v2218
        %v2225 = vlaneseq
        %v2226 = vshrl.u32 %v2225, 7
        %v2227 = vsub.s32 0, %v2226
        %v2228 = vrot.slane %v1269, %v2227
        %v2230 = vadd.f32 %v2223, %v2228
        %s2231 = scalar_lea.vmem %s4, 12
        %v2232 = vld [vmem:[%s2231] sm:$0x1]
        %s2233 = scalar_lea.vmem %s4, 13
        %v2234 = vld [vmem:[%s2233] sm:$0x1]
        %s2235 = scalar_lea.vmem %s4, 14
        %v2236 = vld [vmem:[%s2235] sm:$0x1]
        %s2237 = scalar_lea.vmem %s4, 15
        %v2238 = vld [vmem:[%s2237] sm:$0x1]
        %s2239 = scalar_lea.vmem %s4, 16
        %v2240 = vld [vmem:[%s2239] sm:$0x1]
        %s2241 = scalar_lea.vmem %s4, 17
        %v2242 = vld [vmem:[%s2241] sm:$0x1]
        %s2243 = scalar_lea.vmem %s1, 256
        %v2244 = vld [vmem:[%s2243] sm:$0xff]
        %v2245 = vld [vmem:[%s2243 + $0x8] sm:$0xff]
        %v2246 = vld [vmem:[%s2243 + $0x10] sm:$0xff]
        %v2247 = vld [vmem:[%s2243 + $0x18] sm:$0xff]
        %v2248 = vld [vmem:[%s2243 + $0x20] sm:$0xff]
        %v2249 = vld [vmem:[%s2243 + $0x28] sm:$0xff]
        %v2250 = vld [vmem:[%s2243 + $0x30] sm:$0xff]
        %v2251 = vld [vmem:[%s2243 + $0x38] sm:$0xff]
        %v2252 = vld [vmem:[%s2243 + $0x40] sm:$0xff]
        %v2253 = vld [vmem:[%s2243 + $0x48] sm:$0xff]
        %v2254 = vld [vmem:[%s2243 + $0x50] sm:$0xff]
        %v2255 = vld [vmem:[%s2243 + $0x58] sm:$0xff]
        %v2256 = vld [vmem:[%s2243 + $0x60] sm:$0xff]
        %v2257 = vld [vmem:[%s2243 + $0x68] sm:$0xff]
        %v2258 = vld [vmem:[%s2243 + $0x70] sm:$0xff]
        %v2259 = vld [vmem:[%s2243 + $0x78] sm:$0xff]
        %v2260 = vsel %vm309, %v2230, 0.0
        %2261 = vadd.xlane.f32.xlu0 %v2260
        %v2262 = vpop.xlane.xlu0 %2261
        %v2263 = vmul.f32 %v2262, %v313
        %v2264 = vsub.f32 %v2230, %v2263
        %v2265 = vmul.f32 %v2264, %v2264
        %v2266 = vsel %vm309, %v2265, 0.0
        %2267 = vadd.xlane.f32.xlu0 %v2266
        %v2268 = vpop.xlane.xlu0 %2267
        %v2269 = vmul.f32 %v2268, %v313
        %v2270 = vadd.f32 %v2269, 1e-05
        %v2271 = vrsqrt.pop %v2270
        %v2272 = vmul.f32 %v2264, %v2271
        %v2274 = vlaneseq
        %v2275 = vshrl.u32 %v2274, 7
        %v2276 = vsub.s32 0, %v2275
        %v2277 = vrot.slane %v2232, %v2276
        %v2279 = vmul.f32 %v2272, %v2277
        %v2281 = vlaneseq
        %v2282 = vshrl.u32 %v2281, 7
        %v2283 = vsub.s32 0, %v2282
        %v2284 = vrot.slane %v2234, %v2283
        %v2286 = vadd.f32 %v2279, %v2284
        %v2287 = vpack.c.bf16 %v2286, %v2286
        %v2296 = vunpack.c.l.b16 %v2244
        %v2297 = vunpack.c.h.b16 %v2244
        %v2298 = vunpack.c.l.b16 %v2246
        %v2299 = vunpack.c.h.b16 %v2246
        %v2300 = vunpack.c.l.b16 %v2248
        %v2301 = vunpack.c.h.b16 %v2248
        %v2302 = vunpack.c.l.b16 %v2250
        %v2303 = vunpack.c.h.b16 %v2250
        %v2304 = vunpack.c.l.b16 %v2252
        %v2305 = vunpack.c.h.b16 %v2252
        %v2306 = vunpack.c.l.b16 %v2254
        %v2307 = vunpack.c.h.b16 %v2254
        %v2308 = vunpack.c.l.b16 %v2256
        %v2309 = vunpack.c.h.b16 %v2256
        %v2310 = vunpack.c.l.b16 %v2258
        %v2311 = vunpack.c.h.b16 %v2258
        %v2312 = vpack.c.b16 %v2298, %v2296
        %v2313 = vpack.c.b16 %v2299, %v2297
        %v2314 = vpack.c.b16 %v2302, %v2300
        %v2315 = vpack.c.b16 %v2303, %v2301
        %v2316 = vpack.c.b16 %v2306, %v2304
        %v2317 = vpack.c.b16 %v2307, %v2305
        %v2318 = vpack.c.b16 %v2310, %v2308
        %v2319 = vpack.c.b16 %v2311, %v2309
        %v2329 = vsel %vm309, %v2287, 0
        %2331 = vmatprep.subr.bf16.mxu0 %v2313
        %2332 = vmatpush1.bf16.msra.mxu0 %v2312
        %2333 = vmatprep.subr.bf16.mxu0 %v2315
        %2334 = vmatpush1.bf16.msra.mxu0 %v2314
        %2335 = vmatprep.subr.bf16.mxu0 %v2317
        %2336 = vmatpush1.bf16.msra.mxu0 %v2316
        %2337 = vmatprep.subr.bf16.mxu0 %v2319
        %2338 = vmatpush1.bf16.msra.mxu0 %v2318
        %2339 = vmatprep.subr.bf16.mxu0 0
        %2340 = vmatpush1.bf16.msra.mxu0 0
        %2341 = vmatprep.subr.bf16.mxu0 0
        %2342 = vmatpush1.bf16.msra.mxu0 0
        %2343 = vmatprep.subr.bf16.mxu0 0
        %2344 = vmatpush1.bf16.msra.mxu0 0
        %2345 = vmatprep.subr.bf16.mxu0 0
        %2346 = vmatpush1.bf16.msra.mxu0 0
        %2347 = vmatprep.subr.bf16.mxu0 0
        %2348 = vmatpush1.bf16.msra.mxu0 0
        %2349 = vmatprep.subr.bf16.mxu0 0
        %2350 = vmatpush1.bf16.msra.mxu0 0
        %2351 = vmatprep.subr.bf16.mxu0 0
        %2352 = vmatpush1.bf16.msra.mxu0 0
        %2353 = vmatprep.subr.bf16.mxu0 0
        %2354 = vmatpush1.bf16.msra.mxu0 0
        %2355 = vmatprep.subr.bf16.mxu0 0
        %2356 = vmatpush1.bf16.msra.mxu0 0
        %2357 = vmatprep.subr.bf16.mxu0 0
        %2358 = vmatpush1.bf16.msra.mxu0 0
        %2359 = vmatprep.subr.bf16.mxu0 0
        %2360 = vmatpush1.bf16.msra.mxu0 0
        %2361 = vmatprep.subr.bf16.mxu0 0
        %2362 = vmatpush1.bf16.msra.mxu0 0
        %2363 = vmatprep.mubr.bf16.mxu0 0
        %2364 = vmatmul.mubr.bf16.gmra.mrb[0].mxu0 %v2329
        %v2365 = vpop.f32.mrb[0].mxu0
        %v2366 = vadd.f32 0.0, %v2365
        %v2367 = vpop.f32.mrb[0].mxu0
        %v2368 = vadd.f32 0.0, %v2367
        %v2369 = vpop.f32.mrb[0].mxu0
        %v2370 = vpop.f32.mrb[0].mxu0
        %2371 = vdwg.mxu0
        %v2372 = vpack.c.bf16 %v2366, %v2366
        %v2373 = vpack.c.bf16 %v2368, %v2368
        %2375 = vrot.lane.b32.xlu0 %v2372, 64
        %v2376 = vpop.permute.xlu0 %2375
        %v2378 = vsel %vm428, %v2372, 0
        %v2381 = vsel %vm428, %v2376, 0
        %2383 = vmatprep.subr.bf16.mxu0 0
        %2384 = vmatpush1.bf16.xpose.msra.mxu0 %v2381
        %2385 = vmatprep.subr.bf16.mxu0 0
        %2386 = vmatpush1.bf16.xpose.msra.mxu0 0
        %2387 = vmatprep.subr.bf16.mxu0 0
        %2388 = vmatpush1.bf16.xpose.msra.mxu0 0
        %2389 = vmatprep.subr.bf16.mxu0 0
        %2390 = vmatpush1.bf16.xpose.msra.mxu0 0
        %2391 = vmatprep.subr.bf16.mxu0 0
        %2392 = vmatpush1.bf16.xpose.msra.mxu0 0
        %2393 = vmatprep.subr.bf16.mxu0 0
        %2394 = vmatpush1.bf16.xpose.msra.mxu0 0
        %2395 = vmatprep.subr.bf16.mxu0 0
        %2396 = vmatpush1.bf16.xpose.msra.mxu0 0
        %2397 = vmatprep.subr.bf16.mxu0 0
        %2398 = vmatpush1.bf16.xpose.msra.mxu0 0
        %2399 = vmatprep.subr.bf16.mxu0 0
        %2400 = vmatpush1.bf16.xpose.msra.mxu0 0
        %2401 = vmatprep.subr.bf16.mxu0 0
        %2402 = vmatpush1.bf16.xpose.msra.mxu0 0
        %2403 = vmatprep.subr.bf16.mxu0 0
        %2404 = vmatpush1.bf16.xpose.msra.mxu0 0
        %2405 = vmatprep.subr.bf16.mxu0 0
        %2406 = vmatpush1.bf16.xpose.msra.mxu0 0
        %2407 = vmatprep.subr.bf16.mxu0 0
        %2408 = vmatpush1.bf16.xpose.msra.mxu0 0
        %2409 = vmatprep.subr.bf16.mxu0 0
        %2410 = vmatpush1.bf16.xpose.msra.mxu0 0
        %2411 = vmatprep.subr.bf16.mxu0 0
        %2412 = vmatpush1.bf16.xpose.msra.mxu0 0
        %2413 = vmatprep.subr.bf16.mxu0 0
        %2414 = vmatpush1.bf16.xpose.msra.mxu0 0
        %2415 = vmatprep.mubr.bf16.mxu0 0
        %2416 = vmatmul.mubr.bf16.gmra.mrb[0].mxu0 %v2378
        %v2417 = vpop.f32.mrb[0].mxu0
        %v2418 = vadd.f32 0.0, %v2417
        %v2419 = vpop.f32.mrb[0].mxu0
        %v2420 = vpop.f32.mrb[0].mxu0
        %v2421 = vpop.f32.mrb[0].mxu0
        %2422 = vdwg.mxu0
        %v2423 = vmul.f32 %v2418, 0.125
        %v2424 = vadd.f32 %v2423, %v281
        %v2425 = vsel %vm477, %v2424, -inf
        %2426 = vmax.xlane.f32.xlu0 %v2425
        %v2427 = vpop.xlane.xlu0 %2426
        %v2428 = vsub.f32 %v2424, %v2427
        %v2429 = vmul.f32 %v2428, 1.442695
        %v2430 = vpow.pop %v2429
        %v2431 = vsel %vm477, %v2430, 0.0
        %2432 = vadd.xlane.f32.xlu0 %v2431
        %v2433 = vpop.xlane.xlu0 %2432
        %v2434 = vrcp.pop %v2433
        %v2435 = vmul.f32 %v2430, %v2434
        %v2436 = vpack.c.bf16 %v2435, %v2435
        %v2438 = vsel %vm477, %v2436, 0
        %v2441 = vsel %vm493, %v2373, 0
        %2443 = vmatprep.subr.bf16.mxu0 0
        %2444 = vmatpush1.bf16.msra.mxu0 %v2441
        %2445 = vmatprep.subr.bf16.mxu0 0
        %2446 = vmatpush1.bf16.msra.mxu0 0
        %2447 = vmatprep.subr.bf16.mxu0 0
        %2448 = vmatpush1.bf16.msra.mxu0 0
        %2449 = vmatprep.subr.bf16.mxu0 0
        %2450 = vmatpush1.bf16.msra.mxu0 0
        %2451 = vmatprep.subr.bf16.mxu0 0
        %2452 = vmatpush1.bf16.msra.mxu0 0
        %2453 = vmatprep.subr.bf16.mxu0 0
        %2454 = vmatpush1.bf16.msra.mxu0 0
        %2455 = vmatprep.subr.bf16.mxu0 0
        %2456 = vmatpush1.bf16.msra.mxu0 0
        %2457 = vmatprep.subr.bf16.mxu0 0
        %2458 = vmatpush1.bf16.msra.mxu0 0
        %2459 = vmatprep.subr.bf16.mxu0 0
        %2460 = vmatpush1.bf16.msra.mxu0 0
        %2461 = vmatprep.subr.bf16.mxu0 0
        %2462 = vmatpush1.bf16.msra.mxu0 0
        %2463 = vmatprep.subr.bf16.mxu0 0
        %2464 = vmatpush1.bf16.msra.mxu0 0
        %2465 = vmatprep.subr.bf16.mxu0 0
        %2466 = vmatpush1.bf16.msra.mxu0 0
        %2467 = vmatprep.subr.bf16.mxu0 0
        %2468 = vmatpush1.bf16.msra.mxu0 0
        %2469 = vmatprep.subr.bf16.mxu0 0
        %2470 = vmatpush1.bf16.msra.mxu0 0
        %2471 = vmatprep.subr.bf16.mxu0 0
        %2472 = vmatpush1.bf16.msra.mxu0 0
        %2473 = vmatprep.subr.bf16.mxu0 0
        %2474 = vmatpush1.bf16.msra.mxu0 0
        %2475 = vmatprep.mubr.bf16.mxu0 0
        %2476 = vmatmul.mubr.bf16.gmra.mrb[0].mxu0 %v2438
        %v2477 = vpop.f32.mrb[0].mxu0
        %v2478 = vadd.f32 0.0, %v2477
        %v2479 = vpop.f32.mrb[0].mxu0
        %v2480 = vpop.f32.mrb[0].mxu0
        %v2481 = vpop.f32.mrb[0].mxu0
        %2482 = vdwg.mxu0
        %2483 = vrot.lane.b32.xlu0 %v2372, 112
        %v2484 = vpop.permute.xlu0 %2483
        %2485 = vrot.lane.b32.xlu0 %v2372, 48
        %v2486 = vpop.permute.xlu0 %2485
        %v2488 = vsel %vm428, %v2484, 0
        %v2491 = vsel %vm428, %v2486, 0
        %2493 = vmatprep.subr.bf16.mxu0 0
        %2494 = vmatpush1.bf16.xpose.msra.mxu0 %v2491
        %2495 = vmatprep.subr.bf16.mxu0 0
        %2496 = vmatpush1.bf16.xpose.msra.mxu0 0
        %2497 = vmatprep.subr.bf16.mxu0 0
        %2498 = vmatpush1.bf16.xpose.msra.mxu0 0
        %2499 = vmatprep.subr.bf16.mxu0 0
        %2500 = vmatpush1.bf16.xpose.msra.mxu0 0
        %2501 = vmatprep.subr.bf16.mxu0 0
        %2502 = vmatpush1.bf16.xpose.msra.mxu0 0
        %2503 = vmatprep.subr.bf16.mxu0 0
        %2504 = vmatpush1.bf16.xpose.msra.mxu0 0
        %2505 = vmatprep.subr.bf16.mxu0 0
        %2506 = vmatpush1.bf16.xpose.msra.mxu0 0
        %2507 = vmatprep.subr.bf16.mxu0 0
        %2508 = vmatpush1.bf16.xpose.msra.mxu0 0
        %2509 = vmatprep.subr.bf16.mxu0 0
        %2510 = vmatpush1.bf16.xpose.msra.mxu0 0
        %2511 = vmatprep.subr.bf16.mxu0 0
        %2512 = vmatpush1.bf16.xpose.msra.mxu0 0
        %2513 = vmatprep.subr.bf16.mxu0 0
        %2514 = vmatpush1.bf16.xpose.msra.mxu0 0
        %2515 = vmatprep.subr.bf16.mxu0 0
        %2516 = vmatpush1.bf16.xpose.msra.mxu0 0
        %2517 = vmatprep.subr.bf16.mxu0 0
        %2518 = vmatpush1.bf16.xpose.msra.mxu0 0
        %2519 = vmatprep.subr.bf16.mxu0 0
        %2520 = vmatpush1.bf16.xpose.msra.mxu0 0
        %2521 = vmatprep.subr.bf16.mxu0 0
        %2522 = vmatpush1.bf16.xpose.msra.mxu0 0
        %2523 = vmatprep.subr.bf16.mxu0 0
        %2524 = vmatpush1.bf16.xpose.msra.mxu0 0
        %2525 = vmatprep.mubr.bf16.mxu0 0
        %2526 = vmatmul.mubr.bf16.gmra.mrb[0].mxu0 %v2488
        %v2527 = vpop.f32.mrb[0].mxu0
        %v2528 = vadd.f32 0.0, %v2527
        %v2529 = vpop.f32.mrb[0].mxu0
        %v2530 = vpop.f32.mrb[0].mxu0
        %v2531 = vpop.f32.mrb[0].mxu0
        %2532 = vdwg.mxu0
        %v2533 = vmul.f32 %v2528, 0.125
        %v2534 = vadd.f32 %v2533, %v281
        %v2535 = vsel %vm477, %v2534, -inf
        %2536 = vmax.xlane.f32.xlu0 %v2535
        %v2537 = vpop.xlane.xlu0 %2536
        %v2538 = vsub.f32 %v2534, %v2537
        %v2539 = vmul.f32 %v2538, 1.442695
        %v2540 = vpow.pop %v2539
        %v2541 = vsel %vm477, %v2540, 0.0
        %2542 = vadd.xlane.f32.xlu0 %v2541
        %v2543 = vpop.xlane.xlu0 %2542
        %v2544 = vrcp.pop %v2543
        %v2545 = vmul.f32 %v2540, %v2544
        %v2546 = vpack.c.bf16 %v2545, %v2545
        %2548 = vrot.lane.b32.xlu0 %v2373, 112
        %v2549 = vpop.permute.xlu0 %2548
        %v2551 = vsel %vm477, %v2546, 0
        %v2554 = vsel %vm493, %v2549, 0
        %2556 = vmatprep.subr.bf16.mxu0 0
        %2557 = vmatpush1.bf16.msra.mxu0 %v2554
        %2558 = vmatprep.subr.bf16.mxu0 0
        %2559 = vmatpush1.bf16.msra.mxu0 0
        %2560 = vmatprep.subr.bf16.mxu0 0
        %2561 = vmatpush1.bf16.msra.mxu0 0
        %2562 = vmatprep.subr.bf16.mxu0 0
        %2563 = vmatpush1.bf16.msra.mxu0 0
        %2564 = vmatprep.subr.bf16.mxu0 0
        %2565 = vmatpush1.bf16.msra.mxu0 0
        %2566 = vmatprep.subr.bf16.mxu0 0
        %2567 = vmatpush1.bf16.msra.mxu0 0
        %2568 = vmatprep.subr.bf16.mxu0 0
        %2569 = vmatpush1.bf16.msra.mxu0 0
        %2570 = vmatprep.subr.bf16.mxu0 0
        %2571 = vmatpush1.bf16.msra.mxu0 0
        %2572 = vmatprep.subr.bf16.mxu0 0
        %2573 = vmatpush1.bf16.msra.mxu0 0
        %2574 = vmatprep.subr.bf16.mxu0 0
        %2575 = vmatpush1.bf16.msra.mxu0 0
        %2576 = vmatprep.subr.bf16.mxu0 0
        %2577 = vmatpush1.bf16.msra.mxu0 0
        %2578 = vmatprep.subr.bf16.mxu0 0
        %2579 = vmatpush1.bf16.msra.mxu0 0
        %2580 = vmatprep.subr.bf16.mxu0 0
        %2581 = vmatpush1.bf16.msra.mxu0 0
        %2582 = vmatprep.subr.bf16.mxu0 0
        %2583 = vmatpush1.bf16.msra.mxu0 0
        %2584 = vmatprep.subr.bf16.mxu0 0
        %2585 = vmatpush1.bf16.msra.mxu0 0
        %2586 = vmatprep.subr.bf16.mxu0 0
        %2587 = vmatpush1.bf16.msra.mxu0 0
        %2588 = vmatprep.mubr.bf16.mxu0 0
        %2589 = vmatmul.mubr.bf16.gmra.mrb[0].mxu0 %v2551
        %v2590 = vpop.f32.mrb[0].mxu0
        %v2591 = vadd.f32 0.0, %v2590
        %v2592 = vpop.f32.mrb[0].mxu0
        %v2593 = vpop.f32.mrb[0].mxu0
        %v2594 = vpop.f32.mrb[0].mxu0
        %2595 = vdwg.mxu0
        %2596 = vrot.lane.b32.xlu0 %v2372, 96
        %v2597 = vpop.permute.xlu0 %2596
        %2598 = vrot.lane.b32.xlu0 %v2372, 32
        %v2599 = vpop.permute.xlu0 %2598
        %v2601 = vsel %vm428, %v2597, 0
        %v2604 = vsel %vm428, %v2599, 0
        %2606 = vmatprep.subr.bf16.mxu0 0
        %2607 = vmatpush1.bf16.xpose.msra.mxu0 %v2604
        %2608 = vmatprep.subr.bf16.mxu0 0
        %2609 = vmatpush1.bf16.xpose.msra.mxu0 0
        %2610 = vmatprep.subr.bf16.mxu0 0
        %2611 = vmatpush1.bf16.xpose.msra.mxu0 0
        %2612 = vmatprep.subr.bf16.mxu0 0
        %2613 = vmatpush1.bf16.xpose.msra.mxu0 0
        %2614 = vmatprep.subr.bf16.mxu0 0
        %2615 = vmatpush1.bf16.xpose.msra.mxu0 0
        %2616 = vmatprep.subr.bf16.mxu0 0
        %2617 = vmatpush1.bf16.xpose.msra.mxu0 0
        %2618 = vmatprep.subr.bf16.mxu0 0
        %2619 = vmatpush1.bf16.xpose.msra.mxu0 0
        %2620 = vmatprep.subr.bf16.mxu0 0
        %2621 = vmatpush1.bf16.xpose.msra.mxu0 0
        %2622 = vmatprep.subr.bf16.mxu0 0
        %2623 = vmatpush1.bf16.xpose.msra.mxu0 0
        %2624 = vmatprep.subr.bf16.mxu0 0
        %2625 = vmatpush1.bf16.xpose.msra.mxu0 0
        %2626 = vmatprep.subr.bf16.mxu0 0
        %2627 = vmatpush1.bf16.xpose.msra.mxu0 0
        %2628 = vmatprep.subr.bf16.mxu0 0
        %2629 = vmatpush1.bf16.xpose.msra.mxu0 0
        %2630 = vmatprep.subr.bf16.mxu0 0
        %2631 = vmatpush1.bf16.xpose.msra.mxu0 0
        %2632 = vmatprep.subr.bf16.mxu0 0
        %2633 = vmatpush1.bf16.xpose.msra.mxu0 0
        %2634 = vmatprep.subr.bf16.mxu0 0
        %2635 = vmatpush1.bf16.xpose.msra.mxu0 0
        %2636 = vmatprep.subr.bf16.mxu0 0
        %2637 = vmatpush1.bf16.xpose.msra.mxu0 0
        %2638 = vmatprep.mubr.bf16.mxu0 0
        %2639 = vmatmul.mubr.bf16.gmra.mrb[0].mxu0 %v2601
        %v2640 = vpop.f32.mrb[0].mxu0
        %v2641 = vadd.f32 0.0, %v2640
        %v2642 = vpop.f32.mrb[0].mxu0
        %v2643 = vpop.f32.mrb[0].mxu0
        %v2644 = vpop.f32.mrb[0].mxu0
        %2645 = vdwg.mxu0
        %v2646 = vmul.f32 %v2641, 0.125
        %v2647 = vadd.f32 %v2646, %v281
        %v2648 = vsel %vm477, %v2647, -inf
        %2649 = vmax.xlane.f32.xlu0 %v2648
        %v2650 = vpop.xlane.xlu0 %2649
        %v2651 = vsub.f32 %v2647, %v2650
        %v2652 = vmul.f32 %v2651, 1.442695
        %v2653 = vpow.pop %v2652
        %v2654 = vsel %vm477, %v2653, 0.0
        %2655 = vadd.xlane.f32.xlu0 %v2654
        %v2656 = vpop.xlane.xlu0 %2655
        %v2657 = vrcp.pop %v2656
        %v2658 = vmul.f32 %v2653, %v2657
        %v2659 = vpack.c.bf16 %v2658, %v2658
        %2660 = vrot.lane.b32.xlu0 %v2373, 96
        %v2661 = vpop.permute.xlu0 %2660
        %v2663 = vsel %vm477, %v2659, 0
        %v2666 = vsel %vm493, %v2661, 0
        %2668 = vmatprep.subr.bf16.mxu0 0
        %2669 = vmatpush1.bf16.msra.mxu0 %v2666
        %2670 = vmatprep.subr.bf16.mxu0 0
        %2671 = vmatpush1.bf16.msra.mxu0 0
        %2672 = vmatprep.subr.bf16.mxu0 0
        %2673 = vmatpush1.bf16.msra.mxu0 0
        %2674 = vmatprep.subr.bf16.mxu0 0
        %2675 = vmatpush1.bf16.msra.mxu0 0
        %2676 = vmatprep.subr.bf16.mxu0 0
        %2677 = vmatpush1.bf16.msra.mxu0 0
        %2678 = vmatprep.subr.bf16.mxu0 0
        %2679 = vmatpush1.bf16.msra.mxu0 0
        %2680 = vmatprep.subr.bf16.mxu0 0
        %2681 = vmatpush1.bf16.msra.mxu0 0
        %2682 = vmatprep.subr.bf16.mxu0 0
        %2683 = vmatpush1.bf16.msra.mxu0 0
        %2684 = vmatprep.subr.bf16.mxu0 0
        %2685 = vmatpush1.bf16.msra.mxu0 0
        %2686 = vmatprep.subr.bf16.mxu0 0
        %2687 = vmatpush1.bf16.msra.mxu0 0
        %2688 = vmatprep.subr.bf16.mxu0 0
        %2689 = vmatpush1.bf16.msra.mxu0 0
        %2690 = vmatprep.subr.bf16.mxu0 0
        %2691 = vmatpush1.bf16.msra.mxu0 0
        %2692 = vmatprep.subr.bf16.mxu0 0
        %2693 = vmatpush1.bf16.msra.mxu0 0
        %2694 = vmatprep.subr.bf16.mxu0 0
        %2695 = vmatpush1.bf16.msra.mxu0 0
        %2696 = vmatprep.subr.bf16.mxu0 0
        %2697 = vmatpush1.bf16.msra.mxu0 0
        %2698 = vmatprep.subr.bf16.mxu0 0
        %2699 = vmatpush1.bf16.msra.mxu0 0
        %2700 = vmatprep.mubr.bf16.mxu0 0
        %2701 = vmatmul.mubr.bf16.gmra.mrb[0].mxu0 %v2663
        %v2702 = vpop.f32.mrb[0].mxu0
        %v2703 = vadd.f32 0.0, %v2702
        %v2704 = vpop.f32.mrb[0].mxu0
        %v2705 = vpop.f32.mrb[0].mxu0
        %v2706 = vpop.f32.mrb[0].mxu0
        %2707 = vdwg.mxu0
        %2708 = vrot.lane.b32.xlu0 %v2372, 80
        %v2709 = vpop.permute.xlu0 %2708
        %2710 = vrot.lane.b32.xlu0 %v2372, 16
        %v2711 = vpop.permute.xlu0 %2710
        %v2713 = vsel %vm428, %v2709, 0
        %v2716 = vsel %vm428, %v2711, 0
        %2718 = vmatprep.subr.bf16.mxu0 0
        %2719 = vmatpush1.bf16.xpose.msra.mxu0 %v2716
        %2720 = vmatprep.subr.bf16.mxu0 0
        %2721 = vmatpush1.bf16.xpose.msra.mxu0 0
        %2722 = vmatprep.subr.bf16.mxu0 0
        %2723 = vmatpush1.bf16.xpose.msra.mxu0 0
        %2724 = vmatprep.subr.bf16.mxu0 0
        %2725 = vmatpush1.bf16.xpose.msra.mxu0 0
        %2726 = vmatprep.subr.bf16.mxu0 0
        %2727 = vmatpush1.bf16.xpose.msra.mxu0 0
        %2728 = vmatprep.subr.bf16.mxu0 0
        %2729 = vmatpush1.bf16.xpose.msra.mxu0 0
        %2730 = vmatprep.subr.bf16.mxu0 0
        %2731 = vmatpush1.bf16.xpose.msra.mxu0 0
        %2732 = vmatprep.subr.bf16.mxu0 0
        %2733 = vmatpush1.bf16.xpose.msra.mxu0 0
        %2734 = vmatprep.subr.bf16.mxu0 0
        %2735 = vmatpush1.bf16.xpose.msra.mxu0 0
        %2736 = vmatprep.subr.bf16.mxu0 0
        %2737 = vmatpush1.bf16.xpose.msra.mxu0 0
        %2738 = vmatprep.subr.bf16.mxu0 0
        %2739 = vmatpush1.bf16.xpose.msra.mxu0 0
        %2740 = vmatprep.subr.bf16.mxu0 0
        %2741 = vmatpush1.bf16.xpose.msra.mxu0 0
        %2742 = vmatprep.subr.bf16.mxu0 0
        %2743 = vmatpush1.bf16.xpose.msra.mxu0 0
        %2744 = vmatprep.subr.bf16.mxu0 0
        %2745 = vmatpush1.bf16.xpose.msra.mxu0 0
        %2746 = vmatprep.subr.bf16.mxu0 0
        %2747 = vmatpush1.bf16.xpose.msra.mxu0 0
        %2748 = vmatprep.subr.bf16.mxu0 0
        %2749 = vmatpush1.bf16.xpose.msra.mxu0 0
        %2750 = vmatprep.mubr.bf16.mxu0 0
        %2751 = vmatmul.mubr.bf16.gmra.mrb[0].mxu0 %v2713
        %v2752 = vpop.f32.mrb[0].mxu0
        %v2753 = vadd.f32 0.0, %v2752
        %v2754 = vpop.f32.mrb[0].mxu0
        %v2755 = vpop.f32.mrb[0].mxu0
        %v2756 = vpop.f32.mrb[0].mxu0
        %2757 = vdwg.mxu0
        %v2758 = vmul.f32 %v2753, 0.125
        %v2759 = vadd.f32 %v2758, %v281
        %v2760 = vsel %vm477, %v2759, -inf
        %2761 = vmax.xlane.f32.xlu0 %v2760
        %v2762 = vpop.xlane.xlu0 %2761
        %v2763 = vsub.f32 %v2759, %v2762
        %v2764 = vmul.f32 %v2763, 1.442695
        %v2765 = vpow.pop %v2764
        %v2766 = vsel %vm477, %v2765, 0.0
        %2767 = vadd.xlane.f32.xlu0 %v2766
        %v2768 = vpop.xlane.xlu0 %2767
        %v2769 = vrcp.pop %v2768
        %v2770 = vmul.f32 %v2765, %v2769
        %v2771 = vpack.c.bf16 %v2770, %v2770
        %2772 = vrot.lane.b32.xlu0 %v2373, 80
        %v2773 = vpop.permute.xlu0 %2772
        %v2775 = vsel %vm477, %v2771, 0
        %v2778 = vsel %vm493, %v2773, 0
        %2780 = vmatprep.subr.bf16.mxu0 0
        %2781 = vmatpush1.bf16.msra.mxu0 %v2778
        %2782 = vmatprep.subr.bf16.mxu0 0
        %2783 = vmatpush1.bf16.msra.mxu0 0
        %2784 = vmatprep.subr.bf16.mxu0 0
        %2785 = vmatpush1.bf16.msra.mxu0 0
        %2786 = vmatprep.subr.bf16.mxu0 0
        %2787 = vmatpush1.bf16.msra.mxu0 0
        %2788 = vmatprep.subr.bf16.mxu0 0
        %2789 = vmatpush1.bf16.msra.mxu0 0
        %2790 = vmatprep.subr.bf16.mxu0 0
        %2791 = vmatpush1.bf16.msra.mxu0 0
        %2792 = vmatprep.subr.bf16.mxu0 0
        %2793 = vmatpush1.bf16.msra.mxu0 0
        %2794 = vmatprep.subr.bf16.mxu0 0
        %2795 = vmatpush1.bf16.msra.mxu0 0
        %2796 = vmatprep.subr.bf16.mxu0 0
        %2797 = vmatpush1.bf16.msra.mxu0 0
        %2798 = vmatprep.subr.bf16.mxu0 0
        %2799 = vmatpush1.bf16.msra.mxu0 0
        %2800 = vmatprep.subr.bf16.mxu0 0
        %2801 = vmatpush1.bf16.msra.mxu0 0
        %2802 = vmatprep.subr.bf16.mxu0 0
        %2803 = vmatpush1.bf16.msra.mxu0 0
        %2804 = vmatprep.subr.bf16.mxu0 0
        %2805 = vmatpush1.bf16.msra.mxu0 0
        %2806 = vmatprep.subr.bf16.mxu0 0
        %2807 = vmatpush1.bf16.msra.mxu0 0
        %2808 = vmatprep.subr.bf16.mxu0 0
        %2809 = vmatpush1.bf16.msra.mxu0 0
        %2810 = vmatprep.subr.bf16.mxu0 0
        %2811 = vmatpush1.bf16.msra.mxu0 0
        %2812 = vmatprep.mubr.bf16.mxu0 0
        %2813 = vmatmul.mubr.bf16.gmra.mrb[0].mxu0 %v2775
        %v2814 = vpop.f32.mrb[0].mxu0
        %v2815 = vadd.f32 0.0, %v2814
        %v2816 = vpop.f32.mrb[0].mxu0
        %v2817 = vpop.f32.mrb[0].mxu0
        %v2818 = vpop.f32.mrb[0].mxu0
        %2819 = vdwg.mxu0
        %2821 = vrot.lane.b32.xlu0 %v2591, 16
        %v2822 = vpop.permute.xlu0 %2821
        %2825 = vrot.lane.b32.xlu0 %v2703, 32
        %v2826 = vpop.permute.xlu0 %2825
        %2829 = vrot.lane.b32.xlu0 %v2815, 48
        %v2830 = vpop.permute.xlu0 %2829
        %v2832 = vsel %vm428, %v2478, %v2822
        %v2833 = vsel %vm887, %v2832, %v2826
        %v2834 = vsel %vm889, %v2833, %v2830
        %v2835 = vpack.c.bf16 %v2834, %v2834
        %v2837 = vlaneseq
        %v2838 = vshrl.u32 %v2837, 7
        %v2839 = vsub.s32 0, %v2838
        %v2840 = vrot.slane %v2240, %v2839
        %2842 = vrot.lane.b32.xlu0 %v2313, 64
        %v2843 = vpop.permute.xlu0 %2842
        %2844 = vrot.lane.b32.xlu0 %v2315, 64
        %v2845 = vpop.permute.xlu0 %2844
        %2846 = vrot.lane.b32.xlu0 %v2317, 64
        %v2847 = vpop.permute.xlu0 %2846
        %2848 = vrot.lane.b32.xlu0 %v2319, 64
        %v2849 = vpop.permute.xlu0 %2848
        %v2855 = vsel %vm309, %v2835, 0
        %2857 = vmatprep.subr.bf16.mxu0 0
        %2858 = vmatpush1.bf16.msra.mxu0 %v2843
        %2859 = vmatprep.subr.bf16.mxu0 0
        %2860 = vmatpush1.bf16.msra.mxu0 %v2845
        %2861 = vmatprep.subr.bf16.mxu0 0
        %2862 = vmatpush1.bf16.msra.mxu0 %v2847
        %2863 = vmatprep.subr.bf16.mxu0 0
        %2864 = vmatpush1.bf16.msra.mxu0 %v2849
        %2865 = vmatprep.subr.bf16.mxu0 0
        %2866 = vmatpush1.bf16.msra.mxu0 0
        %2867 = vmatprep.subr.bf16.mxu0 0
        %2868 = vmatpush1.bf16.msra.mxu0 0
        %2869 = vmatprep.subr.bf16.mxu0 0
        %2870 = vmatpush1.bf16.msra.mxu0 0
        %2871 = vmatprep.subr.bf16.mxu0 0
        %2872 = vmatpush1.bf16.msra.mxu0 0
        %2873 = vmatprep.subr.bf16.mxu0 0
        %2874 = vmatpush1.bf16.msra.mxu0 0
        %2875 = vmatprep.subr.bf16.mxu0 0
        %2876 = vmatpush1.bf16.msra.mxu0 0
        %2877 = vmatprep.subr.bf16.mxu0 0
        %2878 = vmatpush1.bf16.msra.mxu0 0
        %2879 = vmatprep.subr.bf16.mxu0 0
        %2880 = vmatpush1.bf16.msra.mxu0 0
        %2881 = vmatprep.subr.bf16.mxu0 0
        %2882 = vmatpush1.bf16.msra.mxu0 0
        %2883 = vmatprep.subr.bf16.mxu0 0
        %2884 = vmatpush1.bf16.msra.mxu0 0
        %2885 = vmatprep.subr.bf16.mxu0 0
        %2886 = vmatpush1.bf16.msra.mxu0 0
        %2887 = vmatprep.subr.bf16.mxu0 0
        %2888 = vmatpush1.bf16.msra.mxu0 0
        %2889 = vmatprep.mubr.bf16.mxu0 0
        %2890 = vmatmul.mubr.bf16.gmra.mrb[0].mxu0 %v2855
        %v2891 = vpop.f32.mrb[0].mxu0
        %v2892 = vadd.f32 %v2840, %v2891
        %v2893 = vpop.f32.mrb[0].mxu0
        %v2894 = vpop.f32.mrb[0].mxu0
        %v2895 = vpop.f32.mrb[0].mxu0
        %2896 = vdwg.mxu0
        %v2897 = vadd.f32 %v2230, %v2892
        %v2898 = vsel %vm309, %v2897, 0.0
        %2899 = vadd.xlane.f32.xlu0 %v2898
        %v2900 = vpop.xlane.xlu0 %2899
        %v2901 = vmul.f32 %v2900, %v313
        %v2902 = vsub.f32 %v2897, %v2901
        %v2903 = vmul.f32 %v2902, %v2902
        %v2904 = vsel %vm309, %v2903, 0.0
        %2905 = vadd.xlane.f32.xlu0 %v2904
        %v2906 = vpop.xlane.xlu0 %2905
        %v2907 = vmul.f32 %v2906, %v313
        %v2908 = vadd.f32 %v2907, 1e-05
        %v2909 = vrsqrt.pop %v2908
        %v2910 = vmul.f32 %v2902, %v2909
        %v2912 = vlaneseq
        %v2913 = vshrl.u32 %v2912, 7
        %v2914 = vsub.s32 0, %v2913
        %v2915 = vrot.slane %v2236, %v2914
        %v2917 = vmul.f32 %v2910, %v2915
        %v2919 = vlaneseq
        %v2920 = vshrl.u32 %v2919, 7
        %v2921 = vsub.s32 0, %v2920
        %v2922 = vrot.slane %v2238, %v2921
        %v2924 = vadd.f32 %v2917, %v2922
        %v2925 = vpack.c.bf16 %v2924, %v2924
        %s2926 = scalar_lea.vmem %s5, 4
        %v2927 = vld [vmem:[%s2926] sm:$0x3]
        %v2929 = vlaneseq
        %v2930 = vshrl.u32 %v2929, 7
        %v2931 = vsub.s32 0, %v2930
        %v2932 = vrot.slane %v2927, %v2931
        %v2933 = vlaneseq
        %v2934 = vshrl.u32 %v2933, 7
        %v2935 = vsub.s32 1, %v2934
        %v2936 = vrot.slane %v2927, %v2935
        %v2947 = vunpack.c.l.b16 %v2245
        %v2948 = vunpack.c.h.b16 %v2245
        %v2949 = vunpack.c.l.b16 %v2247
        %v2950 = vunpack.c.h.b16 %v2247
        %v2951 = vunpack.c.l.b16 %v2249
        %v2952 = vunpack.c.h.b16 %v2249
        %v2953 = vunpack.c.l.b16 %v2251
        %v2954 = vunpack.c.h.b16 %v2251
        %v2955 = vunpack.c.l.b16 %v2253
        %v2956 = vunpack.c.h.b16 %v2253
        %v2957 = vunpack.c.l.b16 %v2255
        %v2958 = vunpack.c.h.b16 %v2255
        %v2959 = vunpack.c.l.b16 %v2257
        %v2960 = vunpack.c.h.b16 %v2257
        %v2961 = vunpack.c.l.b16 %v2259
        %v2962 = vunpack.c.h.b16 %v2259
        %v2963 = vpack.c.b16 %v2949, %v2947
        %v2964 = vpack.c.b16 %v2950, %v2948
        %v2965 = vpack.c.b16 %v2953, %v2951
        %v2966 = vpack.c.b16 %v2954, %v2952
        %v2967 = vpack.c.b16 %v2957, %v2955
        %v2968 = vpack.c.b16 %v2958, %v2956
        %v2969 = vpack.c.b16 %v2961, %v2959
        %v2970 = vpack.c.b16 %v2962, %v2960
        %v2980 = vsel %vm309, %v2925, 0
        %2982 = vmatprep.subr.bf16.mxu0 %v2964
        %2983 = vmatpush1.bf16.msra.mxu0 %v2963
        %2984 = vmatprep.subr.bf16.mxu0 %v2966
        %2985 = vmatpush1.bf16.msra.mxu0 %v2965
        %2986 = vmatprep.subr.bf16.mxu0 %v2968
        %2987 = vmatpush1.bf16.msra.mxu0 %v2967
        %2988 = vmatprep.subr.bf16.mxu0 %v2970
        %2989 = vmatpush1.bf16.msra.mxu0 %v2969
        %2990 = vmatprep.subr.bf16.mxu0 0
        %2991 = vmatpush1.bf16.msra.mxu0 0
        %2992 = vmatprep.subr.bf16.mxu0 0
        %2993 = vmatpush1.bf16.msra.mxu0 0
        %2994 = vmatprep.subr.bf16.mxu0 0
        %2995 = vmatpush1.bf16.msra.mxu0 0
        %2996 = vmatprep.subr.bf16.mxu0 0
        %2997 = vmatpush1.bf16.msra.mxu0 0
        %2998 = vmatprep.subr.bf16.mxu0 0
        %2999 = vmatpush1.bf16.msra.mxu0 0
        %3000 = vmatprep.subr.bf16.mxu0 0
        %3001 = vmatpush1.bf16.msra.mxu0 0
        %3002 = vmatprep.subr.bf16.mxu0 0
        %3003 = vmatpush1.bf16.msra.mxu0 0
        %3004 = vmatprep.subr.bf16.mxu0 0
        %3005 = vmatpush1.bf16.msra.mxu0 0
        %3006 = vmatprep.subr.bf16.mxu0 0
        %3007 = vmatpush1.bf16.msra.mxu0 0
        %3008 = vmatprep.subr.bf16.mxu0 0
        %3009 = vmatpush1.bf16.msra.mxu0 0
        %3010 = vmatprep.subr.bf16.mxu0 0
        %3011 = vmatpush1.bf16.msra.mxu0 0
        %3012 = vmatprep.subr.bf16.mxu0 0
        %3013 = vmatpush1.bf16.msra.mxu0 0
        %3014 = vmatprep.mubr.bf16.mxu0 0
        %3015 = vmatmul.mubr.bf16.gmra.mrb[0].mxu0 %v2980
        %v3016 = vpop.f32.mrb[0].mxu0
        %v3017 = vadd.f32 %v2932, %v3016
        %v3018 = vpop.f32.mrb[0].mxu0
        %v3019 = vadd.f32 %v2936, %v3018
        %v3020 = vpop.f32.mrb[0].mxu0
        %v3021 = vpop.f32.mrb[0].mxu0
        %3022 = vdwg.mxu0
        %v3023 = vmax.f32 %v3017, 0.0
        %v3024 = vmax.f32 %v3019, 0.0
        %v3025 = vpack.c.bf16 %v3023, %v3023
        %v3026 = vpack.c.bf16 %v3024, %v3024
        %s3027 = scalar_lea.vmem %s2, 256
        %v3028 = vld [vmem:[%s3027] sm:$0xf]
        %v3029 = vld [vmem:[%s3027 + $0x4] sm:$0xf]
        %v3030 = vld [vmem:[%s3027 + $0x8] sm:$0xf]
        %v3031 = vld [vmem:[%s3027 + $0xc] sm:$0xf]
        %v3032 = vld [vmem:[%s3027 + $0x10] sm:$0xf]
        %v3033 = vld [vmem:[%s3027 + $0x14] sm:$0xf]
        %v3034 = vld [vmem:[%s3027 + $0x18] sm:$0xf]
        %v3035 = vld [vmem:[%s3027 + $0x1c] sm:$0xf]
        %v3036 = vld [vmem:[%s3027 + $0x20] sm:$0xf]
        %v3037 = vld [vmem:[%s3027 + $0x24] sm:$0xf]
        %v3038 = vld [vmem:[%s3027 + $0x28] sm:$0xf]
        %v3039 = vld [vmem:[%s3027 + $0x2c] sm:$0xf]
        %v3040 = vld [vmem:[%s3027 + $0x30] sm:$0xf]
        %v3041 = vld [vmem:[%s3027 + $0x34] sm:$0xf]
        %v3042 = vld [vmem:[%s3027 + $0x38] sm:$0xf]
        %v3043 = vld [vmem:[%s3027 + $0x3c] sm:$0xf]
        %v3044 = vld [vmem:[%s3027 + $0x40] sm:$0xf]
        %v3045 = vld [vmem:[%s3027 + $0x44] sm:$0xf]
        %v3046 = vld [vmem:[%s3027 + $0x48] sm:$0xf]
        %v3047 = vld [vmem:[%s3027 + $0x4c] sm:$0xf]
        %v3048 = vld [vmem:[%s3027 + $0x50] sm:$0xf]
        %v3049 = vld [vmem:[%s3027 + $0x54] sm:$0xf]
        %v3050 = vld [vmem:[%s3027 + $0x58] sm:$0xf]
        %v3051 = vld [vmem:[%s3027 + $0x5c] sm:$0xf]
        %v3052 = vld [vmem:[%s3027 + $0x60] sm:$0xf]
        %v3053 = vld [vmem:[%s3027 + $0x64] sm:$0xf]
        %v3054 = vld [vmem:[%s3027 + $0x68] sm:$0xf]
        %v3055 = vld [vmem:[%s3027 + $0x6c] sm:$0xf]
        %v3056 = vld [vmem:[%s3027 + $0x70] sm:$0xf]
        %v3057 = vld [vmem:[%s3027 + $0x74] sm:$0xf]
        %v3058 = vld [vmem:[%s3027 + $0x78] sm:$0xf]
        %v3059 = vld [vmem:[%s3027 + $0x7c] sm:$0xf]
        %v3092 = vunpack.c.l.b16 %v3028
        %v3093 = vunpack.c.l.b16 %v3029
        %v3094 = vunpack.c.l.b16 %v3030
        %v3095 = vunpack.c.l.b16 %v3031
        %v3096 = vunpack.c.l.b16 %v3032
        %v3097 = vunpack.c.l.b16 %v3033
        %v3098 = vunpack.c.l.b16 %v3034
        %v3099 = vunpack.c.l.b16 %v3035
        %v3100 = vunpack.c.l.b16 %v3036
        %v3101 = vunpack.c.l.b16 %v3037
        %v3102 = vunpack.c.l.b16 %v3038
        %v3103 = vunpack.c.l.b16 %v3039
        %v3104 = vunpack.c.l.b16 %v3040
        %v3105 = vunpack.c.l.b16 %v3041
        %v3106 = vunpack.c.l.b16 %v3042
        %v3107 = vunpack.c.l.b16 %v3043
        %v3108 = vunpack.c.l.b16 %v3044
        %v3109 = vunpack.c.l.b16 %v3045
        %v3110 = vunpack.c.l.b16 %v3046
        %v3111 = vunpack.c.l.b16 %v3047
        %v3112 = vunpack.c.l.b16 %v3048
        %v3113 = vunpack.c.l.b16 %v3049
        %v3114 = vunpack.c.l.b16 %v3050
        %v3115 = vunpack.c.l.b16 %v3051
        %v3116 = vunpack.c.l.b16 %v3052
        %v3117 = vunpack.c.l.b16 %v3053
        %v3118 = vunpack.c.l.b16 %v3054
        %v3119 = vunpack.c.l.b16 %v3055
        %v3120 = vunpack.c.l.b16 %v3056
        %v3121 = vunpack.c.l.b16 %v3057
        %v3122 = vunpack.c.l.b16 %v3058
        %v3123 = vunpack.c.l.b16 %v3059
        %v3124 = vpack.c.b16 %v3093, %v3092
        %v3125 = vpack.c.b16 %v3095, %v3094
        %v3126 = vpack.c.b16 %v3097, %v3096
        %v3127 = vpack.c.b16 %v3099, %v3098
        %v3128 = vpack.c.b16 %v3101, %v3100
        %v3129 = vpack.c.b16 %v3103, %v3102
        %v3130 = vpack.c.b16 %v3105, %v3104
        %v3131 = vpack.c.b16 %v3107, %v3106
        %v3132 = vpack.c.b16 %v3109, %v3108
        %v3133 = vpack.c.b16 %v3111, %v3110
        %v3134 = vpack.c.b16 %v3113, %v3112
        %v3135 = vpack.c.b16 %v3115, %v3114
        %v3136 = vpack.c.b16 %v3117, %v3116
        %v3137 = vpack.c.b16 %v3119, %v3118
        %v3138 = vpack.c.b16 %v3121, %v3120
        %v3139 = vpack.c.b16 %v3123, %v3122
        %3156 = vmatprep.subr.bf16.mxu0 0
        %3157 = vmatpush1.bf16.msra.mxu0 %v3124
        %3158 = vmatprep.subr.bf16.mxu0 0
        %3159 = vmatpush1.bf16.msra.mxu0 %v3125
        %3160 = vmatprep.subr.bf16.mxu0 0
        %3161 = vmatpush1.bf16.msra.mxu0 %v3126
        %3162 = vmatprep.subr.bf16.mxu0 0
        %3163 = vmatpush1.bf16.msra.mxu0 %v3127
        %3164 = vmatprep.subr.bf16.mxu0 0
        %3165 = vmatpush1.bf16.msra.mxu0 %v3128
        %3166 = vmatprep.subr.bf16.mxu0 0
        %3167 = vmatpush1.bf16.msra.mxu0 %v3129
        %3168 = vmatprep.subr.bf16.mxu0 0
        %3169 = vmatpush1.bf16.msra.mxu0 %v3130
        %3170 = vmatprep.subr.bf16.mxu0 0
        %3171 = vmatpush1.bf16.msra.mxu0 %v3131
        %3172 = vmatprep.subr.bf16.mxu0 0
        %3173 = vmatpush1.bf16.msra.mxu0 %v3132
        %3174 = vmatprep.subr.bf16.mxu0 0
        %3175 = vmatpush1.bf16.msra.mxu0 %v3133
        %3176 = vmatprep.subr.bf16.mxu0 0
        %3177 = vmatpush1.bf16.msra.mxu0 %v3134
        %3178 = vmatprep.subr.bf16.mxu0 0
        %3179 = vmatpush1.bf16.msra.mxu0 %v3135
        %3180 = vmatprep.subr.bf16.mxu0 0
        %3181 = vmatpush1.bf16.msra.mxu0 %v3136
        %3182 = vmatprep.subr.bf16.mxu0 0
        %3183 = vmatpush1.bf16.msra.mxu0 %v3137
        %3184 = vmatprep.subr.bf16.mxu0 0
        %3185 = vmatpush1.bf16.msra.mxu0 %v3138
        %3186 = vmatprep.subr.bf16.mxu0 0
        %3187 = vmatpush1.bf16.msra.mxu0 %v3139
        %3188 = vmatprep.mubr.bf16.mxu0 %v3026
        %3189 = vmatmul.mubr.bf16.gmra.mrb[0].mxu0 %v3025
        %v3190 = vpop.f32.mrb[0].mxu0
        %v3191 = vadd.f32 0.0, %v3190
        %v3192 = vpop.f32.mrb[0].mxu0
        %v3193 = vpop.f32.mrb[0].mxu0
        %v3194 = vpop.f32.mrb[0].mxu0
        %3195 = vdwg.mxu0
        %v3196 = vadd.f32 %v2897, %v3191
        %v3198 = vlaneseq
        %v3199 = vshrl.u32 %v3198, 7
        %v3200 = vsub.s32 0, %v3199
        %v3201 = vrot.slane %v2242, %v3200
        %v3203 = vadd.f32 %v3196, %v3201
        %s3204 = scalar_lea.vmem %s4, 18
        %v3205 = vld [vmem:[%s3204] sm:$0x1]
        %s3206 = scalar_lea.vmem %s4, 19
        %v3207 = vld [vmem:[%s3206] sm:$0x1]
        %s3208 = scalar_lea.vmem %s4, 20
        %v3209 = vld [vmem:[%s3208] sm:$0x1]
        %s3210 = scalar_lea.vmem %s4, 21
        %v3211 = vld [vmem:[%s3210] sm:$0x1]
        %s3212 = scalar_lea.vmem %s4, 22
        %v3213 = vld [vmem:[%s3212] sm:$0x1]
        %s3214 = scalar_lea.vmem %s4, 23
        %v3215 = vld [vmem:[%s3214] sm:$0x1]
        %s3216 = scalar_lea.vmem %s1, 384
        %v3217 = vld [vmem:[%s3216] sm:$0xff]
        %v3218 = vld [vmem:[%s3216 + $0x8] sm:$0xff]
        %v3219 = vld [vmem:[%s3216 + $0x10] sm:$0xff]
        %v3220 = vld [vmem:[%s3216 + $0x18] sm:$0xff]
        %v3221 = vld [vmem:[%s3216 + $0x20] sm:$0xff]
        %v3222 = vld [vmem:[%s3216 + $0x28] sm:$0xff]
        %v3223 = vld [vmem:[%s3216 + $0x30] sm:$0xff]
        %v3224 = vld [vmem:[%s3216 + $0x38] sm:$0xff]
        %v3225 = vld [vmem:[%s3216 + $0x40] sm:$0xff]
        %v3226 = vld [vmem:[%s3216 + $0x48] sm:$0xff]
        %v3227 = vld [vmem:[%s3216 + $0x50] sm:$0xff]
        %v3228 = vld [vmem:[%s3216 + $0x58] sm:$0xff]
        %v3229 = vld [vmem:[%s3216 + $0x60] sm:$0xff]
        %v3230 = vld [vmem:[%s3216 + $0x68] sm:$0xff]
        %v3231 = vld [vmem:[%s3216 + $0x70] sm:$0xff]
        %v3232 = vld [vmem:[%s3216 + $0x78] sm:$0xff]
        %v3233 = vsel %vm309, %v3203, 0.0
        %3234 = vadd.xlane.f32.xlu0 %v3233
        %v3235 = vpop.xlane.xlu0 %3234
        %v3236 = vmul.f32 %v3235, %v313
        %v3237 = vsub.f32 %v3203, %v3236
        %v3238 = vmul.f32 %v3237, %v3237
        %v3239 = vsel %vm309, %v3238, 0.0
        %3240 = vadd.xlane.f32.xlu0 %v3239
        %v3241 = vpop.xlane.xlu0 %3240
        %v3242 = vmul.f32 %v3241, %v313
        %v3243 = vadd.f32 %v3242, 1e-05
        %v3244 = vrsqrt.pop %v3243
        %v3245 = vmul.f32 %v3237, %v3244
        %v3247 = vlaneseq
        %v3248 = vshrl.u32 %v3247, 7
        %v3249 = vsub.s32 0, %v3248
        %v3250 = vrot.slane %v3205, %v3249
        %v3252 = vmul.f32 %v3245, %v3250
        %v3254 = vlaneseq
        %v3255 = vshrl.u32 %v3254, 7
        %v3256 = vsub.s32 0, %v3255
        %v3257 = vrot.slane %v3207, %v3256
        %v3259 = vadd.f32 %v3252, %v3257
        %v3260 = vpack.c.bf16 %v3259, %v3259
        %v3269 = vunpack.c.l.b16 %v3217
        %v3270 = vunpack.c.h.b16 %v3217
        %v3271 = vunpack.c.l.b16 %v3219
        %v3272 = vunpack.c.h.b16 %v3219
        %v3273 = vunpack.c.l.b16 %v3221
        %v3274 = vunpack.c.h.b16 %v3221
        %v3275 = vunpack.c.l.b16 %v3223
        %v3276 = vunpack.c.h.b16 %v3223
        %v3277 = vunpack.c.l.b16 %v3225
        %v3278 = vunpack.c.h.b16 %v3225
        %v3279 = vunpack.c.l.b16 %v3227
        %v3280 = vunpack.c.h.b16 %v3227
        %v3281 = vunpack.c.l.b16 %v3229
        %v3282 = vunpack.c.h.b16 %v3229
        %v3283 = vunpack.c.l.b16 %v3231
        %v3284 = vunpack.c.h.b16 %v3231
        %v3285 = vpack.c.b16 %v3271, %v3269
        %v3286 = vpack.c.b16 %v3272, %v3270
        %v3287 = vpack.c.b16 %v3275, %v3273
        %v3288 = vpack.c.b16 %v3276, %v3274
        %v3289 = vpack.c.b16 %v3279, %v3277
        %v3290 = vpack.c.b16 %v3280, %v3278
        %v3291 = vpack.c.b16 %v3283, %v3281
        %v3292 = vpack.c.b16 %v3284, %v3282
        %v3302 = vsel %vm309, %v3260, 0
        %3304 = vmatprep.subr.bf16.mxu0 %v3286
        %3305 = vmatpush1.bf16.msra.mxu0 %v3285
        %3306 = vmatprep.subr.bf16.mxu0 %v3288
        %3307 = vmatpush1.bf16.msra.mxu0 %v3287
        %3308 = vmatprep.subr.bf16.mxu0 %v3290
        %3309 = vmatpush1.bf16.msra.mxu0 %v3289
        %3310 = vmatprep.subr.bf16.mxu0 %v3292
        %3311 = vmatpush1.bf16.msra.mxu0 %v3291
        %3312 = vmatprep.subr.bf16.mxu0 0
        %3313 = vmatpush1.bf16.msra.mxu0 0
        %3314 = vmatprep.subr.bf16.mxu0 0
        %3315 = vmatpush1.bf16.msra.mxu0 0
        %3316 = vmatprep.subr.bf16.mxu0 0
        %3317 = vmatpush1.bf16.msra.mxu0 0
        %3318 = vmatprep.subr.bf16.mxu0 0
        %3319 = vmatpush1.bf16.msra.mxu0 0
        %3320 = vmatprep.subr.bf16.mxu0 0
        %3321 = vmatpush1.bf16.msra.mxu0 0
        %3322 = vmatprep.subr.bf16.mxu0 0
        %3323 = vmatpush1.bf16.msra.mxu0 0
        %3324 = vmatprep.subr.bf16.mxu0 0
        %3325 = vmatpush1.bf16.msra.mxu0 0
        %3326 = vmatprep.subr.bf16.mxu0 0
        %3327 = vmatpush1.bf16.msra.mxu0 0
        %3328 = vmatprep.subr.bf16.mxu0 0
        %3329 = vmatpush1.bf16.msra.mxu0 0
        %3330 = vmatprep.subr.bf16.mxu0 0
        %3331 = vmatpush1.bf16.msra.mxu0 0
        %3332 = vmatprep.subr.bf16.mxu0 0
        %3333 = vmatpush1.bf16.msra.mxu0 0
        %3334 = vmatprep.subr.bf16.mxu0 0
        %3335 = vmatpush1.bf16.msra.mxu0 0
        %3336 = vmatprep.mubr.bf16.mxu0 0
        %3337 = vmatmul.mubr.bf16.gmra.mrb[0].mxu0 %v3302
        %v3338 = vpop.f32.mrb[0].mxu0
        %v3339 = vadd.f32 0.0, %v3338
        %v3340 = vpop.f32.mrb[0].mxu0
        %v3341 = vadd.f32 0.0, %v3340
        %v3342 = vpop.f32.mrb[0].mxu0
        %v3343 = vpop.f32.mrb[0].mxu0
        %3344 = vdwg.mxu0
        %v3345 = vpack.c.bf16 %v3339, %v3339
        %v3346 = vpack.c.bf16 %v3341, %v3341
        %3348 = vrot.lane.b32.xlu0 %v3345, 64
        %v3349 = vpop.permute.xlu0 %3348
        %v3351 = vsel %vm428, %v3345, 0
        %v3354 = vsel %vm428, %v3349, 0
        %3356 = vmatprep.subr.bf16.mxu0 0
        %3357 = vmatpush1.bf16.xpose.msra.mxu0 %v3354
        %3358 = vmatprep.subr.bf16.mxu0 0
        %3359 = vmatpush1.bf16.xpose.msra.mxu0 0
        %3360 = vmatprep.subr.bf16.mxu0 0
        %3361 = vmatpush1.bf16.xpose.msra.mxu0 0
        %3362 = vmatprep.subr.bf16.mxu0 0
        %3363 = vmatpush1.bf16.xpose.msra.mxu0 0
        %3364 = vmatprep.subr.bf16.mxu0 0
        %3365 = vmatpush1.bf16.xpose.msra.mxu0 0
        %3366 = vmatprep.subr.bf16.mxu0 0
        %3367 = vmatpush1.bf16.xpose.msra.mxu0 0
        %3368 = vmatprep.subr.bf16.mxu0 0
        %3369 = vmatpush1.bf16.xpose.msra.mxu0 0
        %3370 = vmatprep.subr.bf16.mxu0 0
        %3371 = vmatpush1.bf16.xpose.msra.mxu0 0
        %3372 = vmatprep.subr.bf16.mxu0 0
        %3373 = vmatpush1.bf16.xpose.msra.mxu0 0
        %3374 = vmatprep.subr.bf16.mxu0 0
        %3375 = vmatpush1.bf16.xpose.msra.mxu0 0
        %3376 = vmatprep.subr.bf16.mxu0 0
        %3377 = vmatpush1.bf16.xpose.msra.mxu0 0
        %3378 = vmatprep.subr.bf16.mxu0 0
        %3379 = vmatpush1.bf16.xpose.msra.mxu0 0
        %3380 = vmatprep.subr.bf16.mxu0 0
        %3381 = vmatpush1.bf16.xpose.msra.mxu0 0
        %3382 = vmatprep.subr.bf16.mxu0 0
        %3383 = vmatpush1.bf16.xpose.msra.mxu0 0
        %3384 = vmatprep.subr.bf16.mxu0 0
        %3385 = vmatpush1.bf16.xpose.msra.mxu0 0
        %3386 = vmatprep.subr.bf16.mxu0 0
        %3387 = vmatpush1.bf16.xpose.msra.mxu0 0
        %3388 = vmatprep.mubr.bf16.mxu0 0
        %3389 = vmatmul.mubr.bf16.gmra.mrb[0].mxu0 %v3351
        %v3390 = vpop.f32.mrb[0].mxu0
        %v3391 = vadd.f32 0.0, %v3390
        %v3392 = vpop.f32.mrb[0].mxu0
        %v3393 = vpop.f32.mrb[0].mxu0
        %v3394 = vpop.f32.mrb[0].mxu0
        %3395 = vdwg.mxu0
        %v3396 = vmul.f32 %v3391, 0.125
        %v3397 = vadd.f32 %v3396, %v281
        %v3398 = vsel %vm477, %v3397, -inf
        %3399 = vmax.xlane.f32.xlu0 %v3398
        %v3400 = vpop.xlane.xlu0 %3399
        %v3401 = vsub.f32 %v3397, %v3400
        %v3402 = vmul.f32 %v3401, 1.442695
        %v3403 = vpow.pop %v3402
        %v3404 = vsel %vm477, %v3403, 0.0
        %3405 = vadd.xlane.f32.xlu0 %v3404
        %v3406 = vpop.xlane.xlu0 %3405
        %v3407 = vrcp.pop %v3406
        %v3408 = vmul.f32 %v3403, %v3407
        %v3409 = vpack.c.bf16 %v3408, %v3408
        %v3411 = vsel %vm477, %v3409, 0
        %v3414 = vsel %vm493, %v3346, 0
        %3416 = vmatprep.subr.bf16.mxu0 0
        %3417 = vmatpush1.bf16.msra.mxu0 %v3414
        %3418 = vmatprep.subr.bf16.mxu0 0
        %3419 = vmatpush1.bf16.msra.mxu0 0
        %3420 = vmatprep.subr.bf16.mxu0 0
        %3421 = vmatpush1.bf16.msra.mxu0 0
        %3422 = vmatprep.subr.bf16.mxu0 0
        %3423 = vmatpush1.bf16.msra.mxu0 0
        %3424 = vmatprep.subr.bf16.mxu0 0
        %3425 = vmatpush1.bf16.msra.mxu0 0
        %3426 = vmatprep.subr.bf16.mxu0 0
        %3427 = vmatpush1.bf16.msra.mxu0 0
        %3428 = vmatprep.subr.bf16.mxu0 0
        %3429 = vmatpush1.bf16.msra.mxu0 0
        %3430 = vmatprep.subr.bf16.mxu0 0
        %3431 = vmatpush1.bf16.msra.mxu0 0
        %3432 = vmatprep.subr.bf16.mxu0 0
        %3433 = vmatpush1.bf16.msra.mxu0 0
        %3434 = vmatprep.subr.bf16.mxu0 0
        %3435 = vmatpush1.bf16.msra.mxu0 0
        %3436 = vmatprep.subr.bf16.mxu0 0
        %3437 = vmatpush1.bf16.msra.mxu0 0
        %3438 = vmatprep.subr.bf16.mxu0 0
        %3439 = vmatpush1.bf16.msra.mxu0 0
        %3440 = vmatprep.subr.bf16.mxu0 0
        %3441 = vmatpush1.bf16.msra.mxu0 0
        %3442 = vmatprep.subr.bf16.mxu0 0
        %3443 = vmatpush1.bf16.msra.mxu0 0
        %3444 = vmatprep.subr.bf16.mxu0 0
        %3445 = vmatpush1.bf16.msra.mxu0 0
        %3446 = vmatprep.subr.bf16.mxu0 0
        %3447 = vmatpush1.bf16.msra.mxu0 0
        %3448 = vmatprep.mubr.bf16.mxu0 0
        %3449 = vmatmul.mubr.bf16.gmra.mrb[0].mxu0 %v3411
        %v3450 = vpop.f32.mrb[0].mxu0
        %v3451 = vadd.f32 0.0, %v3450
        %v3452 = vpop.f32.mrb[0].mxu0
        %v3453 = vpop.f32.mrb[0].mxu0
        %v3454 = vpop.f32.mrb[0].mxu0
        %3455 = vdwg.mxu0
        %3456 = vrot.lane.b32.xlu0 %v3345, 112
        %v3457 = vpop.permute.xlu0 %3456
        %3458 = vrot.lane.b32.xlu0 %v3345, 48
        %v3459 = vpop.permute.xlu0 %3458
        %v3461 = vsel %vm428, %v3457, 0
        %v3464 = vsel %vm428, %v3459, 0
        %3466 = vmatprep.subr.bf16.mxu0 0
        %3467 = vmatpush1.bf16.xpose.msra.mxu0 %v3464
        %3468 = vmatprep.subr.bf16.mxu0 0
        %3469 = vmatpush1.bf16.xpose.msra.mxu0 0
        %3470 = vmatprep.subr.bf16.mxu0 0
        %3471 = vmatpush1.bf16.xpose.msra.mxu0 0
        %3472 = vmatprep.subr.bf16.mxu0 0
        %3473 = vmatpush1.bf16.xpose.msra.mxu0 0
        %3474 = vmatprep.subr.bf16.mxu0 0
        %3475 = vmatpush1.bf16.xpose.msra.mxu0 0
        %3476 = vmatprep.subr.bf16.mxu0 0
        %3477 = vmatpush1.bf16.xpose.msra.mxu0 0
        %3478 = vmatprep.subr.bf16.mxu0 0
        %3479 = vmatpush1.bf16.xpose.msra.mxu0 0
        %3480 = vmatprep.subr.bf16.mxu0 0
        %3481 = vmatpush1.bf16.xpose.msra.mxu0 0
        %3482 = vmatprep.subr.bf16.mxu0 0
        %3483 = vmatpush1.bf16.xpose.msra.mxu0 0
        %3484 = vmatprep.subr.bf16.mxu0 0
        %3485 = vmatpush1.bf16.xpose.msra.mxu0 0
        %3486 = vmatprep.subr.bf16.mxu0 0
        %3487 = vmatpush1.bf16.xpose.msra.mxu0 0
        %3488 = vmatprep.subr.bf16.mxu0 0
        %3489 = vmatpush1.bf16.xpose.msra.mxu0 0
        %3490 = vmatprep.subr.bf16.mxu0 0
        %3491 = vmatpush1.bf16.xpose.msra.mxu0 0
        %3492 = vmatprep.subr.bf16.mxu0 0
        %3493 = vmatpush1.bf16.xpose.msra.mxu0 0
        %3494 = vmatprep.subr.bf16.mxu0 0
        %3495 = vmatpush1.bf16.xpose.msra.mxu0 0
        %3496 = vmatprep.subr.bf16.mxu0 0
        %3497 = vmatpush1.bf16.xpose.msra.mxu0 0
        %3498 = vmatprep.mubr.bf16.mxu0 0
        %3499 = vmatmul.mubr.bf16.gmra.mrb[0].mxu0 %v3461
        %v3500 = vpop.f32.mrb[0].mxu0
        %v3501 = vadd.f32 0.0, %v3500
        %v3502 = vpop.f32.mrb[0].mxu0
        %v3503 = vpop.f32.mrb[0].mxu0
        %v3504 = vpop.f32.mrb[0].mxu0
        %3505 = vdwg.mxu0
        %v3506 = vmul.f32 %v3501, 0.125
        %v3507 = vadd.f32 %v3506, %v281
        %v3508 = vsel %vm477, %v3507, -inf
        %3509 = vmax.xlane.f32.xlu0 %v3508
        %v3510 = vpop.xlane.xlu0 %3509
        %v3511 = vsub.f32 %v3507, %v3510
        %v3512 = vmul.f32 %v3511, 1.442695
        %v3513 = vpow.pop %v3512
        %v3514 = vsel %vm477, %v3513, 0.0
        %3515 = vadd.xlane.f32.xlu0 %v3514
        %v3516 = vpop.xlane.xlu0 %3515
        %v3517 = vrcp.pop %v3516
        %v3518 = vmul.f32 %v3513, %v3517
        %v3519 = vpack.c.bf16 %v3518, %v3518
        %3521 = vrot.lane.b32.xlu0 %v3346, 112
        %v3522 = vpop.permute.xlu0 %3521
        %v3524 = vsel %vm477, %v3519, 0
        %v3527 = vsel %vm493, %v3522, 0
        %3529 = vmatprep.subr.bf16.mxu0 0
        %3530 = vmatpush1.bf16.msra.mxu0 %v3527
        %3531 = vmatprep.subr.bf16.mxu0 0
        %3532 = vmatpush1.bf16.msra.mxu0 0
        %3533 = vmatprep.subr.bf16.mxu0 0
        %3534 = vmatpush1.bf16.msra.mxu0 0
        %3535 = vmatprep.subr.bf16.mxu0 0
        %3536 = vmatpush1.bf16.msra.mxu0 0
        %3537 = vmatprep.subr.bf16.mxu0 0
        %3538 = vmatpush1.bf16.msra.mxu0 0
        %3539 = vmatprep.subr.bf16.mxu0 0
        %3540 = vmatpush1.bf16.msra.mxu0 0
        %3541 = vmatprep.subr.bf16.mxu0 0
        %3542 = vmatpush1.bf16.msra.mxu0 0
        %3543 = vmatprep.subr.bf16.mxu0 0
        %3544 = vmatpush1.bf16.msra.mxu0 0
        %3545 = vmatprep.subr.bf16.mxu0 0
        %3546 = vmatpush1.bf16.msra.mxu0 0
        %3547 = vmatprep.subr.bf16.mxu0 0
        %3548 = vmatpush1.bf16.msra.mxu0 0
        %3549 = vmatprep.subr.bf16.mxu0 0
        %3550 = vmatpush1.bf16.msra.mxu0 0
        %3551 = vmatprep.subr.bf16.mxu0 0
        %3552 = vmatpush1.bf16.msra.mxu0 0
        %3553 = vmatprep.subr.bf16.mxu0 0
        %3554 = vmatpush1.bf16.msra.mxu0 0
        %3555 = vmatprep.subr.bf16.mxu0 0
        %3556 = vmatpush1.bf16.msra.mxu0 0
        %3557 = vmatprep.subr.bf16.mxu0 0
        %3558 = vmatpush1.bf16.msra.mxu0 0
        %3559 = vmatprep.subr.bf16.mxu0 0
        %3560 = vmatpush1.bf16.msra.mxu0 0
        %3561 = vmatprep.mubr.bf16.mxu0 0
        %3562 = vmatmul.mubr.bf16.gmra.mrb[0].mxu0 %v3524
        %v3563 = vpop.f32.mrb[0].mxu0
        %v3564 = vadd.f32 0.0, %v3563
        %v3565 = vpop.f32.mrb[0].mxu0
        %v3566 = vpop.f32.mrb[0].mxu0
        %v3567 = vpop.f32.mrb[0].mxu0
        %3568 = vdwg.mxu0
        %3569 = vrot.lane.b32.xlu0 %v3345, 96
        %v3570 = vpop.permute.xlu0 %3569
        %3571 = vrot.lane.b32.xlu0 %v3345, 32
        %v3572 = vpop.permute.xlu0 %3571
        %v3574 = vsel %vm428, %v3570, 0
        %v3577 = vsel %vm428, %v3572, 0
        %3579 = vmatprep.subr.bf16.mxu0 0
        %3580 = vmatpush1.bf16.xpose.msra.mxu0 %v3577
        %3581 = vmatprep.subr.bf16.mxu0 0
        %3582 = vmatpush1.bf16.xpose.msra.mxu0 0
        %3583 = vmatprep.subr.bf16.mxu0 0
        %3584 = vmatpush1.bf16.xpose.msra.mxu0 0
        %3585 = vmatprep.subr.bf16.mxu0 0
        %3586 = vmatpush1.bf16.xpose.msra.mxu0 0
        %3587 = vmatprep.subr.bf16.mxu0 0
        %3588 = vmatpush1.bf16.xpose.msra.mxu0 0
        %3589 = vmatprep.subr.bf16.mxu0 0
        %3590 = vmatpush1.bf16.xpose.msra.mxu0 0
        %3591 = vmatprep.subr.bf16.mxu0 0
        %3592 = vmatpush1.bf16.xpose.msra.mxu0 0
        %3593 = vmatprep.subr.bf16.mxu0 0
        %3594 = vmatpush1.bf16.xpose.msra.mxu0 0
        %3595 = vmatprep.subr.bf16.mxu0 0
        %3596 = vmatpush1.bf16.xpose.msra.mxu0 0
        %3597 = vmatprep.subr.bf16.mxu0 0
        %3598 = vmatpush1.bf16.xpose.msra.mxu0 0
        %3599 = vmatprep.subr.bf16.mxu0 0
        %3600 = vmatpush1.bf16.xpose.msra.mxu0 0
        %3601 = vmatprep.subr.bf16.mxu0 0
        %3602 = vmatpush1.bf16.xpose.msra.mxu0 0
        %3603 = vmatprep.subr.bf16.mxu0 0
        %3604 = vmatpush1.bf16.xpose.msra.mxu0 0
        %3605 = vmatprep.subr.bf16.mxu0 0
        %3606 = vmatpush1.bf16.xpose.msra.mxu0 0
        %3607 = vmatprep.subr.bf16.mxu0 0
        %3608 = vmatpush1.bf16.xpose.msra.mxu0 0
        %3609 = vmatprep.subr.bf16.mxu0 0
        %3610 = vmatpush1.bf16.xpose.msra.mxu0 0
        %3611 = vmatprep.mubr.bf16.mxu0 0
        %3612 = vmatmul.mubr.bf16.gmra.mrb[0].mxu0 %v3574
        %v3613 = vpop.f32.mrb[0].mxu0
        %v3614 = vadd.f32 0.0, %v3613
        %v3615 = vpop.f32.mrb[0].mxu0
        %v3616 = vpop.f32.mrb[0].mxu0
        %v3617 = vpop.f32.mrb[0].mxu0
        %3618 = vdwg.mxu0
        %v3619 = vmul.f32 %v3614, 0.125
        %v3620 = vadd.f32 %v3619, %v281
        %v3621 = vsel %vm477, %v3620, -inf
        %3622 = vmax.xlane.f32.xlu0 %v3621
        %v3623 = vpop.xlane.xlu0 %3622
        %v3624 = vsub.f32 %v3620, %v3623
        %v3625 = vmul.f32 %v3624, 1.442695
        %v3626 = vpow.pop %v3625
        %v3627 = vsel %vm477, %v3626, 0.0
        %3628 = vadd.xlane.f32.xlu0 %v3627
        %v3629 = vpop.xlane.xlu0 %3628
        %v3630 = vrcp.pop %v3629
        %v3631 = vmul.f32 %v3626, %v3630
        %v3632 = vpack.c.bf16 %v3631, %v3631
        %3633 = vrot.lane.b32.xlu0 %v3346, 96
        %v3634 = vpop.permute.xlu0 %3633
        %v3636 = vsel %vm477, %v3632, 0
        %v3639 = vsel %vm493, %v3634, 0
        %3641 = vmatprep.subr.bf16.mxu0 0
        %3642 = vmatpush1.bf16.msra.mxu0 %v3639
        %3643 = vmatprep.subr.bf16.mxu0 0
        %3644 = vmatpush1.bf16.msra.mxu0 0
        %3645 = vmatprep.subr.bf16.mxu0 0
        %3646 = vmatpush1.bf16.msra.mxu0 0
        %3647 = vmatprep.subr.bf16.mxu0 0
        %3648 = vmatpush1.bf16.msra.mxu0 0
        %3649 = vmatprep.subr.bf16.mxu0 0
        %3650 = vmatpush1.bf16.msra.mxu0 0
        %3651 = vmatprep.subr.bf16.mxu0 0
        %3652 = vmatpush1.bf16.msra.mxu0 0
        %3653 = vmatprep.subr.bf16.mxu0 0
        %3654 = vmatpush1.bf16.msra.mxu0 0
        %3655 = vmatprep.subr.bf16.mxu0 0
        %3656 = vmatpush1.bf16.msra.mxu0 0
        %3657 = vmatprep.subr.bf16.mxu0 0
        %3658 = vmatpush1.bf16.msra.mxu0 0
        %3659 = vmatprep.subr.bf16.mxu0 0
        %3660 = vmatpush1.bf16.msra.mxu0 0
        %3661 = vmatprep.subr.bf16.mxu0 0
        %3662 = vmatpush1.bf16.msra.mxu0 0
        %3663 = vmatprep.subr.bf16.mxu0 0
        %3664 = vmatpush1.bf16.msra.mxu0 0
        %3665 = vmatprep.subr.bf16.mxu0 0
        %3666 = vmatpush1.bf16.msra.mxu0 0
        %3667 = vmatprep.subr.bf16.mxu0 0
        %3668 = vmatpush1.bf16.msra.mxu0 0
        %3669 = vmatprep.subr.bf16.mxu0 0
        %3670 = vmatpush1.bf16.msra.mxu0 0
        %3671 = vmatprep.subr.bf16.mxu0 0
        %3672 = vmatpush1.bf16.msra.mxu0 0
        %3673 = vmatprep.mubr.bf16.mxu0 0
        %3674 = vmatmul.mubr.bf16.gmra.mrb[0].mxu0 %v3636
        %v3675 = vpop.f32.mrb[0].mxu0
        %v3676 = vadd.f32 0.0, %v3675
        %v3677 = vpop.f32.mrb[0].mxu0
        %v3678 = vpop.f32.mrb[0].mxu0
        %v3679 = vpop.f32.mrb[0].mxu0
        %3680 = vdwg.mxu0
        %3681 = vrot.lane.b32.xlu0 %v3345, 80
        %v3682 = vpop.permute.xlu0 %3681
        %3683 = vrot.lane.b32.xlu0 %v3345, 16
        %v3684 = vpop.permute.xlu0 %3683
        %v3686 = vsel %vm428, %v3682, 0
        %v3689 = vsel %vm428, %v3684, 0
        %3691 = vmatprep.subr.bf16.mxu0 0
        %3692 = vmatpush1.bf16.xpose.msra.mxu0 %v3689
        %3693 = vmatprep.subr.bf16.mxu0 0
        %3694 = vmatpush1.bf16.xpose.msra.mxu0 0
        %3695 = vmatprep.subr.bf16.mxu0 0
        %3696 = vmatpush1.bf16.xpose.msra.mxu0 0
        %3697 = vmatprep.subr.bf16.mxu0 0
        %3698 = vmatpush1.bf16.xpose.msra.mxu0 0
        %3699 = vmatprep.subr.bf16.mxu0 0
        %3700 = vmatpush1.bf16.xpose.msra.mxu0 0
        %3701 = vmatprep.subr.bf16.mxu0 0
        %3702 = vmatpush1.bf16.xpose.msra.mxu0 0
        %3703 = vmatprep.subr.bf16.mxu0 0
        %3704 = vmatpush1.bf16.xpose.msra.mxu0 0
        %3705 = vmatprep.subr.bf16.mxu0 0
        %3706 = vmatpush1.bf16.xpose.msra.mxu0 0
        %3707 = vmatprep.subr.bf16.mxu0 0
        %3708 = vmatpush1.bf16.xpose.msra.mxu0 0
        %3709 = vmatprep.subr.bf16.mxu0 0
        %3710 = vmatpush1.bf16.xpose.msra.mxu0 0
        %3711 = vmatprep.subr.bf16.mxu0 0
        %3712 = vmatpush1.bf16.xpose.msra.mxu0 0
        %3713 = vmatprep.subr.bf16.mxu0 0
        %3714 = vmatpush1.bf16.xpose.msra.mxu0 0
        %3715 = vmatprep.subr.bf16.mxu0 0
        %3716 = vmatpush1.bf16.xpose.msra.mxu0 0
        %3717 = vmatprep.subr.bf16.mxu0 0
        %3718 = vmatpush1.bf16.xpose.msra.mxu0 0
        %3719 = vmatprep.subr.bf16.mxu0 0
        %3720 = vmatpush1.bf16.xpose.msra.mxu0 0
        %3721 = vmatprep.subr.bf16.mxu0 0
        %3722 = vmatpush1.bf16.xpose.msra.mxu0 0
        %3723 = vmatprep.mubr.bf16.mxu0 0
        %3724 = vmatmul.mubr.bf16.gmra.mrb[0].mxu0 %v3686
        %v3725 = vpop.f32.mrb[0].mxu0
        %v3726 = vadd.f32 0.0, %v3725
        %v3727 = vpop.f32.mrb[0].mxu0
        %v3728 = vpop.f32.mrb[0].mxu0
        %v3729 = vpop.f32.mrb[0].mxu0
        %3730 = vdwg.mxu0
        %v3731 = vmul.f32 %v3726, 0.125
        %v3732 = vadd.f32 %v3731, %v281
        %v3733 = vsel %vm477, %v3732, -inf
        %3734 = vmax.xlane.f32.xlu0 %v3733
        %v3735 = vpop.xlane.xlu0 %3734
        %v3736 = vsub.f32 %v3732, %v3735
        %v3737 = vmul.f32 %v3736, 1.442695
        %v3738 = vpow.pop %v3737
        %v3739 = vsel %vm477, %v3738, 0.0
        %3740 = vadd.xlane.f32.xlu0 %v3739
        %v3741 = vpop.xlane.xlu0 %3740
        %v3742 = vrcp.pop %v3741
        %v3743 = vmul.f32 %v3738, %v3742
        %v3744 = vpack.c.bf16 %v3743, %v3743
        %3745 = vrot.lane.b32.xlu0 %v3346, 80
        %v3746 = vpop.permute.xlu0 %3745
        %v3748 = vsel %vm477, %v3744, 0
        %v3751 = vsel %vm493, %v3746, 0
        %3753 = vmatprep.subr.bf16.mxu0 0
        %3754 = vmatpush1.bf16.msra.mxu0 %v3751
        %3755 = vmatprep.subr.bf16.mxu0 0
        %3756 = vmatpush1.bf16.msra.mxu0 0
        %3757 = vmatprep.subr.bf16.mxu0 0
        %3758 = vmatpush1.bf16.msra.mxu0 0
        %3759 = vmatprep.subr.bf16.mxu0 0
        %3760 = vmatpush1.bf16.msra.mxu0 0
        %3761 = vmatprep.subr.bf16.mxu0 0
        %3762 = vmatpush1.bf16.msra.mxu0 0
        %3763 = vmatprep.subr.bf16.mxu0 0
        %3764 = vmatpush1.bf16.msra.mxu0 0
        %3765 = vmatprep.subr.bf16.mxu0 0
        %3766 = vmatpush1.bf16.msra.mxu0 0
        %3767 = vmatprep.subr.bf16.mxu0 0
        %3768 = vmatpush1.bf16.msra.mxu0 0
        %3769 = vmatprep.subr.bf16.mxu0 0
        %3770 = vmatpush1.bf16.msra.mxu0 0
        %3771 = vmatprep.subr.bf16.mxu0 0
        %3772 = vmatpush1.bf16.msra.mxu0 0
        %3773 = vmatprep.subr.bf16.mxu0 0
        %3774 = vmatpush1.bf16.msra.mxu0 0
        %3775 = vmatprep.subr.bf16.mxu0 0
        %3776 = vmatpush1.bf16.msra.mxu0 0
        %3777 = vmatprep.subr.bf16.mxu0 0
        %3778 = vmatpush1.bf16.msra.mxu0 0
        %3779 = vmatprep.subr.bf16.mxu0 0
        %3780 = vmatpush1.bf16.msra.mxu0 0
        %3781 = vmatprep.subr.bf16.mxu0 0
        %3782 = vmatpush1.bf16.msra.mxu0 0
        %3783 = vmatprep.subr.bf16.mxu0 0
        %3784 = vmatpush1.bf16.msra.mxu0 0
        %3785 = vmatprep.mubr.bf16.mxu0 0
        %3786 = vmatmul.mubr.bf16.gmra.mrb[0].mxu0 %v3748
        %v3787 = vpop.f32.mrb[0].mxu0
        %v3788 = vadd.f32 0.0, %v3787
        %v3789 = vpop.f32.mrb[0].mxu0
        %v3790 = vpop.f32.mrb[0].mxu0
        %v3791 = vpop.f32.mrb[0].mxu0
        %3792 = vdwg.mxu0
        %3794 = vrot.lane.b32.xlu0 %v3564, 16
        %v3795 = vpop.permute.xlu0 %3794
        %3798 = vrot.lane.b32.xlu0 %v3676, 32
        %v3799 = vpop.permute.xlu0 %3798
        %3802 = vrot.lane.b32.xlu0 %v3788, 48
        %v3803 = vpop.permute.xlu0 %3802
        %v3805 = vsel %vm428, %v3451, %v3795
        %v3806 = vsel %vm887, %v3805, %v3799
        %v3807 = vsel %vm889, %v3806, %v3803
        %v3808 = vpack.c.bf16 %v3807, %v3807
        %v3810 = vlaneseq
        %v3811 = vshrl.u32 %v3810, 7
        %v3812 = vsub.s32 0, %v3811
        %v3813 = vrot.slane %v3213, %v3812
        %3815 = vrot.lane.b32.xlu0 %v3286, 64
        %v3816 = vpop.permute.xlu0 %3815
        %3817 = vrot.lane.b32.xlu0 %v3288, 64
        %v3818 = vpop.permute.xlu0 %3817
        %3819 = vrot.lane.b32.xlu0 %v3290, 64
        %v3820 = vpop.permute.xlu0 %3819
        %3821 = vrot.lane.b32.xlu0 %v3292, 64
        %v3822 = vpop.permute.xlu0 %3821
        %v3828 = vsel %vm309, %v3808, 0
        %3830 = vmatprep.subr.bf16.mxu0 0
        %3831 = vmatpush1.bf16.msra.mxu0 %v3816
        %3832 = vmatprep.subr.bf16.mxu0 0
        %3833 = vmatpush1.bf16.msra.mxu0 %v3818
        %3834 = vmatprep.subr.bf16.mxu0 0
        %3835 = vmatpush1.bf16.msra.mxu0 %v3820
        %3836 = vmatprep.subr.bf16.mxu0 0
        %3837 = vmatpush1.bf16.msra.mxu0 %v3822
        %3838 = vmatprep.subr.bf16.mxu0 0
        %3839 = vmatpush1.bf16.msra.mxu0 0
        %3840 = vmatprep.subr.bf16.mxu0 0
        %3841 = vmatpush1.bf16.msra.mxu0 0
        %3842 = vmatprep.subr.bf16.mxu0 0
        %3843 = vmatpush1.bf16.msra.mxu0 0
        %3844 = vmatprep.subr.bf16.mxu0 0
        %3845 = vmatpush1.bf16.msra.mxu0 0
        %3846 = vmatprep.subr.bf16.mxu0 0
        %3847 = vmatpush1.bf16.msra.mxu0 0
        %3848 = vmatprep.subr.bf16.mxu0 0
        %3849 = vmatpush1.bf16.msra.mxu0 0
        %3850 = vmatprep.subr.bf16.mxu0 0
        %3851 = vmatpush1.bf16.msra.mxu0 0
        %3852 = vmatprep.subr.bf16.mxu0 0
        %3853 = vmatpush1.bf16.msra.mxu0 0
        %3854 = vmatprep.subr.bf16.mxu0 0
        %3855 = vmatpush1.bf16.msra.mxu0 0
        %3856 = vmatprep.subr.bf16.mxu0 0
        %3857 = vmatpush1.bf16.msra.mxu0 0
        %3858 = vmatprep.subr.bf16.mxu0 0
        %3859 = vmatpush1.bf16.msra.mxu0 0
        %3860 = vmatprep.subr.bf16.mxu0 0
        %3861 = vmatpush1.bf16.msra.mxu0 0
        %3862 = vmatprep.mubr.bf16.mxu0 0
        %3863 = vmatmul.mubr.bf16.gmra.mrb[0].mxu0 %v3828
        %v3864 = vpop.f32.mrb[0].mxu0
        %v3865 = vadd.f32 %v3813, %v3864
        %v3866 = vpop.f32.mrb[0].mxu0
        %v3867 = vpop.f32.mrb[0].mxu0
        %v3868 = vpop.f32.mrb[0].mxu0
        %3869 = vdwg.mxu0
        %v3870 = vadd.f32 %v3203, %v3865
        %v3871 = vsel %vm309, %v3870, 0.0
        %3872 = vadd.xlane.f32.xlu0 %v3871
        %v3873 = vpop.xlane.xlu0 %3872
        %v3874 = vmul.f32 %v3873, %v313
        %v3875 = vsub.f32 %v3870, %v3874
        %v3876 = vmul.f32 %v3875, %v3875
        %v3877 = vsel %vm309, %v3876, 0.0
        %3878 = vadd.xlane.f32.xlu0 %v3877
        %v3879 = vpop.xlane.xlu0 %3878
        %v3880 = vmul.f32 %v3879, %v313
        %v3881 = vadd.f32 %v3880, 1e-05
        %v3882 = vrsqrt.pop %v3881
        %v3883 = vmul.f32 %v3875, %v3882
        %v3885 = vlaneseq
        %v3886 = vshrl.u32 %v3885, 7
        %v3887 = vsub.s32 0, %v3886
        %v3888 = vrot.slane %v3209, %v3887
        %v3890 = vmul.f32 %v3883, %v3888
        %v3892 = vlaneseq
        %v3893 = vshrl.u32 %v3892, 7
        %v3894 = vsub.s32 0, %v3893
        %v3895 = vrot.slane %v3211, %v3894
        %v3897 = vadd.f32 %v3890, %v3895
        %v3898 = vpack.c.bf16 %v3897, %v3897
        %s3899 = scalar_lea.vmem %s5, 6
        %v3900 = vld [vmem:[%s3899] sm:$0x3]
        %v3902 = vlaneseq
        %v3903 = vshrl.u32 %v3902, 7
        %v3904 = vsub.s32 0, %v3903
        %v3905 = vrot.slane %v3900, %v3904
        %v3906 = vlaneseq
        %v3907 = vshrl.u32 %v3906, 7
        %v3908 = vsub.s32 1, %v3907
        %v3909 = vrot.slane %v3900, %v3908
        %v3920 = vunpack.c.l.b16 %v3218
        %v3921 = vunpack.c.h.b16 %v3218
        %v3922 = vunpack.c.l.b16 %v3220
        %v3923 = vunpack.c.h.b16 %v3220
        %v3924 = vunpack.c.l.b16 %v3222
        %v3925 = vunpack.c.h.b16 %v3222
        %v3926 = vunpack.c.l.b16 %v3224
        %v3927 = vunpack.c.h.b16 %v3224
        %v3928 = vunpack.c.l.b16 %v3226
        %v3929 = vunpack.c.h.b16 %v3226
        %v3930 = vunpack.c.l.b16 %v3228
        %v3931 = vunpack.c.h.b16 %v3228
        %v3932 = vunpack.c.l.b16 %v3230
        %v3933 = vunpack.c.h.b16 %v3230
        %v3934 = vunpack.c.l.b16 %v3232
        %v3935 = vunpack.c.h.b16 %v3232
        %v3936 = vpack.c.b16 %v3922, %v3920
        %v3937 = vpack.c.b16 %v3923, %v3921
        %v3938 = vpack.c.b16 %v3926, %v3924
        %v3939 = vpack.c.b16 %v3927, %v3925
        %v3940 = vpack.c.b16 %v3930, %v3928
        %v3941 = vpack.c.b16 %v3931, %v3929
        %v3942 = vpack.c.b16 %v3934, %v3932
        %v3943 = vpack.c.b16 %v3935, %v3933
        %v3953 = vsel %vm309, %v3898, 0
        %3955 = vmatprep.subr.bf16.mxu0 %v3937
        %3956 = vmatpush1.bf16.msra.mxu0 %v3936
        %3957 = vmatprep.subr.bf16.mxu0 %v3939
        %3958 = vmatpush1.bf16.msra.mxu0 %v3938
        %3959 = vmatprep.subr.bf16.mxu0 %v3941
        %3960 = vmatpush1.bf16.msra.mxu0 %v3940
        %3961 = vmatprep.subr.bf16.mxu0 %v3943
        %3962 = vmatpush1.bf16.msra.mxu0 %v3942
        %3963 = vmatprep.subr.bf16.mxu0 0
        %3964 = vmatpush1.bf16.msra.mxu0 0
        %3965 = vmatprep.subr.bf16.mxu0 0
        %3966 = vmatpush1.bf16.msra.mxu0 0
        %3967 = vmatprep.subr.bf16.mxu0 0
        %3968 = vmatpush1.bf16.msra.mxu0 0
        %3969 = vmatprep.subr.bf16.mxu0 0
        %3970 = vmatpush1.bf16.msra.mxu0 0
        %3971 = vmatprep.subr.bf16.mxu0 0
        %3972 = vmatpush1.bf16.msra.mxu0 0
        %3973 = vmatprep.subr.bf16.mxu0 0
        %3974 = vmatpush1.bf16.msra.mxu0 0
        %3975 = vmatprep.subr.bf16.mxu0 0
        %3976 = vmatpush1.bf16.msra.mxu0 0
        %3977 = vmatprep.subr.bf16.mxu0 0
        %3978 = vmatpush1.bf16.msra.mxu0 0
        %3979 = vmatprep.subr.bf16.mxu0 0
        %3980 = vmatpush1.bf16.msra.mxu0 0
        %3981 = vmatprep.subr.bf16.mxu0 0
        %3982 = vmatpush1.bf16.msra.mxu0 0
        %3983 = vmatprep.subr.bf16.mxu0 0
        %3984 = vmatpush1.bf16.msra.mxu0 0
        %3985 = vmatprep.subr.bf16.mxu0 0
        %3986 = vmatpush1.bf16.msra.mxu0 0
        %3987 = vmatprep.mubr.bf16.mxu0 0
        %3988 = vmatmul.mubr.bf16.gmra.mrb[0].mxu0 %v3953
        %v3989 = vpop.f32.mrb[0].mxu0
        %v3990 = vadd.f32 %v3905, %v3989
        %v3991 = vpop.f32.mrb[0].mxu0
        %v3992 = vadd.f32 %v3909, %v3991
        %v3993 = vpop.f32.mrb[0].mxu0
        %v3994 = vpop.f32.mrb[0].mxu0
        %3995 = vdwg.mxu0
        %v3996 = vmax.f32 %v3990, 0.0
        %v3997 = vmax.f32 %v3992, 0.0
        %v3998 = vpack.c.bf16 %v3996, %v3996
        %v3999 = vpack.c.bf16 %v3997, %v3997
        %s4000 = scalar_lea.vmem %s2, 384
        %v4001 = vld [vmem:[%s4000] sm:$0xf]
        %v4002 = vld [vmem:[%s4000 + $0x4] sm:$0xf]
        %v4003 = vld [vmem:[%s4000 + $0x8] sm:$0xf]
        %v4004 = vld [vmem:[%s4000 + $0xc] sm:$0xf]
        %v4005 = vld [vmem:[%s4000 + $0x10] sm:$0xf]
        %v4006 = vld [vmem:[%s4000 + $0x14] sm:$0xf]
        %v4007 = vld [vmem:[%s4000 + $0x18] sm:$0xf]
        %v4008 = vld [vmem:[%s4000 + $0x1c] sm:$0xf]
        %v4009 = vld [vmem:[%s4000 + $0x20] sm:$0xf]
        %v4010 = vld [vmem:[%s4000 + $0x24] sm:$0xf]
        %v4011 = vld [vmem:[%s4000 + $0x28] sm:$0xf]
        %v4012 = vld [vmem:[%s4000 + $0x2c] sm:$0xf]
        %v4013 = vld [vmem:[%s4000 + $0x30] sm:$0xf]
        %v4014 = vld [vmem:[%s4000 + $0x34] sm:$0xf]
        %v4015 = vld [vmem:[%s4000 + $0x38] sm:$0xf]
        %v4016 = vld [vmem:[%s4000 + $0x3c] sm:$0xf]
        %v4017 = vld [vmem:[%s4000 + $0x40] sm:$0xf]
        %v4018 = vld [vmem:[%s4000 + $0x44] sm:$0xf]
        %v4019 = vld [vmem:[%s4000 + $0x48] sm:$0xf]
        %v4020 = vld [vmem:[%s4000 + $0x4c] sm:$0xf]
        %v4021 = vld [vmem:[%s4000 + $0x50] sm:$0xf]
        %v4022 = vld [vmem:[%s4000 + $0x54] sm:$0xf]
        %v4023 = vld [vmem:[%s4000 + $0x58] sm:$0xf]
        %v4024 = vld [vmem:[%s4000 + $0x5c] sm:$0xf]
        %v4025 = vld [vmem:[%s4000 + $0x60] sm:$0xf]
        %v4026 = vld [vmem:[%s4000 + $0x64] sm:$0xf]
        %v4027 = vld [vmem:[%s4000 + $0x68] sm:$0xf]
        %v4028 = vld [vmem:[%s4000 + $0x6c] sm:$0xf]
        %v4029 = vld [vmem:[%s4000 + $0x70] sm:$0xf]
        %v4030 = vld [vmem:[%s4000 + $0x74] sm:$0xf]
        %v4031 = vld [vmem:[%s4000 + $0x78] sm:$0xf]
        %v4032 = vld [vmem:[%s4000 + $0x7c] sm:$0xf]
        %v4065 = vunpack.c.l.b16 %v4001
        %v4066 = vunpack.c.l.b16 %v4002
        %v4067 = vunpack.c.l.b16 %v4003
        %v4068 = vunpack.c.l.b16 %v4004
        %v4069 = vunpack.c.l.b16 %v4005
        %v4070 = vunpack.c.l.b16 %v4006
        %v4071 = vunpack.c.l.b16 %v4007
        %v4072 = vunpack.c.l.b16 %v4008
        %v4073 = vunpack.c.l.b16 %v4009
        %v4074 = vunpack.c.l.b16 %v4010
        %v4075 = vunpack.c.l.b16 %v4011
        %v4076 = vunpack.c.l.b16 %v4012
        %v4077 = vunpack.c.l.b16 %v4013
        %v4078 = vunpack.c.l.b16 %v4014
        %v4079 = vunpack.c.l.b16 %v4015
        %v4080 = vunpack.c.l.b16 %v4016
        %v4081 = vunpack.c.l.b16 %v4017
        %v4082 = vunpack.c.l.b16 %v4018
        %v4083 = vunpack.c.l.b16 %v4019
        %v4084 = vunpack.c.l.b16 %v4020
        %v4085 = vunpack.c.l.b16 %v4021
        %v4086 = vunpack.c.l.b16 %v4022
        %v4087 = vunpack.c.l.b16 %v4023
        %v4088 = vunpack.c.l.b16 %v4024
        %v4089 = vunpack.c.l.b16 %v4025
        %v4090 = vunpack.c.l.b16 %v4026
        %v4091 = vunpack.c.l.b16 %v4027
        %v4092 = vunpack.c.l.b16 %v4028
        %v4093 = vunpack.c.l.b16 %v4029
        %v4094 = vunpack.c.l.b16 %v4030
        %v4095 = vunpack.c.l.b16 %v4031
        %v4096 = vunpack.c.l.b16 %v4032
        %v4097 = vpack.c.b16 %v4066, %v4065
        %v4098 = vpack.c.b16 %v4068, %v4067
        %v4099 = vpack.c.b16 %v4070, %v4069
        %v4100 = vpack.c.b16 %v4072, %v4071
        %v4101 = vpack.c.b16 %v4074, %v4073
        %v4102 = vpack.c.b16 %v4076, %v4075
        %v4103 = vpack.c.b16 %v4078, %v4077
        %v4104 = vpack.c.b16 %v4080, %v4079
        %v4105 = vpack.c.b16 %v4082, %v4081
        %v4106 = vpack.c.b16 %v4084, %v4083
        %v4107 = vpack.c.b16 %v4086, %v4085
        %v4108 = vpack.c.b16 %v4088, %v4087
        %v4109 = vpack.c.b16 %v4090, %v4089
        %v4110 = vpack.c.b16 %v4092, %v4091
        %v4111 = vpack.c.b16 %v4094, %v4093
        %v4112 = vpack.c.b16 %v4096, %v4095
        %4129 = vmatprep.subr.bf16.mxu0 0
        %4130 = vmatpush1.bf16.msra.mxu0 %v4097
        %4131 = vmatprep.subr.bf16.mxu0 0
        %4132 = vmatpush1.bf16.msra.mxu0 %v4098
        %4133 = vmatprep.subr.bf16.mxu0 0
        %4134 = vmatpush1.bf16.msra.mxu0 %v4099
        %4135 = vmatprep.subr.bf16.mxu0 0
        %4136 = vmatpush1.bf16.msra.mxu0 %v4100
        %4137 = vmatprep.subr.bf16.mxu0 0
        %4138 = vmatpush1.bf16.msra.mxu0 %v4101
        %4139 = vmatprep.subr.bf16.mxu0 0
        %4140 = vmatpush1.bf16.msra.mxu0 %v4102
        %4141 = vmatprep.subr.bf16.mxu0 0
        %4142 = vmatpush1.bf16.msra.mxu0 %v4103
        %4143 = vmatprep.subr.bf16.mxu0 0
        %4144 = vmatpush1.bf16.msra.mxu0 %v4104
        %4145 = vmatprep.subr.bf16.mxu0 0
        %4146 = vmatpush1.bf16.msra.mxu0 %v4105
        %4147 = vmatprep.subr.bf16.mxu0 0
        %4148 = vmatpush1.bf16.msra.mxu0 %v4106
        %4149 = vmatprep.subr.bf16.mxu0 0
        %4150 = vmatpush1.bf16.msra.mxu0 %v4107
        %4151 = vmatprep.subr.bf16.mxu0 0
        %4152 = vmatpush1.bf16.msra.mxu0 %v4108
        %4153 = vmatprep.subr.bf16.mxu0 0
        %4154 = vmatpush1.bf16.msra.mxu0 %v4109
        %4155 = vmatprep.subr.bf16.mxu0 0
        %4156 = vmatpush1.bf16.msra.mxu0 %v4110
        %4157 = vmatprep.subr.bf16.mxu0 0
        %4158 = vmatpush1.bf16.msra.mxu0 %v4111
        %4159 = vmatprep.subr.bf16.mxu0 0
        %4160 = vmatpush1.bf16.msra.mxu0 %v4112
        %4161 = vmatprep.mubr.bf16.mxu0 %v3999
        %4162 = vmatmul.mubr.bf16.gmra.mrb[0].mxu0 %v3998
        %v4163 = vpop.f32.mrb[0].mxu0
        %v4164 = vadd.f32 0.0, %v4163
        %v4165 = vpop.f32.mrb[0].mxu0
        %v4166 = vpop.f32.mrb[0].mxu0
        %v4167 = vpop.f32.mrb[0].mxu0
        %4168 = vdwg.mxu0
        %v4169 = vadd.f32 %v3870, %v4164
        %v4171 = vlaneseq
        %v4172 = vshrl.u32 %v4171, 7
        %v4173 = vsub.s32 0, %v4172
        %v4174 = vrot.slane %v3215, %v4173
        %v4176 = vadd.f32 %v4169, %v4174
        %s4177 = scalar_lea.vmem %s4, 24
        %v4178 = vld [vmem:[%s4177] sm:$0x1]
        %s4179 = scalar_lea.vmem %s4, 25
        %v4180 = vld [vmem:[%s4179] sm:$0x1]
        %v4181 = vsel %vm309, %v4176, 0.0
        %4182 = vadd.xlane.f32.xlu0 %v4181
        %v4183 = vpop.xlane.xlu0 %4182
        %v4184 = vmul.f32 %v4183, %v313
        %v4185 = vsub.f32 %v4176, %v4184
        %v4186 = vmul.f32 %v4185, %v4185
        %v4187 = vsel %vm309, %v4186, 0.0
        %4188 = vadd.xlane.f32.xlu0 %v4187
        %v4189 = vpop.xlane.xlu0 %4188
        %v4190 = vmul.f32 %v4189, %v313
        %v4191 = vadd.f32 %v4190, 1e-05
        %v4192 = vrsqrt.pop %v4191
        %v4193 = vmul.f32 %v4185, %v4192
        %v4195 = vlaneseq
        %v4196 = vshrl.u32 %v4195, 7
        %v4197 = vsub.s32 0, %v4196
        %v4198 = vrot.slane %v4178, %v4197
        %v4200 = vmul.f32 %v4193, %v4198
        %v4202 = vlaneseq
        %v4203 = vshrl.u32 %v4202, 7
        %v4204 = vsub.s32 0, %v4203
        %v4205 = vrot.slane %v4180, %v4204
        %v4207 = vadd.f32 %v4200, %v4205
        %v4208 = vpack.c.bf16 %v4207, %v4207
        %v4209 = vld [vmem:[%s3] sm:$0xf]
        %v4210 = vld [vmem:[%s3 + $0x4] sm:$0xf]
        %v4211 = vld [vmem:[%s3 + $0x8] sm:$0xf]
        %v4212 = vld [vmem:[%s3 + $0xc] sm:$0xf]
        %v4213 = vld [vmem:[%s3 + $0x10] sm:$0xf]
        %v4214 = vld [vmem:[%s3 + $0x14] sm:$0xf]
        %v4215 = vld [vmem:[%s3 + $0x18] sm:$0xf]
        %v4216 = vld [vmem:[%s3 + $0x1c] sm:$0xf]
        %v4217 = vld [vmem:[%s6] sm:$0x1]
        %v4219 = vlaneseq
        %v4220 = vshrl.u32 %v4219, 7
        %v4221 = vsub.s32 0, %v4220
        %v4222 = vrot.slane %v4217, %v4221
        %v4232 = vunpack.c.l.b16 %v4209
        %v4233 = vunpack.c.l.b16 %v4210
        %v4234 = vunpack.c.l.b16 %v4211
        %v4235 = vunpack.c.l.b16 %v4212
        %v4236 = vunpack.c.l.b16 %v4213
        %v4237 = vunpack.c.l.b16 %v4214
        %v4238 = vunpack.c.l.b16 %v4215
        %v4239 = vunpack.c.l.b16 %v4216
        %v4240 = vpack.c.b16 %v4233, %v4232
        %v4241 = vpack.c.b16 %v4235, %v4234
        %v4242 = vpack.c.b16 %v4237, %v4236
        %v4243 = vpack.c.b16 %v4239, %v4238
        %v4249 = vsel %vm309, %v4208, 0
        %4251 = vmatprep.subr.bf16.mxu0 0
        %4252 = vmatpush1.bf16.msra.mxu0 %v4240
        %4253 = vmatprep.subr.bf16.mxu0 0
        %4254 = vmatpush1.bf16.msra.mxu0 %v4241
        %4255 = vmatprep.subr.bf16.mxu0 0
        %4256 = vmatpush1.bf16.msra.mxu0 %v4242
        %4257 = vmatprep.subr.bf16.mxu0 0
        %4258 = vmatpush1.bf16.msra.mxu0 %v4243
        %4259 = vmatprep.subr.bf16.mxu0 0
        %4260 = vmatpush1.bf16.msra.mxu0 0
        %4261 = vmatprep.subr.bf16.mxu0 0
        %4262 = vmatpush1.bf16.msra.mxu0 0
        %4263 = vmatprep.subr.bf16.mxu0 0
        %4264 = vmatpush1.bf16.msra.mxu0 0
        %4265 = vmatprep.subr.bf16.mxu0 0
        %4266 = vmatpush1.bf16.msra.mxu0 0
        %4267 = vmatprep.subr.bf16.mxu0 0
        %4268 = vmatpush1.bf16.msra.mxu0 0
        %4269 = vmatprep.subr.bf16.mxu0 0
        %4270 = vmatpush1.bf16.msra.mxu0 0
        %4271 = vmatprep.subr.bf16.mxu0 0
        %4272 = vmatpush1.bf16.msra.mxu0 0
        %4273 = vmatprep.subr.bf16.mxu0 0
        %4274 = vmatpush1.bf16.msra.mxu0 0
        %4275 = vmatprep.subr.bf16.mxu0 0
        %4276 = vmatpush1.bf16.msra.mxu0 0
        %4277 = vmatprep.subr.bf16.mxu0 0
        %4278 = vmatpush1.bf16.msra.mxu0 0
        %4279 = vmatprep.subr.bf16.mxu0 0
        %4280 = vmatpush1.bf16.msra.mxu0 0
        %4281 = vmatprep.subr.bf16.mxu0 0
        %4282 = vmatpush1.bf16.msra.mxu0 0
        %4283 = vmatprep.mubr.bf16.mxu0 0
        %4284 = vmatmul.mubr.bf16.gmra.mrb[0].mxu0 %v4249
        %v4285 = vpop.f32.mrb[0].mxu0
        %v4286 = vadd.f32 %v4222, %v4285
        %v4287 = vpop.f32.mrb[0].mxu0
        %v4288 = vpop.f32.mrb[0].mxu0
        %v4289 = vpop.f32.mrb[0].mxu0
        %4290 = vdwg.mxu0
        %4291 = vst [vmem:[%s269] sm:$0xff] %v4286
        %s4292 = sand.u32 %s181, 1
        %s4293 = scalar_lea.sflag [#allocation3], %s4292
        %s4294 = sand.u32 %s181, 1
        %s4295 = smul.addr %s4294, 8
        %s4296 = scalar_lea.vmem [#allocation2], %s4295
        // Predicated region
        $region49: #{forward.1} parent=47 // pred_check
          %p4297 = pneg %p191
        $region50: #{forward.1} parent=47 // pred_check_branch
          %4299 = sbr.rel (%p4297) target = $region52
        $region51: #{forward.1} parent=47 // pred_region
          %s4301 = ssub.s32 128, 128
          %4302 = vsyncadd %s4293, %s4301
          %s4303 = smul.addr %s21, 128
          %s4304 = scalar_lea.hbm %s7, %s4303
          %s4306 = sshll.u32 %s4296, 4
          %s4307 = int_to_ptr.vmem [resolvable:$true] %s4306
          %4309 = dma.vmem_to_hbm [thread:$0]  %s4307, 128, %s4304, %s4293
        $region52: #{forward.1} parent=47 // pred_fallthru
          _
      $region48: #{forward.1} parent=5 // pred_fallthru
        _
      %p4310 = scmp.le.s32.totalorder 2, %s16
      // Predicated region
      $region53: #{forward.1} parent=5 // pred_check
        %p4311 = pneg %p4310
      $region54: #{forward.1} parent=5 // pred_check_branch
        %4313 = sbr.rel (%p4311) target = $region56
      $region55: #{forward.1} parent=5 // pred_region
        %s4314 = ssub.s32 %s16, 2
        // Predicated region
        $region57: #{forward.1} parent=55 // pred_check
          %p4315 = pneg %p197
        $region58: #{forward.1} parent=55 // pred_check_branch
          %4317 = sbr.rel (%p4315) target = $region60
        $region59: #{forward.1} parent=55 // pred_region
          %s4318 = sand.u32 %s182, 1
          %s4319 = scalar_lea.sflag [#allocation3], %s4318
          %s4320 = sand.u32 %s182, 1
          %s4321 = smul.addr %s4320, 8
          %s4322 = scalar_lea.vmem [#allocation2], %s4321
          %4323 = dma.done %s4319, 128
        $region60: #{forward.1} parent=55 // pred_fallthru
          _
      $region56: #{forward.1} parent=5 // pred_fallthru
        _
    $region6: #{forward.1} parent=1 // loop_footer
      %s20 = sadd.s32 1, %s16
    $region7: #{forward.1} parent=1 // loop_footer_branch
      %15 = sbr.rel target = $region3
    $region8: #{forward.1} parent=1 // loop_exit
      _
    %4324 = vsyncpa [#allocation3], 1
    %s4325 = scalar_lea.sflag [#allocation3], 1
    %4326 = vsyncpa %s4325, 1

</llo_original>
